<compile_context>
chip_gen: v7x
topology: tpu7x:2x2x1
jax: 0.10.0
libtpu: 0.0.40
codegen_flags: <defaults>
</compile_context>

<pallas_src>
import jax
import jax.numpy as jnp
from jax.experimental import pallas as pl
from jax.experimental.pallas import tpu as pltpu

NEG_INF = -1e30  # Python float: large finite negative (no NaN for empty rows, no captured const)


def _round_up(x, m):
    return (x + m - 1) // m * m


def bahdanau_attention_kernel(last_tile_ref,                       # scalar-prefetch (SMEM): (nb,)
                              lens_ref, wsq_ref, enc_ref, wh_w_ref, v_w_ref,
                              out_ref,
                              t_sc, m_sc, l_sc, acc_sc):
    bb = pl.program_id(0)
    s = pl.program_id(1)
    ns = pl.num_programs(1)
    tb, ts, hp = enc_ref.shape

    @pl.when(s == 0)
    def _init():
        m_sc[...] = jnp.full(m_sc.shape, NEG_INF, jnp.float32)
        l_sc[...] = jnp.zeros(l_sc.shape, jnp.float32)
        acc_sc[...] = jnp.zeros(acc_sc.shape, jnp.float32)

    # Skip src tiles that lie entirely beyond every row of this batch block
    # (their enc block is not re-DMA'd either: the enc index_map clamps to last_tile).
    @pl.when(s <= last_tile_ref[bb])
    def _compute():
        # tanh(Wh e + (Ws q + ws_b + wh_b)): one dense (ts,Hp)@(Hp,Hp) bf16 MXU
        # matmul per row of the batch block, f32 accumulate; query term precomputed.
        for r in range(tb):                                        # static unroll
            t_sc[r] = jnp.tanh(
                jnp.dot(enc_ref[r], wh_w_ref[...],
                        preferred_element_type=jnp.float32)
                + wsq_ref[r])

        t = t_sc[...]                                              # (TB, ts, Hp) f32

        # scores_j = v . t_j  (flash-style batched einsum with a q-dim of 1).
        # v_b is dropped: softmax(x + c) == softmax(x).
        v3 = jnp.broadcast_to(v_w_ref[...], (tb, 1, hp))
        scores = jnp.einsum('bqd,bkd->bqk', v3, t,
                            preferred_element_type=jnp.float32)    # (TB, 1, ts)

        # Per-row length mask (src padding and batch-padding rows are masked).
        pos = s * ts + jax.lax.broadcasted_iota(jnp.int32, (1, 1, ts), 2)
        scores = jnp.where(pos < lens_ref[...], scores, NEG_INF)   # (TB, 1, ts)

        # Online softmax update.
        m_prev = m_sc[...]
        m_new = jnp.maximum(m_prev, scores.max(axis=-1, keepdims=True))
        alpha = jnp.exp(m_prev - m_new)
        p = jnp.exp(scores - m_new)                                # (TB, 1, ts)
        l_sc[...] = alpha * l_sc[...] + p.sum(axis=-1, keepdims=True)
        acc_sc[...] = alpha * acc_sc[...] + jnp.einsum(
            'bqk,bkd->bqd', p.astype(enc_ref.dtype), enc_ref[...],
            preferred_element_type=jnp.float32)                    # (TB, 1, Hp)
        m_sc[...] = m_new

    @pl.when(s == ns - 1)
    def _finalize():
        # Exact reciprocal: runs once per batch block, approx buys nothing here.
        ctx = acc_sc[...] / jnp.maximum(l_sc[...], 1e-30)
        # Zero-length rows (incl. batch padding) -> zero context (reference would NaN).
        out_ref[...] = jnp.where(lens_ref[...] > 0, ctx, 0.0).astype(out_ref.dtype)


def bahdanau_attention(query, encoder_outputs, src_lengths, params,
                       *, block_s=512, block_b=8):
    """query (B,H) f32, encoder_outputs (B,S,H) f32, src_lengths (B,) int -> context (B,H) f32."""
    B, H = query.shape
    S = encoder_outputs.shape[1]
    f32 = jnp.float32

    Hp = _round_up(H, 128)                          # lane-dense hidden dim
    TB = min(_round_up(B, 8), _round_up(block_b, 8))  # sublane-aligned batch block
    Bp = _round_up(B, TB)
    nb = Bp // TB

    # Large src tiles (512+ rows ~ 85%+ of HBM roofline), capped so the bf16 enc
    # block (double-buffered) + f32 tanh scratch + temps stay inside a v7x-safe
    # VMEM budget.  16-row granularity matches bf16 sublane packing.
    ts = _round_up(max(16, min(block_s, S)), 16)
    ts_cap = max(16, ((4 * 2**20) // (TB * Hp * 2)) // 16 * 16)
    ts = min(ts, ts_cap)
    Sp = _round_up(S, ts)
    ns = Sp // ts

    # ---- hoisted projections (one big XLA matmul instead of per-row M=1 MXU work)
    # tanh(Ws q + ws_b + Wh e + wh_b): both biases fold into the query-side term.
    wsq = (query.astype(f32) @ params["ws_w"].T.astype(f32)
           + params["ws_b"].astype(f32) + params["wh_b"].astype(f32))      # (B, H)
    wsq = jnp.pad(wsq, ((0, Bp - B), (0, Hp - H))).reshape(Bp, 1, Hp)

    # Encoder stream: pad to (Bp, Sp, Hp) and cast to bf16 (halves HBM traffic,
    # native MXU input dtype).  Padded rows/cols are masked or multiplied by 0.
    enc = jnp.pad(encoder_outputs.astype(f32),
                  ((0, Bp - B), (0, Sp - S), (0, Hp - H))).astype(jnp.bfloat16)

    # nn.Linear stores weight (out,in); present (in,out) to the kernel.
    wh_w = jnp.pad(params["wh_w"].T.astype(f32),
                   ((0, Hp - H), (0, Hp - H))).astype(jnp.bfloat16)         # (Hp, Hp)
    v_w = jnp.pad(params["v_w"].reshape(-1).astype(f32),
                  (0, Hp - H)).reshape(1, 1, Hp)                            # (1, 1, Hp)
    # v_b dropped entirely: softmax shift invariance makes it a no-op.

    lens = jnp.pad(src_lengths.reshape(B).astype(jnp.int32), (0, Bp - B))
    lens3 = lens.reshape(Bp, 1, 1)
    # Last src tile any row of each batch block still needs (for tile skipping).
    last_tile = jnp.max(
        jnp.clip((lens + ts - 1) // ts - 1, 0, ns - 1).reshape(nb, TB),
        axis=1).astype(jnp.int32)                                           # (nb,)

    # Explicit VMEM budget (v7x-safe: <= 48 MiB requested out of 64 MiB physical).
    enc_blk = TB * ts * Hp * 2
    est = (2 * enc_blk                       # double-buffered enc stream
           + TB * ts * Hp * 4                # tanh scratch
           + 2 * TB * ts * Hp * 4            # in-kernel f32 temporaries
           + 2 * Hp * Hp * 2                 # Wh (bf16), double-buffered
           + 4 * TB * Hp * 4 + 2 * Hp * 4 + 1024   # wsq/out blocks, v, lens
           + TB * (Hp + 2) * 4               # acc / m / l scratch
           + (2 << 20))                      # headroom
    vmem_limit = int(min(48 * 2**20, max(16 * 2**20, est)))

    grid_spec = pltpu.PrefetchScalarGridSpec(
        num_scalar_prefetch=1,
        grid=(nb, ns),
        in_specs=[
            pl.BlockSpec((TB, 1, 1), lambda bb, s, lt: (bb, 0, 0)),      # lengths
            pl.BlockSpec((TB, 1, Hp), lambda bb, s, lt: (bb, 0, 0)),     # Ws q + biases
            pl.BlockSpec((TB, ts, Hp),                                   # enc tile; clamp so
                         lambda bb, s, lt: (bb, jnp.minimum(s, lt[bb]), 0)),  # skipped tiles aren't re-DMA'd
            pl.BlockSpec((Hp, Hp), lambda bb, s, lt: (0, 0)),            # Wh^T (resident)
            # NOTE: could add pipeline_mode=pl.Buffered(1) on the constant operands
            # to halve their VMEM footprint at large Hp.
            pl.BlockSpec((1, 1, Hp), lambda bb, s, lt: (0, 0, 0)),       # v
        ],
        out_specs=pl.BlockSpec((TB, 1, Hp), lambda bb, s, lt: (bb, 0, 0)),
        scratch_shapes=[
            pltpu.VMEM((TB, ts, Hp), jnp.float32),   # tanh(Wh e + Ws q + b)
            pltpu.VMEM((TB, 1, 1), jnp.float32),     # m (running max)
            pltpu.VMEM((TB, 1, 1), jnp.float32),     # l (running denom)
            pltpu.VMEM((TB, 1, Hp), jnp.float32),    # acc (running context)
        ],
    )

    out = pl.pallas_call(
        bahdanau_attention_kernel,
        out_shape=jax.ShapeDtypeStruct((Bp, 1, Hp), jnp.float32),
        grid_spec=grid_spec,
        compiler_params=pltpu.CompilerParams(
            dimension_semantics=("parallel", "arbitrary"),
            vmem_limit_bytes=vmem_limit),
    )(last_tile, lens3, wsq, enc, wh_w, v_w)

    return out[:B, 0, :H]


def bahdanau_attention_ref(query, encoder_outputs, src_lengths, params):
    """Pure-JAX reference mirroring the PyTorch forward exactly."""
    S = encoder_outputs.shape[1]
    ws_q = query @ params["ws_w"].T + params["ws_b"]                    # (B, H)
    wh_e = encoder_outputs @ params["wh_w"].T + params["wh_b"]          # (B, S, H)
    t = jnp.tanh(ws_q[:, None, :] + wh_e)
    scores = (t @ params["v_w"].T)[..., 0] + params["v_b"][0]           # (B, S)
    mask = jnp.arange(S)[None, :] < src_lengths[:, None]
    scores = jnp.where(mask, scores, -jnp.inf)
    attn = jax.nn.softmax(scores, axis=1)
    return jnp.einsum("bs,bsh->bh", attn, encoder_outputs)


def init_params(key, hidden_size):
    """Deterministic synthetic init matching nn.Linear shapes (weight (out,in), bias (out,))."""
    ks = jax.random.split(key, 6)
    bound = 1.0 / jnp.sqrt(hidden_size)
    u = lambda k, shape: jax.random.uniform(k, shape, jnp.float32, -bound, bound)
    return {
        "ws_w": u(ks[0], (hidden_size, hidden_size)),
        "ws_b": u(ks[1], (hidden_size,)),
        "wh_w": u(ks[2], (hidden_size, hidden_size)),
        "wh_b": u(ks[3], (hidden_size,)),
        "v_w": u(ks[4], (1, hidden_size)),
        "v_b": u(ks[5], (1,)),
    }


if __name__ == "__main__":
    B, S, H = 2, 24, 32
    key = jax.random.PRNGKey(0)
    k_q, k_e, k_p = jax.random.split(key, 3)

    query = jax.random.normal(k_q, (B, H), jnp.float32)
    encoder_outputs = jax.random.normal(k_e, (B, S, H), jnp.float32)
    # Ragged lengths: row 0 uses every src tile; row 1's trailing tile is fully
    # masked (and skipped via the scalar-prefetched last-tile index).
    src_lengths = jnp.array([S, 10], dtype=jnp.int32)
    params = init_params(k_p, H)

    ref = bahdanau_attention_ref(query, encoder_outputs, src_lengths, params)

    # Default config (single src tile) and a small-tile config that exercises the
    # multi-tile online-softmax accumulation + tile skipping.
    for bs in (512, 8):
        out = bahdanau_attention(query, encoder_outputs, src_lengths, params,
                                 block_s=bs)
        out = jax.block_until_ready(out)
        assert out.shape == (B, H)
        # bf16 encoder / Wh stream -> ~1e-2 tolerance budget vs the f32 reference.
        assert jnp.allclose(out, ref, atol=2e-2, rtol=2e-2), f"mismatch (block_s={bs})"

    print("KERNEL_OK")
</pallas_src>

<mosaic_0001>
module attributes {stable_mosaic.version = 11 : i64} {
  func.func @bahdanau_attention_kernel(%arg0: i32, %arg1: i32, %arg2: memref<1xi32, #tpu.memory_space<smem>>, %arg3: memref<8x1x1xi32, #tpu.memory_space<vmem>>, %arg4: memref<8x1x128xf32, #tpu.memory_space<vmem>>, %arg5: memref<8x32x128xbf16, #tpu.memory_space<vmem>>, %arg6: memref<128x128xbf16, #tpu.memory_space<vmem>>, %arg7: memref<1x1x128xf32, #tpu.memory_space<vmem>>, %arg8: memref<8x1x128xf32, #tpu.memory_space<vmem>>, %arg9: memref<8x32x128xf32, #tpu.memory_space<vmem>>, %arg10: memref<8x1x1xf32, #tpu.memory_space<vmem>>, %arg11: memref<8x1x1xf32, #tpu.memory_space<vmem>>, %arg12: memref<8x1x128xf32, #tpu.memory_space<vmem>>) attributes {dimension_semantics = [#tpu.dimension_semantics<parallel>, #tpu.dimension_semantics<arbitrary>], iteration_bounds = array<i64: 1, 1>, scalar_prefetch = 1 : i64, scratch_operands = 4 : i64, tpu.core_type = #tpu.core_type<tc>, window_params = [{transform_indices = @transform_0, window_bounds = array<i64: 8, 1, 1>}, {transform_indices = @transform_1, window_bounds = array<i64: 8, 1, 128>}, {transform_indices = @transform_2, window_bounds = array<i64: 8, 32, 128>}, {pipeline_mode = #tpu.pipeline_mode<synchronous>, transform_indices = @transform_3, window_bounds = array<i64: 128, 128>}, {pipeline_mode = #tpu.pipeline_mode<synchronous>, transform_indices = @transform_4, window_bounds = array<i64: 1, 1, 128>}, {transform_indices = @transform_5, window_bounds = array<i64: 8, 1, 128>}]} {
    %c0_i32 = arith.constant 0 : i32
    %0 = arith.cmpi eq, %arg1, %c0_i32 : i32
    %1 = arith.extui %0 : i1 to i32
    %c0_i32_0 = arith.constant 0 : i32
    %2 = arith.cmpi ne, %1, %c0_i32_0 : i32
    scf.if %2 {
      %cst = arith.constant -1.000000e+30 : f32
      %11 = vector.broadcast %cst : f32 to vector<8x1x1xf32>
      %c0 = arith.constant 0 : index
      %c0_4 = arith.constant 0 : index
      %c0_5 = arith.constant 0 : index
      %12 = vector.load %arg10[%c0, %c0_4, %c0_5] : memref<8x1x1xf32, #tpu.memory_space<vmem>>, vector<8x1x1xf32>
      tpu.vector_store %arg10[%c0, %c0_4, %c0_5], %11 {strides = array<i32>} : memref<8x1x1xf32, #tpu.memory_space<vmem>>, vector<8x1x1xf32>,
      %cst_6 = arith.constant 0.000000e+00 : f32
      %13 = vector.broadcast %cst_6 : f32 to vector<8x1x1xf32>
      %c0_7 = arith.constant 0 : index
      %c0_8 = arith.constant 0 : index
      %c0_9 = arith.constant 0 : index
      %14 = vector.load %arg11[%c0_7, %c0_8, %c0_9] : memref<8x1x1xf32, #tpu.memory_space<vmem>>, vector<8x1x1xf32>
      tpu.vector_store %arg11[%c0_7, %c0_8, %c0_9], %13 {strides = array<i32>} : memref<8x1x1xf32, #tpu.memory_space<vmem>>, vector<8x1x1xf32>,
      %cst_10 = arith.constant 0.000000e+00 : f32
      %15 = vector.broadcast %cst_10 : f32 to vector<8x1x128xf32>
      %c0_11 = arith.constant 0 : index
      %c0_12 = arith.constant 0 : index
      %c0_13 = arith.constant 0 : index
      %16 = vector.load %arg12[%c0_11, %c0_12, %c0_13] : memref<8x1x128xf32, #tpu.memory_space<vmem>>, vector<8x1x128xf32>
      tpu.vector_store %arg12[%c0_11, %c0_12, %c0_13], %15 {strides = array<i32>} : memref<8x1x128xf32, #tpu.memory_space<vmem>>, vector<8x1x128xf32>,
    } else {
    }
    %3 = arith.index_cast %arg0 : i32 to index
    %4 = memref.load %arg2[%3] : memref<1xi32, #tpu.memory_space<smem>>
    %5 = arith.cmpi sle, %arg1, %4 : i32
    %6 = arith.extui %5 : i1 to i32
    %c0_i32_1 = arith.constant 0 : i32
    %7 = arith.cmpi ne, %6, %c0_i32_1 : i32
    scf.if %7 {
      %c0 = arith.constant 0 : index
      %c0_4 = arith.constant 0 : index
      %c0_5 = arith.constant 0 : index
      %11 = vector.load %arg5[%c0, %c0_4, %c0_5] : memref<8x32x128xbf16, #tpu.memory_space<vmem>>, vector<1x32x128xbf16>
      %12 = vector.shape_cast %11 : vector<1x32x128xbf16> to vector<32x128xbf16>
      %c0_6 = arith.constant 0 : index
      %c0_7 = arith.constant 0 : index
      %13 = vector.load %arg6[%c0_6, %c0_7] : memref<128x128xbf16, #tpu.memory_space<vmem>>, vector<128x128xbf16>
      %cst = arith.constant dense<0.000000e+00> : vector<32x128xf32>
      %14 = tpu.matmul %12, %13, %cst {dimension_numbers = #tpu.dot_dimension_numbers<[1], [0], [0], [1], [0, 0, 1, 1], [], []>} : vector<32x128xbf16>, vector<128x128xbf16>, vector<32x128xf32> -> vector<32x128xf32>
      %c0_8 = arith.constant 0 : index
      %c0_9 = arith.constant 0 : index
      %c0_10 = arith.constant 0 : index
      %15 = vector.load %arg4[%c0_8, %c0_9, %c0_10] : memref<8x1x128xf32, #tpu.memory_space<vmem>>, vector<1x1x128xf32>
      %16 = vector.shape_cast %15 : vector<1x1x128xf32> to vector<1x128xf32>
      %17 = vector.broadcast %16 : vector<1x128xf32> to vector<32x128xf32>
      %18 = arith.addf %14, %17 : vector<32x128xf32>
      %19 = math.tanh %18 : vector<32x128xf32>
      %c0_11 = arith.constant 0 : index
      %c0_12 = arith.constant 0 : index
      %c0_13 = arith.constant 0 : index
      %20 = vector.load %arg9[%c0_11, %c0_12, %c0_13] : memref<8x32x128xf32, #tpu.memory_space<vmem>>, vector<1x32x128xf32>
      %21 = vector.shape_cast %20 : vector<1x32x128xf32> to vector<32x128xf32>
      %22 = vector.shape_cast %19 : vector<32x128xf32> to vector<1x32x128xf32>
      tpu.vector_store %arg9[%c0_11, %c0_12, %c0_13], %22 {strides = array<i32>} : memref<8x32x128xf32, #tpu.memory_space<vmem>>, vector<1x32x128xf32>,
      %c1 = arith.constant 1 : index
      %c0_14 = arith.constant 0 : index
      %c0_15 = arith.constant 0 : index
      %23 = vector.load %arg5[%c1, %c0_14, %c0_15] : memref<8x32x128xbf16, #tpu.memory_space<vmem>>, vector<1x32x128xbf16>
      %24 = vector.shape_cast %23 : vector<1x32x128xbf16> to vector<32x128xbf16>
      %c0_16 = arith.constant 0 : index
      %c0_17 = arith.constant 0 : index
      %25 = vector.load %arg6[%c0_16, %c0_17] : memref<128x128xbf16, #tpu.memory_space<vmem>>, vector<128x128xbf16>
      %cst_18 = arith.constant dense<0.000000e+00> : vector<32x128xf32>
      %26 = tpu.matmul %24, %25, %cst_18 {dimension_numbers = #tpu.dot_dimension_numbers<[1], [0], [0], [1], [0, 0, 1, 1], [], []>} : vector<32x128xbf16>, vector<128x128xbf16>, vector<32x128xf32> -> vector<32x128xf32>
      %c1_19 = arith.constant 1 : index
      %c0_20 = arith.constant 0 : index
      %c0_21 = arith.constant 0 : index
      %27 = vector.load %arg4[%c1_19, %c0_20, %c0_21] : memref<8x1x128xf32, #tpu.memory_space<vmem>>, vector<1x1x128xf32>
      %28 = vector.shape_cast %27 : vector<1x1x128xf32> to vector<1x128xf32>
      %29 = vector.broadcast %28 : vector<1x128xf32> to vector<32x128xf32>
      %30 = arith.addf %26, %29 : vector<32x128xf32>
      %31 = math.tanh %30 : vector<32x128xf32>
      %c1_22 = arith.constant 1 : index
      %c0_23 = arith.constant 0 : index
      %c0_24 = arith.constant 0 : index
      %32 = vector.load %arg9[%c1_22, %c0_23, %c0_24] : memref<8x32x128xf32, #tpu.memory_space<vmem>>, vector<1x32x128xf32>
      %33 = vector.shape_cast %32 : vector<1x32x128xf32> to vector<32x128xf32>
      %34 = vector.shape_cast %31 : vector<32x128xf32> to vector<1x32x128xf32>
      tpu.vector_store %arg9[%c1_22, %c0_23, %c0_24], %34 {strides = array<i32>} : memref<8x32x128xf32, #tpu.memory_space<vmem>>, vector<1x32x128xf32>,
      %c2 = arith.constant 2 : index
      %c0_25 = arith.constant 0 : index
      %c0_26 = arith.constant 0 : index
      %35 = vector.load %arg5[%c2, %c0_25, %c0_26] : memref<8x32x128xbf16, #tpu.memory_space<vmem>>, vector<1x32x128xbf16>
      %36 = vector.shape_cast %35 : vector<1x32x128xbf16> to vector<32x128xbf16>
      %c0_27 = arith.constant 0 : index
      %c0_28 = arith.constant 0 : index
      %37 = vector.load %arg6[%c0_27, %c0_28] : memref<128x128xbf16, #tpu.memory_space<vmem>>, vector<128x128xbf16>
      %cst_29 = arith.constant dense<0.000000e+00> : vector<32x128xf32>
      %38 = tpu.matmul %36, %37, %cst_29 {dimension_numbers = #tpu.dot_dimension_numbers<[1], [0], [0], [1], [0, 0, 1, 1], [], []>} : vector<32x128xbf16>, vector<128x128xbf16>, vector<32x128xf32> -> vector<32x128xf32>
      %c2_30 = arith.constant 2 : index
      %c0_31 = arith.constant 0 : index
      %c0_32 = arith.constant 0 : index
      %39 = vector.load %arg4[%c2_30, %c0_31, %c0_32] : memref<8x1x128xf32, #tpu.memory_space<vmem>>, vector<1x1x128xf32>
      %40 = vector.shape_cast %39 : vector<1x1x128xf32> to vector<1x128xf32>
      %41 = vector.broadcast %40 : vector<1x128xf32> to vector<32x128xf32>
      %42 = arith.addf %38, %41 : vector<32x128xf32>
      %43 = math.tanh %42 : vector<32x128xf32>
      %c2_33 = arith.constant 2 : index
      %c0_34 = arith.constant 0 : index
      %c0_35 = arith.constant 0 : index
      %44 = vector.load %arg9[%c2_33, %c0_34, %c0_35] : memref<8x32x128xf32, #tpu.memory_space<vmem>>, vector<1x32x128xf32>
      %45 = vector.shape_cast %44 : vector<1x32x128xf32> to vector<32x128xf32>
      %46 = vector.shape_cast %43 : vector<32x128xf32> to vector<1x32x128xf32>
      tpu.vector_store %arg9[%c2_33, %c0_34, %c0_35], %46 {strides = array<i32>} : memref<8x32x128xf32, #tpu.memory_space<vmem>>, vector<1x32x128xf32>,
      %c3 = arith.constant 3 : index
      %c0_36 = arith.constant 0 : index
      %c0_37 = arith.constant 0 : index
      %47 = vector.load %arg5[%c3, %c0_36, %c0_37] : memref<8x32x128xbf16, #tpu.memory_space<vmem>>, vector<1x32x128xbf16>
      %48 = vector.shape_cast %47 : vector<1x32x128xbf16> to vector<32x128xbf16>
      %c0_38 = arith.constant 0 : index
      %c0_39 = arith.constant 0 : index
      %49 = vector.load %arg6[%c0_38, %c0_39] : memref<128x128xbf16, #tpu.memory_space<vmem>>, vector<128x128xbf16>
      %cst_40 = arith.constant dense<0.000000e+00> : vector<32x128xf32>
      %50 = tpu.matmul %48, %49, %cst_40 {dimension_numbers = #tpu.dot_dimension_numbers<[1], [0], [0], [1], [0, 0, 1, 1], [], []>} : vector<32x128xbf16>, vector<128x128xbf16>, vector<32x128xf32> -> vector<32x128xf32>
      %c3_41 = arith.constant 3 : index
      %c0_42 = arith.constant 0 : index
      %c0_43 = arith.constant 0 : index
      %51 = vector.load %arg4[%c3_41, %c0_42, %c0_43] : memref<8x1x128xf32, #tpu.memory_space<vmem>>, vector<1x1x128xf32>
      %52 = vector.shape_cast %51 : vector<1x1x128xf32> to vector<1x128xf32>
      %53 = vector.broadcast %52 : vector<1x128xf32> to vector<32x128xf32>
      %54 = arith.addf %50, %53 : vector<32x128xf32>
      %55 = math.tanh %54 : vector<32x128xf32>
      %c3_44 = arith.constant 3 : index
      %c0_45 = arith.constant 0 : index
      %c0_46 = arith.constant 0 : index
      %56 = vector.load %arg9[%c3_44, %c0_45, %c0_46] : memref<8x32x128xf32, #tpu.memory_space<vmem>>, vector<1x32x128xf32>
      %57 = vector.shape_cast %56 : vector<1x32x128xf32> to vector<32x128xf32>
      %58 = vector.shape_cast %55 : vector<32x128xf32> to vector<1x32x128xf32>
      tpu.vector_store %arg9[%c3_44, %c0_45, %c0_46], %58 {strides = array<i32>} : memref<8x32x128xf32, #tpu.memory_space<vmem>>, vector<1x32x128xf32>,
      %c4 = arith.constant 4 : index
      %c0_47 = arith.constant 0 : index
      %c0_48 = arith.constant 0 : index
      %59 = vector.load %arg5[%c4, %c0_47, %c0_48] : memref<8x32x128xbf16, #tpu.memory_space<vmem>>, vector<1x32x128xbf16>
      %60 = vector.shape_cast %59 : vector<1x32x128xbf16> to vector<32x128xbf16>
      %c0_49 = arith.constant 0 : index
      %c0_50 = arith.constant 0 : index
      %61 = vector.load %arg6[%c0_49, %c0_50] : memref<128x128xbf16, #tpu.memory_space<vmem>>, vector<128x128xbf16>
      %cst_51 = arith.constant dense<0.000000e+00> : vector<32x128xf32>
      %62 = tpu.matmul %60, %61, %cst_51 {dimension_numbers = #tpu.dot_dimension_numbers<[1], [0], [0], [1], [0, 0, 1, 1], [], []>} : vector<32x128xbf16>, vector<128x128xbf16>, vector<32x128xf32> -> vector<32x128xf32>
      %c4_52 = arith.constant 4 : index
      %c0_53 = arith.constant 0 : index
      %c0_54 = arith.constant 0 : index
      %63 = vector.load %arg4[%c4_52, %c0_53, %c0_54] : memref<8x1x128xf32, #tpu.memory_space<vmem>>, vector<1x1x128xf32>
      %64 = vector.shape_cast %63 : vector<1x1x128xf32> to vector<1x128xf32>
      %65 = vector.broadcast %64 : vector<1x128xf32> to vector<32x128xf32>
      %66 = arith.addf %62, %65 : vector<32x128xf32>
      %67 = math.tanh %66 : vector<32x128xf32>
      %c4_55 = arith.constant 4 : index
      %c0_56 = arith.constant 0 : index
      %c0_57 = arith.constant 0 : index
      %68 = vector.load %arg9[%c4_55, %c0_56, %c0_57] : memref<8x32x128xf32, #tpu.memory_space<vmem>>, vector<1x32x128xf32>
      %69 = vector.shape_cast %68 : vector<1x32x128xf32> to vector<32x128xf32>
      %70 = vector.shape_cast %67 : vector<32x128xf32> to vector<1x32x128xf32>
      tpu.vector_store %arg9[%c4_55, %c0_56, %c0_57], %70 {strides = array<i32>} : memref<8x32x128xf32, #tpu.memory_space<vmem>>, vector<1x32x128xf32>,
      %c5 = arith.constant 5 : index
      %c0_58 = arith.constant 0 : index
      %c0_59 = arith.constant 0 : index
      %71 = vector.load %arg5[%c5, %c0_58, %c0_59] : memref<8x32x128xbf16, #tpu.memory_space<vmem>>, vector<1x32x128xbf16>
      %72 = vector.shape_cast %71 : vector<1x32x128xbf16> to vector<32x128xbf16>
      %c0_60 = arith.constant 0 : index
      %c0_61 = arith.constant 0 : index
      %73 = vector.load %arg6[%c0_60, %c0_61] : memref<128x128xbf16, #tpu.memory_space<vmem>>, vector<128x128xbf16>
      %cst_62 = arith.constant dense<0.000000e+00> : vector<32x128xf32>
      %74 = tpu.matmul %72, %73, %cst_62 {dimension_numbers = #tpu.dot_dimension_numbers<[1], [0], [0], [1], [0, 0, 1, 1], [], []>} : vector<32x128xbf16>, vector<128x128xbf16>, vector<32x128xf32> -> vector<32x128xf32>
      %c5_63 = arith.constant 5 : index
      %c0_64 = arith.constant 0 : index
      %c0_65 = arith.constant 0 : index
      %75 = vector.load %arg4[%c5_63, %c0_64, %c0_65] : memref<8x1x128xf32, #tpu.memory_space<vmem>>, vector<1x1x128xf32>
      %76 = vector.shape_cast %75 : vector<1x1x128xf32> to vector<1x128xf32>
      %77 = vector.broadcast %76 : vector<1x128xf32> to vector<32x128xf32>
      %78 = arith.addf %74, %77 : vector<32x128xf32>
      %79 = math.tanh %78 : vector<32x128xf32>
      %c5_66 = arith.constant 5 : index
      %c0_67 = arith.constant 0 : index
      %c0_68 = arith.constant 0 : index
      %80 = vector.load %arg9[%c5_66, %c0_67, %c0_68] : memref<8x32x128xf32, #tpu.memory_space<vmem>>, vector<1x32x128xf32>
      %81 = vector.shape_cast %80 : vector<1x32x128xf32> to vector<32x128xf32>
      %82 = vector.shape_cast %79 : vector<32x128xf32> to vector<1x32x128xf32>
      tpu.vector_store %arg9[%c5_66, %c0_67, %c0_68], %82 {strides = array<i32>} : memref<8x32x128xf32, #tpu.memory_space<vmem>>, vector<1x32x128xf32>,
      %c6 = arith.constant 6 : index
      %c0_69 = arith.constant 0 : index
      %c0_70 = arith.constant 0 : index
      %83 = vector.load %arg5[%c6, %c0_69, %c0_70] : memref<8x32x128xbf16, #tpu.memory_space<vmem>>, vector<1x32x128xbf16>
      %84 = vector.shape_cast %83 : vector<1x32x128xbf16> to vector<32x128xbf16>
      %c0_71 = arith.constant 0 : index
      %c0_72 = arith.constant 0 : index
      %85 = vector.load %arg6[%c0_71, %c0_72] : memref<128x128xbf16, #tpu.memory_space<vmem>>, vector<128x128xbf16>
      %cst_73 = arith.constant dense<0.000000e+00> : vector<32x128xf32>
      %86 = tpu.matmul %84, %85, %cst_73 {dimension_numbers = #tpu.dot_dimension_numbers<[1], [0], [0], [1], [0, 0, 1, 1], [], []>} : vector<32x128xbf16>, vector<128x128xbf16>, vector<32x128xf32> -> vector<32x128xf32>
      %c6_74 = arith.constant 6 : index
      %c0_75 = arith.constant 0 : index
      %c0_76 = arith.constant 0 : index
      %87 = vector.load %arg4[%c6_74, %c0_75, %c0_76] : memref<8x1x128xf32, #tpu.memory_space<vmem>>, vector<1x1x128xf32>
      %88 = vector.shape_cast %87 : vector<1x1x128xf32> to vector<1x128xf32>
      %89 = vector.broadcast %88 : vector<1x128xf32> to vector<32x128xf32>
      %90 = arith.addf %86, %89 : vector<32x128xf32>
      %91 = math.tanh %90 : vector<32x128xf32>
      %c6_77 = arith.constant 6 : index
      %c0_78 = arith.constant 0 : index
      %c0_79 = arith.constant 0 : index
      %92 = vector.load %arg9[%c6_77, %c0_78, %c0_79] : memref<8x32x128xf32, #tpu.memory_space<vmem>>, vector<1x32x128xf32>
      %93 = vector.shape_cast %92 : vector<1x32x128xf32> to vector<32x128xf32>
      %94 = vector.shape_cast %91 : vector<32x128xf32> to vector<1x32x128xf32>
      tpu.vector_store %arg9[%c6_77, %c0_78, %c0_79], %94 {strides = array<i32>} : memref<8x32x128xf32, #tpu.memory_space<vmem>>, vector<1x32x128xf32>,
      %c7 = arith.constant 7 : index
      %c0_80 = arith.constant 0 : index
      %c0_81 = arith.constant 0 : index
      %95 = vector.load %arg5[%c7, %c0_80, %c0_81] : memref<8x32x128xbf16, #tpu.memory_space<vmem>>, vector<1x32x128xbf16>
      %96 = vector.shape_cast %95 : vector<1x32x128xbf16> to vector<32x128xbf16>
      %c0_82 = arith.constant 0 : index
      %c0_83 = arith.constant 0 : index
      %97 = vector.load %arg6[%c0_82, %c0_83] : memref<128x128xbf16, #tpu.memory_space<vmem>>, vector<128x128xbf16>
      %cst_84 = arith.constant dense<0.000000e+00> : vector<32x128xf32>
      %98 = tpu.matmul %96, %97, %cst_84 {dimension_numbers = #tpu.dot_dimension_numbers<[1], [0], [0], [1], [0, 0, 1, 1], [], []>} : vector<32x128xbf16>, vector<128x128xbf16>, vector<32x128xf32> -> vector<32x128xf32>
      %c7_85 = arith.constant 7 : index
      %c0_86 = arith.constant 0 : index
      %c0_87 = arith.constant 0 : index
      %99 = vector.load %arg4[%c7_85, %c0_86, %c0_87] : memref<8x1x128xf32, #tpu.memory_space<vmem>>, vector<1x1x128xf32>
      %100 = vector.shape_cast %99 : vector<1x1x128xf32> to vector<1x128xf32>
      %101 = vector.broadcast %100 : vector<1x128xf32> to vector<32x128xf32>
      %102 = arith.addf %98, %101 : vector<32x128xf32>
      %103 = math.tanh %102 : vector<32x128xf32>
      %c7_88 = arith.constant 7 : index
      %c0_89 = arith.constant 0 : index
      %c0_90 = arith.constant 0 : index
      %104 = vector.load %arg9[%c7_88, %c0_89, %c0_90] : memref<8x32x128xf32, #tpu.memory_space<vmem>>, vector<1x32x128xf32>
      %105 = vector.shape_cast %104 : vector<1x32x128xf32> to vector<32x128xf32>
      %106 = vector.shape_cast %103 : vector<32x128xf32> to vector<1x32x128xf32>
      tpu.vector_store %arg9[%c7_88, %c0_89, %c0_90], %106 {strides = array<i32>} : memref<8x32x128xf32, #tpu.memory_space<vmem>>, vector<1x32x128xf32>,
      %c0_91 = arith.constant 0 : index
      %c0_92 = arith.constant 0 : index
      %c0_93 = arith.constant 0 : index
      %107 = vector.load %arg9[%c0_91, %c0_92, %c0_93] : memref<8x32x128xf32, #tpu.memory_space<vmem>>, vector<8x32x128xf32>
      %c0_94 = arith.constant 0 : index
      %c0_95 = arith.constant 0 : index
      %c0_96 = arith.constant 0 : index
      %108 = vector.load %arg7[%c0_94, %c0_95, %c0_96] : memref<1x1x128xf32, #tpu.memory_space<vmem>>, vector<1x1x128xf32>
      %109 = vector.shape_cast %108 : vector<1x1x128xf32> to vector<1x1x128xf32>
      %110 = vector.broadcast %109 : vector<1x1x128xf32> to vector<8x1x128xf32>
      "tpu.trace_start"() <{level = 10 : i32, message = "bqd,bkd->bqk"}> : () -> ()
      %cst_97 = arith.constant dense<0.000000e+00> : vector<8x1x32xf32>
      %111 = tpu.matmul %110, %107, %cst_97 {dimension_numbers = #tpu.dot_dimension_numbers<[2], [2], [1], [1], [0, 0, 0, 1, 1, 1], [0], [0]>} : vector<8x1x128xf32>, vector<8x32x128xf32>, vector<8x1x32xf32> -> vector<8x1x32xf32>
      "tpu.trace_stop"() : () -> ()
      %c32_i32 = arith.constant 32 : i32
      %112 = arith.muli %arg1, %c32_i32 : i32
      %113 = tpu.iota {dimensions = array<i32: 2>} : vector<1x1x32xi32>
      %114 = vector.broadcast %112 : i32 to vector<1x1x32xi32>
      %115 = arith.addi %114, %113 : vector<1x1x32xi32>
      %c0_98 = arith.constant 0 : index
      %c0_99 = arith.constant 0 : index
      %c0_100 = arith.constant 0 : index
      %116 = vector.load %arg3[%c0_98, %c0_99, %c0_100] : memref<8x1x1xi32, #tpu.memory_space<vmem>>, vector<8x1x1xi32>
      %117 = vector.broadcast %115 : vector<1x1x32xi32> to vector<8x1x32xi32>
      %118 = vector.broadcast %116 : vector<8x1x1xi32> to vector<8x1x32xi32>
      %119 = arith.cmpi slt, %117, %118 : vector<8x1x32xi32>
      %cst_101 = arith.constant -1.000000e+30 : f32
      %120 = vector.broadcast %cst_101 : f32 to vector<8x1x32xf32>
      %121 = arith.select %119, %111, %120 : vector<8x1x32xi1>, vector<8x1x32xf32>
      %c0_102 = arith.constant 0 : index
      %c0_103 = arith.constant 0 : index
      %c0_104 = arith.constant 0 : index
      %122 = vector.load %arg10[%c0_102, %c0_103, %c0_104] : memref<8x1x1xf32, #tpu.memory_space<vmem>>, vector<8x1x1xf32>
      %cst_105 = arith.constant dense<0xFF800000> : vector<8x1xf32>
      %123 = vector.multi_reduction <maximumf>, %121, %cst_105 [2] : vector<8x1x32xf32> to vector<8x1xf32>
      %124 = vector.shape_cast %123 : vector<8x1xf32> to vector<8x1x1xf32>
      %125 = arith.maximumf %122, %124 : vector<8x1x1xf32>
      %126 = arith.subf %122, %125 : vector<8x1x1xf32>
      %127 = math.exp %126 : vector<8x1x1xf32>
      %128 = vector.broadcast %125 : vector<8x1x1xf32> to vector<8x1x32xf32>
      %129 = arith.subf %121, %128 : vector<8x1x32xf32>
      %130 = math.exp %129 : vector<8x1x32xf32>
      %c0_106 = arith.constant 0 : index
      %c0_107 = arith.constant 0 : index
      %c0_108 = arith.constant 0 : index
      %131 = vector.load %arg11[%c0_106, %c0_107, %c0_108] : memref<8x1x1xf32, #tpu.memory_space<vmem>>, vector<8x1x1xf32>
      %132 = arith.mulf %127, %131 : vector<8x1x1xf32>
      %cst_109 = arith.constant dense<0.000000e+00> : vector<8x1xf32>
      %133 = vector.multi_reduction <add>, %130, %cst_109 [2] : vector<8x1x32xf32> to vector<8x1xf32>
      %134 = vector.shape_cast %133 : vector<8x1xf32> to vector<8x1x1xf32>
      %135 = arith.addf %132, %134 : vector<8x1x1xf32>
      %c0_110 = arith.constant 0 : index
      %c0_111 = arith.constant 0 : index
      %c0_112 = arith.constant 0 : index
      %136 = vector.load %arg11[%c0_110, %c0_111, %c0_112] : memref<8x1x1xf32, #tpu.memory_space<vmem>>, vector<8x1x1xf32>
      tpu.vector_store %arg11[%c0_110, %c0_111, %c0_112], %135 {strides = array<i32>} : memref<8x1x1xf32, #tpu.memory_space<vmem>>, vector<8x1x1xf32>,
      %c0_113 = arith.constant 0 : index
      %c0_114 = arith.constant 0 : index
      %c0_115 = arith.constant 0 : index
      %137 = vector.load %arg12[%c0_113, %c0_114, %c0_115] : memref<8x1x128xf32, #tpu.memory_space<vmem>>, vector<8x1x128xf32>
      %138 = vector.broadcast %127 : vector<8x1x1xf32> to vector<8x1x128xf32>
      %139 = arith.mulf %138, %137 : vector<8x1x128xf32>
      %140 = arith.truncf %130 : vector<8x1x32xf32> to vector<8x1x32xbf16>
      %c0_116 = arith.constant 0 : index
      %c0_117 = arith.constant 0 : index
      %c0_118 = arith.constant 0 : index
      %141 = vector.load %arg5[%c0_116, %c0_117, %c0_118] : memref<8x32x128xbf16, #tpu.memory_space<vmem>>, vector<8x32x128xbf16>
      "tpu.trace_start"() <{level = 10 : i32, message = "bqk,bkd->bqd"}> : () -> ()
      %cst_119 = arith.constant dense<0.000000e+00> : vector<8x1x128xf32>
      %142 = tpu.matmul %140, %141, %cst_119 {dimension_numbers = #tpu.dot_dimension_numbers<[2], [1], [1], [2], [0, 0, 0, 1, 1, 2], [0], [0]>} : vector<8x1x32xbf16>, vector<8x32x128xbf16>, vector<8x1x128xf32> -> vector<8x1x128xf32>
      "tpu.trace_stop"() : () -> ()
      %143 = arith.addf %139, %142 : vector<8x1x128xf32>
      %c0_120 = arith.constant 0 : index
      %c0_121 = arith.constant 0 : index
      %c0_122 = arith.constant 0 : index
      %144 = vector.load %arg12[%c0_120, %c0_121, %c0_122] : memref<8x1x128xf32, #tpu.memory_space<vmem>>, vector<8x1x128xf32>
      tpu.vector_store %arg12[%c0_120, %c0_121, %c0_122], %143 {strides = array<i32>} : memref<8x1x128xf32, #tpu.memory_space<vmem>>, vector<8x1x128xf32>,
      %c0_123 = arith.constant 0 : index
      %c0_124 = arith.constant 0 : index
      %c0_125 = arith.constant 0 : index
      %145 = vector.load %arg10[%c0_123, %c0_124, %c0_125] : memref<8x1x1xf32, #tpu.memory_space<vmem>>, vector<8x1x1xf32>
      tpu.vector_store %arg10[%c0_123, %c0_124, %c0_125], %125 {strides = array<i32>} : memref<8x1x1xf32, #tpu.memory_space<vmem>>, vector<8x1x1xf32>,
    } else {
    }
    %c0_i32_2 = arith.constant 0 : i32
    %8 = arith.cmpi eq, %arg1, %c0_i32_2 : i32
    %9 = arith.extui %8 : i1 to i32
    %c0_i32_3 = arith.constant 0 : i32
    %10 = arith.cmpi ne, %9, %c0_i32_3 : i32
    scf.if %10 {
      %c0 = arith.constant 0 : index
      %c0_4 = arith.constant 0 : index
      %c0_5 = arith.constant 0 : index
      %11 = vector.load %arg12[%c0, %c0_4, %c0_5] : memref<8x1x128xf32, #tpu.memory_space<vmem>>, vector<8x1x128xf32>
      %c0_6 = arith.constant 0 : index
      %c0_7 = arith.constant 0 : index
      %c0_8 = arith.constant 0 : index
      %12 = vector.load %arg11[%c0_6, %c0_7, %c0_8] : memref<8x1x1xf32, #tpu.memory_space<vmem>>, vector<8x1x1xf32>
      %cst = arith.constant 1.000000e-30 : f32
      %13 = vector.broadcast %cst : f32 to vector<8x1x1xf32>
      %14 = arith.maximumf %12, %13 : vector<8x1x1xf32>
      %15 = vector.broadcast %14 : vector<8x1x1xf32> to vector<8x1x128xf32>
      %16 = arith.divf %11, %15 : vector<8x1x128xf32>
      %c0_9 = arith.constant 0 : index
      %c0_10 = arith.constant 0 : index
      %c0_11 = arith.constant 0 : index
      %17 = vector.load %arg3[%c0_9, %c0_10, %c0_11] : memref<8x1x1xi32, #tpu.memory_space<vmem>>, vector<8x1x1xi32>
      %c0_i32_12 = arith.constant 0 : i32
      %18 = vector.broadcast %c0_i32_12 : i32 to vector<8x1x1xi32>
      %19 = arith.cmpi sgt, %17, %18 : vector<8x1x1xi32>
      %cst_13 = arith.constant 0.000000e+00 : f32
      %20 = vector.shape_cast %19 : vector<8x1x1xi1> to vector<8x1x1xi1>
      %21 = vector.broadcast %20 : vector<8x1x1xi1> to vector<8x1x128xi1>
      %22 = vector.broadcast %cst_13 : f32 to vector<8x1x128xf32>
      %23 = arith.select %21, %16, %22 : vector<8x1x128xi1>, vector<8x1x128xf32>
      %c0_14 = arith.constant 0 : index
      %c0_15 = arith.constant 0 : index
      %c0_16 = arith.constant 0 : index
      %24 = vector.load %arg8[%c0_14, %c0_15, %c0_16] : memref<8x1x128xf32, #tpu.memory_space<vmem>>, vector<8x1x128xf32>
      tpu.vector_store %arg8[%c0_14, %c0_15, %c0_16], %23 {strides = array<i32>} : memref<8x1x128xf32, #tpu.memory_space<vmem>>, vector<8x1x128xf32>,
    } else {
    }
    return
  }
  func.func @transform_0(%arg0: i32, %arg1: i32, %arg2: memref<1xi32, #tpu.memory_space<smem>>) -> (i32, i32, i32) {
    %c0_i32 = arith.constant 0 : i32
    %c0_i32_0 = arith.constant 0 : i32
    %c0_i32_1 = arith.constant 0 : i32
    return %arg0, %c0_i32, %c0_i32_0 : i32, i32, i32
  }
  func.func @transform_1(%arg0: i32, %arg1: i32, %arg2: memref<1xi32, #tpu.memory_space<smem>>) -> (i32, i32, i32) {
    %c0_i32 = arith.constant 0 : i32
    %c0_i32_0 = arith.constant 0 : i32
    %c0_i32_1 = arith.constant 0 : i32
    return %arg0, %c0_i32, %c0_i32_0 : i32, i32, i32
  }
  func.func @transform_2(%arg0: i32, %arg1: i32, %arg2: memref<1xi32, #tpu.memory_space<smem>>) -> (i32, i32, i32) {
    %0 = arith.index_cast %arg0 : i32 to index
    %1 = memref.load %arg2[%0] : memref<1xi32, #tpu.memory_space<smem>>
    %2 = arith.minsi %arg1, %1 : i32
    %c0_i32 = arith.constant 0 : i32
    %c0_i32_0 = arith.constant 0 : i32
    return %arg0, %2, %c0_i32 : i32, i32, i32
  }
  func.func @transform_3(%arg0: i32, %arg1: i32, %arg2: memref<1xi32, #tpu.memory_space<smem>>) -> (i32, i32) {
    %c0_i32 = arith.constant 0 : i32
    %c0_i32_0 = arith.constant 0 : i32
    %c0_i32_1 = arith.constant 0 : i32
    return %c0_i32, %c0_i32_0 : i32, i32
  }
  func.func @transform_4(%arg0: i32, %arg1: i32, %arg2: memref<1xi32, #tpu.memory_space<smem>>) -> (i32, i32, i32) {
    %c0_i32 = arith.constant 0 : i32
    %c0_i32_0 = arith.constant 0 : i32
    %c0_i32_1 = arith.constant 0 : i32
    %c0_i32_2 = arith.constant 0 : i32
    return %c0_i32, %c0_i32_0, %c0_i32_1 : i32, i32, i32
  }
  func.func @transform_5(%arg0: i32, %arg1: i32, %arg2: memref<1xi32, #tpu.memory_space<smem>>) -> (i32, i32, i32) {
    %c0_i32 = arith.constant 0 : i32
    %c0_i32_0 = arith.constant 0 : i32
    %c0_i32_1 = arith.constant 0 : i32
    return %arg0, %c0_i32, %c0_i32_0 : i32, i32, i32
  }
}

</mosaic_0001>

<llo_original>
// kernel: tpu_custom_call.1
$region0: #{tpu_custom_call.1}
  #allocation0 [shape = 'u32[]', space=smem, size = 0x4, offset = 0x4, fixed_abs, tag = 'smem constant byte address 0x4 - core index']
  #allocation1 [shape = 'u32[144,128]{1,0:T(1,128)}', space=vmem, size = 0x12000, scoped, tag = 'internal scratch']
  #allocation2 [shape = 'f32[8,32,128]{2,1,0:T(8,128)}', space=vmem, size = 0x20000, scoped, tag = 'scratch operand']
  #allocation3 [shape = 'f32[8,1,1]{2,1,0:T(1,128)}', space=vmem, size = 0x1000, scoped, tag = 'scratch operand']
  #allocation4 [shape = 'f32[8,1,1]{2,1,0:T(1,128)}', space=vmem, size = 0x1000, scoped, tag = 'scratch operand']
  #allocation5 [shape = 'f32[8,1,128]{2,1,0:T(1,128)}', space=vmem, size = 0x1000, scoped, tag = 'scratch operand']
  #allocation6 [shape = 's32[1]{0}', space=sflag, size = 0x4, scoped, tag = 'scoped memory for tpu_custom_call.1']
  #allocation7 [shape = 's32[1]{0:T(128)S(6)}', space=smem, size = 0x200, scoped, tag = 'prefetched SMEM operand 0']
  %s0 = inlined_call_operand.<no memory space> [shape: s32[1], index: 0, kind: input, shape index: {}]
  %s1 = inlined_call_operand.vmem [shape: s32[8,1,1], index: 1, kind: input, shape index: {}]
  %s2 = inlined_call_operand.vmem [shape: f32[8,1,128], index: 2, kind: input, shape index: {}]
  %s3 = inlined_call_operand.hbm [shape: bf16[8,32,128], index: 3, kind: input, shape index: {}]
  %s4 = inlined_call_operand.hbm [shape: bf16[128,128], index: 4, kind: input, shape index: {}]
  %s5 = inlined_call_operand.vmem [shape: f32[1,1,128], index: 5, kind: input, shape index: {}]
  %s6 = inlined_call_operand.hbm [shape: f32[8,1,128], index: 6, kind: output, shape index: {}]
  %s7 = sld [smem:[#allocation0]]
  $region50: #{tpu_custom_call.1} parent=0
    _
  %s9 = ssub.s32 1, %s7
  %s10 = scalar_select 0, %s9, %s7
  %11 = sst [smem:[#allocation7]] %s0
  $region1: #{tpu_custom_call.1} parent=0
    #allocation8 [shape = 'u8[65536]{0}', space=vmem, size = 0x10000, scoped, tag = 'input window, operand 3, single buffered']
    #allocation9 [shape = 's32[1]{0}', space=sflag, size = 0x4, scoped, tag = 'scoped memory for tpu_custom_call.1']
    #allocation10 [shape = 's32[1]{0}', space=sflag, size = 0x4, scoped, tag = 'scoped memory for tpu_custom_call.1']
    #allocation11 [shape = 'u8[32768]{0}', space=vmem, size = 0x8000, scoped, tag = 'input window, operand 4, single buffered']
    #allocation12 [shape = 's32[1]{0}', space=sflag, size = 0x4, scoped, tag = 'scoped memory for tpu_custom_call.1']
    #allocation13 [shape = 'u8[4096]{0}', space=vmem, size = 0x1000, scoped, tag = 'output window, operand 0, single buffered']
    %12 = vsyncpa [#allocation9], 0
    %13 = vsyncpa [#allocation12], 0
    %14 = vsyncpa [#allocation10], 0
    // Predicated region
    $region2: #{tpu_custom_call.1} parent=1 // pred_check
      _
    $region3: #{tpu_custom_call.1} parent=1 // pred_check_branch
      %16 = sbr.rel (0) target = $region5
    $region4: #{tpu_custom_call.1} parent=1 // pred_region
      _
    $region5: #{tpu_custom_call.1} parent=1 // pred_fallthru
      _
    // Predicated region
    $region6: #{tpu_custom_call.1} parent=1 // pred_check
      _
    $region7: #{tpu_custom_call.1} parent=1 // pred_check_branch
      %18 = sbr.rel (0) target = $region9
    $region8: #{tpu_custom_call.1} parent=1 // pred_region
      _
    $region9: #{tpu_custom_call.1} parent=1 // pred_fallthru
      _
    // Predicated region
    $region10: #{tpu_custom_call.1} parent=1 // pred_check
      _
    $region11: #{tpu_custom_call.1} parent=1 // pred_check_branch
      %20 = sbr.rel (0) target = $region13
    $region12: #{tpu_custom_call.1} parent=1 // pred_region
      %s21 = sld [smem:[#allocation7]]
      %p22 = scmp.lt.s32.totalorder 0, %s21
      %s23 = scalar_select %p22, 0, %s21
      %s24 = smul.u32 4, %s23
      %s26 = ssub.s32 2048, 2048
      %27 = vsyncadd [#allocation9], %s26
      %s28 = smul.addr %s24, 64
      %s29 = scalar_lea.hbm %s3, %s28
      %s30 = sshll.u32 [#allocation8], 4
      %s31 = int_to_ptr.vmem [resolvable:$true] %s30
      %36 = dma.hbm_to_vmem [thread:$0]  %s29, 2048, %s31, [#allocation9], 64, 64, 4
    $region13: #{tpu_custom_call.1} parent=1 // pred_fallthru
      _
    // Predicated region
    $region14: #{tpu_custom_call.1} parent=1 // pred_check
      _
    $region15: #{tpu_custom_call.1} parent=1 // pred_check_branch
      %38 = sbr.rel (0) target = $region17
    $region16: #{tpu_custom_call.1} parent=1 // pred_region
      %s40 = ssub.s32 1024, 1024
      %41 = vsyncadd [#allocation12], %s40
      %s42 = sshll.u32 [#allocation11], 4
      %s43 = int_to_ptr.vmem [resolvable:$true] %s42
      %48 = dma.hbm_to_vmem [thread:$0]  %s4, 1024, %s43, [#allocation12], 64, 64, 4
    $region17: #{tpu_custom_call.1} parent=1 // pred_fallthru
      _
    // Predicated region
    $region18: #{tpu_custom_call.1} parent=1 // pred_check
      _
    $region19: #{tpu_custom_call.1} parent=1 // pred_check_branch
      %50 = sbr.rel (0) target = $region21
    $region20: #{tpu_custom_call.1} parent=1 // pred_region
      _
    $region21: #{tpu_custom_call.1} parent=1 // pred_fallthru
      _
    // Predicated region
    $region22: #{tpu_custom_call.1} parent=1 // pred_check
      _
    $region23: #{tpu_custom_call.1} parent=1 // pred_check_branch
      %52 = sbr.rel (0) target = $region25
    $region24: #{tpu_custom_call.1} parent=1 // pred_region
      %53 = dma.done [#allocation9], 2048
    $region25: #{tpu_custom_call.1} parent=1 // pred_fallthru
      _
    // Predicated region
    $region26: #{tpu_custom_call.1} parent=1 // pred_check
      _
    $region27: #{tpu_custom_call.1} parent=1 // pred_check_branch
      %55 = sbr.rel (0) target = $region29
    $region28: #{tpu_custom_call.1} parent=1 // pred_region
      %56 = dma.done [#allocation12], 1024
    $region29: #{tpu_custom_call.1} parent=1 // pred_fallthru
      _
    %s57 = sld [smem:[#allocation7]]
    %p58 = scmp.lt.s32.totalorder 0, %s57
    %s59 = scalar_select %p58, 0, %s57
    %s60 = smul.u32 4, %s59
    %p62 = scmp.eq.s32.totalorder 0, 0
    // Predicated region
    $region30: #{tpu_custom_call.1} parent=1 // pred_check
      %p63 = pneg %p62
    $region31: #{tpu_custom_call.1} parent=1 // pred_check_branch
      %65 = sbr.rel (%p63) target = $region33
    $region32: #{tpu_custom_call.1} parent=1 // pred_region
      %vm66 = vcmask 0
      %67 = vst.msk [vmem:[#allocation3] sm:$0x1] %vm66, -1e+30
      %68 = vst.msk [vmem:[#allocation3 + $0x1] sm:$0x1] %vm66, -1e+30
      %69 = vst.msk [vmem:[#allocation3 + $0x2] sm:$0x1] %vm66, -1e+30
      %70 = vst.msk [vmem:[#allocation3 + $0x3] sm:$0x1] %vm66, -1e+30
      %71 = vst.msk [vmem:[#allocation3 + $0x4] sm:$0x1] %vm66, -1e+30
      %72 = vst.msk [vmem:[#allocation3 + $0x5] sm:$0x1] %vm66, -1e+30
      %73 = vst.msk [vmem:[#allocation3 + $0x6] sm:$0x1] %vm66, -1e+30
      %74 = vst.msk [vmem:[#allocation3 + $0x7] sm:$0x1] %vm66, -1e+30
      %75 = vst.msk [vmem:[#allocation4] sm:$0x1] %vm66, 0.0
      %76 = vst.msk [vmem:[#allocation4 + $0x1] sm:$0x1] %vm66, 0.0
      %77 = vst.msk [vmem:[#allocation4 + $0x2] sm:$0x1] %vm66, 0.0
      %78 = vst.msk [vmem:[#allocation4 + $0x3] sm:$0x1] %vm66, 0.0
      %79 = vst.msk [vmem:[#allocation4 + $0x4] sm:$0x1] %vm66, 0.0
      %80 = vst.msk [vmem:[#allocation4 + $0x5] sm:$0x1] %vm66, 0.0
      %81 = vst.msk [vmem:[#allocation4 + $0x6] sm:$0x1] %vm66, 0.0
      %82 = vst.msk [vmem:[#allocation4 + $0x7] sm:$0x1] %vm66, 0.0
      %83 = vst [vmem:[#allocation5] sm:$0x1] 0.0
      %84 = vst [vmem:[#allocation5 + $0x1] sm:$0x1] 0.0
      %85 = vst [vmem:[#allocation5 + $0x2] sm:$0x1] 0.0
      %86 = vst [vmem:[#allocation5 + $0x3] sm:$0x1] 0.0
      %87 = vst [vmem:[#allocation5 + $0x4] sm:$0x1] 0.0
      %88 = vst [vmem:[#allocation5 + $0x5] sm:$0x1] 0.0
      %89 = vst [vmem:[#allocation5 + $0x6] sm:$0x1] 0.0
      %90 = vst [vmem:[#allocation5 + $0x7] sm:$0x1] 0.0
    $region33: #{tpu_custom_call.1} parent=1 // pred_fallthru
      _
    %s91 = sld [smem:[#allocation7]]
    %p92 = scmp.le.s32.totalorder 0, %s91
    // Predicated region
    $region34: #{tpu_custom_call.1} parent=1 // pred_check
      %p93 = pneg %p92
    $region35: #{tpu_custom_call.1} parent=1 // pred_check_branch
      %95 = sbr.rel (%p93) target = $region37
    $region36: #{tpu_custom_call.1} parent=1 // pred_region
      %v96 = vld [vmem:[#allocation8] sm:$0xf]
      %v97 = vld [vmem:[#allocation8 + $0x4] sm:$0xf]
      %v98 = vld [vmem:[#allocation8 + $0x8] sm:$0xf]
      %v99 = vld [vmem:[#allocation8 + $0xc] sm:$0xf]
      %v100 = vld [vmem:[#allocation11] sm:$0xf]
      %v101 = vld [vmem:[#allocation11 + $0x4] sm:$0xf]
      %v102 = vld [vmem:[#allocation11 + $0x8] sm:$0xf]
      %v103 = vld [vmem:[#allocation11 + $0xc] sm:$0xf]
      %v104 = vld [vmem:[#allocation11 + $0x10] sm:$0xf]
      %v105 = vld [vmem:[#allocation11 + $0x14] sm:$0xf]
      %v106 = vld [vmem:[#allocation11 + $0x18] sm:$0xf]
      %v107 = vld [vmem:[#allocation11 + $0x1c] sm:$0xf]
      %v108 = vld [vmem:[#allocation11 + $0x20] sm:$0xf]
      %v109 = vld [vmem:[#allocation11 + $0x24] sm:$0xf]
      %v110 = vld [vmem:[#allocation11 + $0x28] sm:$0xf]
      %v111 = vld [vmem:[#allocation11 + $0x2c] sm:$0xf]
      %v112 = vld [vmem:[#allocation11 + $0x30] sm:$0xf]
      %v113 = vld [vmem:[#allocation11 + $0x34] sm:$0xf]
      %v114 = vld [vmem:[#allocation11 + $0x38] sm:$0xf]
      %v115 = vld [vmem:[#allocation11 + $0x3c] sm:$0xf]
      %v116 = vld [vmem:[%s2] sm:$0x1]
      %v118 = vlaneseq
      %v119 = vshrl.u32 %v118, 7
      %v120 = vsub.s32 0, %v119
      %v121 = vrot.slane %v116, %v120
      %v127 = vunpack.c.l.b16 %v96
      %v128 = vunpack.c.l.b16 %v97
      %v129 = vunpack.c.l.b16 %v98
      %v130 = vunpack.c.l.b16 %v99
      %v131 = vpack.c.b16 %v128, %v127
      %v132 = vpack.c.b16 %v130, %v129
      %v151 = vunpack.c.l.b16 %v100
      %v152 = vunpack.c.l.b16 %v101
      %v153 = vunpack.c.l.b16 %v102
      %v154 = vunpack.c.l.b16 %v103
      %v155 = vunpack.c.l.b16 %v104
      %v156 = vunpack.c.l.b16 %v105
      %v157 = vunpack.c.l.b16 %v106
      %v158 = vunpack.c.l.b16 %v107
      %v159 = vunpack.c.l.b16 %v108
      %v160 = vunpack.c.l.b16 %v109
      %v161 = vunpack.c.l.b16 %v110
      %v162 = vunpack.c.l.b16 %v111
      %v163 = vunpack.c.l.b16 %v112
      %v164 = vunpack.c.l.b16 %v113
      %v165 = vunpack.c.l.b16 %v114
      %v166 = vunpack.c.l.b16 %v115
      %v167 = vpack.c.b16 %v152, %v151
      %v168 = vpack.c.b16 %v154, %v153
      %v169 = vpack.c.b16 %v156, %v155
      %v170 = vpack.c.b16 %v158, %v157
      %v171 = vpack.c.b16 %v160, %v159
      %v172 = vpack.c.b16 %v162, %v161
      %v173 = vpack.c.b16 %v164, %v163
      %v174 = vpack.c.b16 %v166, %v165
      %183 = vmatprep.subr.bf16.mxu0 0
      %184 = vmatpush1.bf16.msra.mxu0 %v167
      %185 = vmatprep.subr.bf16.mxu0 0
      %186 = vmatpush1.bf16.msra.mxu0 %v168
      %187 = vmatprep.subr.bf16.mxu0 0
      %188 = vmatpush1.bf16.msra.mxu0 %v169
      %189 = vmatprep.subr.bf16.mxu0 0
      %190 = vmatpush1.bf16.msra.mxu0 %v170
      %191 = vmatprep.subr.bf16.mxu0 0
      %192 = vmatpush1.bf16.msra.mxu0 %v171
      %193 = vmatprep.subr.bf16.mxu0 0
      %194 = vmatpush1.bf16.msra.mxu0 %v172
      %195 = vmatprep.subr.bf16.mxu0 0
      %196 = vmatpush1.bf16.msra.mxu0 %v173
      %197 = vmatprep.subr.bf16.mxu0 0
      %198 = vmatpush1.bf16.msra.mxu0 %v174
      %199 = vmatprep.subr.bf16.mxu0 0
      %200 = vmatpush1.bf16.msra.mxu0 0
      %201 = vmatprep.subr.bf16.mxu0 0
      %202 = vmatpush1.bf16.msra.mxu0 0
      %203 = vmatprep.subr.bf16.mxu0 0
      %204 = vmatpush1.bf16.msra.mxu0 0
      %205 = vmatprep.subr.bf16.mxu0 0
      %206 = vmatpush1.bf16.msra.mxu0 0
      %207 = vmatprep.subr.bf16.mxu0 0
      %208 = vmatpush1.bf16.msra.mxu0 0
      %209 = vmatprep.subr.bf16.mxu0 0
      %210 = vmatpush1.bf16.msra.mxu0 0
      %211 = vmatprep.subr.bf16.mxu0 0
      %212 = vmatpush1.bf16.msra.mxu0 0
      %213 = vmatprep.subr.bf16.mxu0 0
      %214 = vmatpush1.bf16.msra.mxu0 0
      %215 = vmatprep.mubr.bf16.mxu0 0
      %216 = vmatmul.mubr.bf16.gmra.mrb[0].mxu0 %v131
      %v217 = vpop.f32.mrb[0].mxu0
      %v218 = vadd.f32 %v121, %v217
      %v219 = vpop.f32.mrb[0].mxu0
      %v220 = vpop.f32.mrb[0].mxu0
      %v221 = vadd.f32 %v121, %v220
      %v222 = vpop.f32.mrb[0].mxu0
      %223 = vmatprep.mubr.bf16.mxu0 0
      %224 = vmatmul.mubr.bf16.gmra.mrb[0].mxu0 %v132
      %v225 = vpop.f32.mrb[0].mxu0
      %v226 = vadd.f32 %v121, %v225
      %v227 = vpop.f32.mrb[0].mxu0
      %v228 = vpop.f32.mrb[0].mxu0
      %v229 = vadd.f32 %v121, %v228
      %v230 = vpop.f32.mrb[0].mxu0
      %231 = vdwg.mxu0
      %v232 = vtanh.pop %v218
      %v233 = vtanh.pop %v221
      %v234 = vtanh.pop %v226
      %v235 = vtanh.pop %v229
      %236 = vst [vmem:[#allocation2] sm:$0xff] %v232
      %237 = vst [vmem:[#allocation2 + $0x8] sm:$0xff] %v233
      %238 = vst [vmem:[#allocation2 + $0x10] sm:$0xff] %v234
      %239 = vst [vmem:[#allocation2 + $0x18] sm:$0xff] %v235
      %s240 = scalar_lea.vmem [#allocation8], 16
      %v241 = vld [vmem:[%s240] sm:$0xf]
      %v242 = vld [vmem:[%s240 + $0x4] sm:$0xf]
      %v243 = vld [vmem:[%s240 + $0x8] sm:$0xf]
      %v244 = vld [vmem:[%s240 + $0xc] sm:$0xf]
      %v245 = vld [vmem:[#allocation11] sm:$0xf]
      %v246 = vld [vmem:[#allocation11 + $0x4] sm:$0xf]
      %v247 = vld [vmem:[#allocation11 + $0x8] sm:$0xf]
      %v248 = vld [vmem:[#allocation11 + $0xc] sm:$0xf]
      %v249 = vld [vmem:[#allocation11 + $0x10] sm:$0xf]
      %v250 = vld [vmem:[#allocation11 + $0x14] sm:$0xf]
      %v251 = vld [vmem:[#allocation11 + $0x18] sm:$0xf]
      %v252 = vld [vmem:[#allocation11 + $0x1c] sm:$0xf]
      %v253 = vld [vmem:[#allocation11 + $0x20] sm:$0xf]
      %v254 = vld [vmem:[#allocation11 + $0x24] sm:$0xf]
      %v255 = vld [vmem:[#allocation11 + $0x28] sm:$0xf]
      %v256 = vld [vmem:[#allocation11 + $0x2c] sm:$0xf]
      %v257 = vld [vmem:[#allocation11 + $0x30] sm:$0xf]
      %v258 = vld [vmem:[#allocation11 + $0x34] sm:$0xf]
      %v259 = vld [vmem:[#allocation11 + $0x38] sm:$0xf]
      %v260 = vld [vmem:[#allocation11 + $0x3c] sm:$0xf]
      %s261 = scalar_lea.vmem %s2, 1
      %v262 = vld [vmem:[%s261] sm:$0x1]
      %v264 = vlaneseq
      %v265 = vshrl.u32 %v264, 7
      %v266 = vsub.s32 0, %v265
      %v267 = vrot.slane %v262, %v266
      %v273 = vunpack.c.l.b16 %v241
      %v274 = vunpack.c.l.b16 %v242
      %v275 = vunpack.c.l.b16 %v243
      %v276 = vunpack.c.l.b16 %v244
      %v277 = vpack.c.b16 %v274, %v273
      %v278 = vpack.c.b16 %v276, %v275
      %v297 = vunpack.c.l.b16 %v245
      %v298 = vunpack.c.l.b16 %v246
      %v299 = vunpack.c.l.b16 %v247
      %v300 = vunpack.c.l.b16 %v248
      %v301 = vunpack.c.l.b16 %v249
      %v302 = vunpack.c.l.b16 %v250
      %v303 = vunpack.c.l.b16 %v251
      %v304 = vunpack.c.l.b16 %v252
      %v305 = vunpack.c.l.b16 %v253
      %v306 = vunpack.c.l.b16 %v254
      %v307 = vunpack.c.l.b16 %v255
      %v308 = vunpack.c.l.b16 %v256
      %v309 = vunpack.c.l.b16 %v257
      %v310 = vunpack.c.l.b16 %v258
      %v311 = vunpack.c.l.b16 %v259
      %v312 = vunpack.c.l.b16 %v260
      %v313 = vpack.c.b16 %v298, %v297
      %v314 = vpack.c.b16 %v300, %v299
      %v315 = vpack.c.b16 %v302, %v301
      %v316 = vpack.c.b16 %v304, %v303
      %v317 = vpack.c.b16 %v306, %v305
      %v318 = vpack.c.b16 %v308, %v307
      %v319 = vpack.c.b16 %v310, %v309
      %v320 = vpack.c.b16 %v312, %v311
      %329 = vmatprep.subr.bf16.mxu0 0
      %330 = vmatpush1.bf16.msra.mxu0 %v313
      %331 = vmatprep.subr.bf16.mxu0 0
      %332 = vmatpush1.bf16.msra.mxu0 %v314
      %333 = vmatprep.subr.bf16.mxu0 0
      %334 = vmatpush1.bf16.msra.mxu0 %v315
      %335 = vmatprep.subr.bf16.mxu0 0
      %336 = vmatpush1.bf16.msra.mxu0 %v316
      %337 = vmatprep.subr.bf16.mxu0 0
      %338 = vmatpush1.bf16.msra.mxu0 %v317
      %339 = vmatprep.subr.bf16.mxu0 0
      %340 = vmatpush1.bf16.msra.mxu0 %v318
      %341 = vmatprep.subr.bf16.mxu0 0
      %342 = vmatpush1.bf16.msra.mxu0 %v319
      %343 = vmatprep.subr.bf16.mxu0 0
      %344 = vmatpush1.bf16.msra.mxu0 %v320
      %345 = vmatprep.subr.bf16.mxu0 0
      %346 = vmatpush1.bf16.msra.mxu0 0
      %347 = vmatprep.subr.bf16.mxu0 0
      %348 = vmatpush1.bf16.msra.mxu0 0
      %349 = vmatprep.subr.bf16.mxu0 0
      %350 = vmatpush1.bf16.msra.mxu0 0
      %351 = vmatprep.subr.bf16.mxu0 0
      %352 = vmatpush1.bf16.msra.mxu0 0
      %353 = vmatprep.subr.bf16.mxu0 0
      %354 = vmatpush1.bf16.msra.mxu0 0
      %355 = vmatprep.subr.bf16.mxu0 0
      %356 = vmatpush1.bf16.msra.mxu0 0
      %357 = vmatprep.subr.bf16.mxu0 0
      %358 = vmatpush1.bf16.msra.mxu0 0
      %359 = vmatprep.subr.bf16.mxu0 0
      %360 = vmatpush1.bf16.msra.mxu0 0
      %361 = vmatprep.mubr.bf16.mxu0 0
      %362 = vmatmul.mubr.bf16.gmra.mrb[0].mxu0 %v277
      %v363 = vpop.f32.mrb[0].mxu0
      %v364 = vadd.f32 %v267, %v363
      %v365 = vpop.f32.mrb[0].mxu0
      %v366 = vpop.f32.mrb[0].mxu0
      %v367 = vadd.f32 %v267, %v366
      %v368 = vpop.f32.mrb[0].mxu0
      %369 = vmatprep.mubr.bf16.mxu0 0
      %370 = vmatmul.mubr.bf16.gmra.mrb[0].mxu0 %v278
      %v371 = vpop.f32.mrb[0].mxu0
      %v372 = vadd.f32 %v267, %v371
      %v373 = vpop.f32.mrb[0].mxu0
      %v374 = vpop.f32.mrb[0].mxu0
      %v375 = vadd.f32 %v267, %v374
      %v376 = vpop.f32.mrb[0].mxu0
      %377 = vdwg.mxu0
      %v378 = vtanh.pop %v364
      %v379 = vtanh.pop %v367
      %v380 = vtanh.pop %v372
      %v381 = vtanh.pop %v375
      %s382 = scalar_lea.vmem [#allocation2], 32
      %383 = vst [vmem:[%s382] sm:$0xff] %v378
      %384 = vst [vmem:[%s382 + $0x8] sm:$0xff] %v379
      %385 = vst [vmem:[%s382 + $0x10] sm:$0xff] %v380
      %386 = vst [vmem:[%s382 + $0x18] sm:$0xff] %v381
      %s387 = scalar_lea.vmem [#allocation8], 32
      %v388 = vld [vmem:[%s387] sm:$0xf]
      %v389 = vld [vmem:[%s387 + $0x4] sm:$0xf]
      %v390 = vld [vmem:[%s387 + $0x8] sm:$0xf]
      %v391 = vld [vmem:[%s387 + $0xc] sm:$0xf]
      %v392 = vld [vmem:[#allocation11] sm:$0xf]
      %v393 = vld [vmem:[#allocation11 + $0x4] sm:$0xf]
      %v394 = vld [vmem:[#allocation11 + $0x8] sm:$0xf]
      %v395 = vld [vmem:[#allocation11 + $0xc] sm:$0xf]
      %v396 = vld [vmem:[#allocation11 + $0x10] sm:$0xf]
      %v397 = vld [vmem:[#allocation11 + $0x14] sm:$0xf]
      %v398 = vld [vmem:[#allocation11 + $0x18] sm:$0xf]
      %v399 = vld [vmem:[#allocation11 + $0x1c] sm:$0xf]
      %v400 = vld [vmem:[#allocation11 + $0x20] sm:$0xf]
      %v401 = vld [vmem:[#allocation11 + $0x24] sm:$0xf]
      %v402 = vld [vmem:[#allocation11 + $0x28] sm:$0xf]
      %v403 = vld [vmem:[#allocation11 + $0x2c] sm:$0xf]
      %v404 = vld [vmem:[#allocation11 + $0x30] sm:$0xf]
      %v405 = vld [vmem:[#allocation11 + $0x34] sm:$0xf]
      %v406 = vld [vmem:[#allocation11 + $0x38] sm:$0xf]
      %v407 = vld [vmem:[#allocation11 + $0x3c] sm:$0xf]
      %s408 = scalar_lea.vmem %s2, 2
      %v409 = vld [vmem:[%s408] sm:$0x1]
      %v411 = vlaneseq
      %v412 = vshrl.u32 %v411, 7
      %v413 = vsub.s32 0, %v412
      %v414 = vrot.slane %v409, %v413
      %v420 = vunpack.c.l.b16 %v388
      %v421 = vunpack.c.l.b16 %v389
      %v422 = vunpack.c.l.b16 %v390
      %v423 = vunpack.c.l.b16 %v391
      %v424 = vpack.c.b16 %v421, %v420
      %v425 = vpack.c.b16 %v423, %v422
      %v444 = vunpack.c.l.b16 %v392
      %v445 = vunpack.c.l.b16 %v393
      %v446 = vunpack.c.l.b16 %v394
      %v447 = vunpack.c.l.b16 %v395
      %v448 = vunpack.c.l.b16 %v396
      %v449 = vunpack.c.l.b16 %v397
      %v450 = vunpack.c.l.b16 %v398
      %v451 = vunpack.c.l.b16 %v399
      %v452 = vunpack.c.l.b16 %v400
      %v453 = vunpack.c.l.b16 %v401
      %v454 = vunpack.c.l.b16 %v402
      %v455 = vunpack.c.l.b16 %v403
      %v456 = vunpack.c.l.b16 %v404
      %v457 = vunpack.c.l.b16 %v405
      %v458 = vunpack.c.l.b16 %v406
      %v459 = vunpack.c.l.b16 %v407
      %v460 = vpack.c.b16 %v445, %v444
      %v461 = vpack.c.b16 %v447, %v446
      %v462 = vpack.c.b16 %v449, %v448
      %v463 = vpack.c.b16 %v451, %v450
      %v464 = vpack.c.b16 %v453, %v452
      %v465 = vpack.c.b16 %v455, %v454
      %v466 = vpack.c.b16 %v457, %v456
      %v467 = vpack.c.b16 %v459, %v458
      %476 = vmatprep.subr.bf16.mxu0 0
      %477 = vmatpush1.bf16.msra.mxu0 %v460
      %478 = vmatprep.subr.bf16.mxu0 0
      %479 = vmatpush1.bf16.msra.mxu0 %v461
      %480 = vmatprep.subr.bf16.mxu0 0
      %481 = vmatpush1.bf16.msra.mxu0 %v462
      %482 = vmatprep.subr.bf16.mxu0 0
      %483 = vmatpush1.bf16.msra.mxu0 %v463
      %484 = vmatprep.subr.bf16.mxu0 0
      %485 = vmatpush1.bf16.msra.mxu0 %v464
      %486 = vmatprep.subr.bf16.mxu0 0
      %487 = vmatpush1.bf16.msra.mxu0 %v465
      %488 = vmatprep.subr.bf16.mxu0 0
      %489 = vmatpush1.bf16.msra.mxu0 %v466
      %490 = vmatprep.subr.bf16.mxu0 0
      %491 = vmatpush1.bf16.msra.mxu0 %v467
      %492 = vmatprep.subr.bf16.mxu0 0
      %493 = vmatpush1.bf16.msra.mxu0 0
      %494 = vmatprep.subr.bf16.mxu0 0
      %495 = vmatpush1.bf16.msra.mxu0 0
      %496 = vmatprep.subr.bf16.mxu0 0
      %497 = vmatpush1.bf16.msra.mxu0 0
      %498 = vmatprep.subr.bf16.mxu0 0
      %499 = vmatpush1.bf16.msra.mxu0 0
      %500 = vmatprep.subr.bf16.mxu0 0
      %501 = vmatpush1.bf16.msra.mxu0 0
      %502 = vmatprep.subr.bf16.mxu0 0
      %503 = vmatpush1.bf16.msra.mxu0 0
      %504 = vmatprep.subr.bf16.mxu0 0
      %505 = vmatpush1.bf16.msra.mxu0 0
      %506 = vmatprep.subr.bf16.mxu0 0
      %507 = vmatpush1.bf16.msra.mxu0 0
      %508 = vmatprep.mubr.bf16.mxu0 0
      %509 = vmatmul.mubr.bf16.gmra.mrb[0].mxu0 %v424
      %v510 = vpop.f32.mrb[0].mxu0
      %v511 = vadd.f32 %v414, %v510
      %v512 = vpop.f32.mrb[0].mxu0
      %v513 = vpop.f32.mrb[0].mxu0
      %v514 = vadd.f32 %v414, %v513
      %v515 = vpop.f32.mrb[0].mxu0
      %516 = vmatprep.mubr.bf16.mxu0 0
      %517 = vmatmul.mubr.bf16.gmra.mrb[0].mxu0 %v425
      %v518 = vpop.f32.mrb[0].mxu0
      %v519 = vadd.f32 %v414, %v518
      %v520 = vpop.f32.mrb[0].mxu0
      %v521 = vpop.f32.mrb[0].mxu0
      %v522 = vadd.f32 %v414, %v521
      %v523 = vpop.f32.mrb[0].mxu0
      %524 = vdwg.mxu0
      %v525 = vtanh.pop %v511
      %v526 = vtanh.pop %v514
      %v527 = vtanh.pop %v519
      %v528 = vtanh.pop %v522
      %s529 = scalar_lea.vmem [#allocation2], 64
      %530 = vst [vmem:[%s529] sm:$0xff] %v525
      %531 = vst [vmem:[%s529 + $0x8] sm:$0xff] %v526
      %532 = vst [vmem:[%s529 + $0x10] sm:$0xff] %v527
      %533 = vst [vmem:[%s529 + $0x18] sm:$0xff] %v528
      %s534 = scalar_lea.vmem [#allocation8], 48
      %v535 = vld [vmem:[%s534] sm:$0xf]
      %v536 = vld [vmem:[%s534 + $0x4] sm:$0xf]
      %v537 = vld [vmem:[%s534 + $0x8] sm:$0xf]
      %v538 = vld [vmem:[%s534 + $0xc] sm:$0xf]
      %v539 = vld [vmem:[#allocation11] sm:$0xf]
      %v540 = vld [vmem:[#allocation11 + $0x4] sm:$0xf]
      %v541 = vld [vmem:[#allocation11 + $0x8] sm:$0xf]
      %v542 = vld [vmem:[#allocation11 + $0xc] sm:$0xf]
      %v543 = vld [vmem:[#allocation11 + $0x10] sm:$0xf]
      %v544 = vld [vmem:[#allocation11 + $0x14] sm:$0xf]
      %v545 = vld [vmem:[#allocation11 + $0x18] sm:$0xf]
      %v546 = vld [vmem:[#allocation11 + $0x1c] sm:$0xf]
      %v547 = vld [vmem:[#allocation11 + $0x20] sm:$0xf]
      %v548 = vld [vmem:[#allocation11 + $0x24] sm:$0xf]
      %v549 = vld [vmem:[#allocation11 + $0x28] sm:$0xf]
      %v550 = vld [vmem:[#allocation11 + $0x2c] sm:$0xf]
      %v551 = vld [vmem:[#allocation11 + $0x30] sm:$0xf]
      %v552 = vld [vmem:[#allocation11 + $0x34] sm:$0xf]
      %v553 = vld [vmem:[#allocation11 + $0x38] sm:$0xf]
      %v554 = vld [vmem:[#allocation11 + $0x3c] sm:$0xf]
      %s555 = scalar_lea.vmem %s2, 3
      %v556 = vld [vmem:[%s555] sm:$0x1]
      %v558 = vlaneseq
      %v559 = vshrl.u32 %v558, 7
      %v560 = vsub.s32 0, %v559
      %v561 = vrot.slane %v556, %v560
      %v567 = vunpack.c.l.b16 %v535
      %v568 = vunpack.c.l.b16 %v536
      %v569 = vunpack.c.l.b16 %v537
      %v570 = vunpack.c.l.b16 %v538
      %v571 = vpack.c.b16 %v568, %v567
      %v572 = vpack.c.b16 %v570, %v569
      %v591 = vunpack.c.l.b16 %v539
      %v592 = vunpack.c.l.b16 %v540
      %v593 = vunpack.c.l.b16 %v541
      %v594 = vunpack.c.l.b16 %v542
      %v595 = vunpack.c.l.b16 %v543
      %v596 = vunpack.c.l.b16 %v544
      %v597 = vunpack.c.l.b16 %v545
      %v598 = vunpack.c.l.b16 %v546
      %v599 = vunpack.c.l.b16 %v547
      %v600 = vunpack.c.l.b16 %v548
      %v601 = vunpack.c.l.b16 %v549
      %v602 = vunpack.c.l.b16 %v550
      %v603 = vunpack.c.l.b16 %v551
      %v604 = vunpack.c.l.b16 %v552
      %v605 = vunpack.c.l.b16 %v553
      %v606 = vunpack.c.l.b16 %v554
      %v607 = vpack.c.b16 %v592, %v591
      %v608 = vpack.c.b16 %v594, %v593
      %v609 = vpack.c.b16 %v596, %v595
      %v610 = vpack.c.b16 %v598, %v597
      %v611 = vpack.c.b16 %v600, %v599
      %v612 = vpack.c.b16 %v602, %v601
      %v613 = vpack.c.b16 %v604, %v603
      %v614 = vpack.c.b16 %v606, %v605
      %623 = vmatprep.subr.bf16.mxu0 0
      %624 = vmatpush1.bf16.msra.mxu0 %v607
      %625 = vmatprep.subr.bf16.mxu0 0
      %626 = vmatpush1.bf16.msra.mxu0 %v608
      %627 = vmatprep.subr.bf16.mxu0 0
      %628 = vmatpush1.bf16.msra.mxu0 %v609
      %629 = vmatprep.subr.bf16.mxu0 0
      %630 = vmatpush1.bf16.msra.mxu0 %v610
      %631 = vmatprep.subr.bf16.mxu0 0
      %632 = vmatpush1.bf16.msra.mxu0 %v611
      %633 = vmatprep.subr.bf16.mxu0 0
      %634 = vmatpush1.bf16.msra.mxu0 %v612
      %635 = vmatprep.subr.bf16.mxu0 0
      %636 = vmatpush1.bf16.msra.mxu0 %v613
      %637 = vmatprep.subr.bf16.mxu0 0
      %638 = vmatpush1.bf16.msra.mxu0 %v614
      %639 = vmatprep.subr.bf16.mxu0 0
      %640 = vmatpush1.bf16.msra.mxu0 0
      %641 = vmatprep.subr.bf16.mxu0 0
      %642 = vmatpush1.bf16.msra.mxu0 0
      %643 = vmatprep.subr.bf16.mxu0 0
      %644 = vmatpush1.bf16.msra.mxu0 0
      %645 = vmatprep.subr.bf16.mxu0 0
      %646 = vmatpush1.bf16.msra.mxu0 0
      %647 = vmatprep.subr.bf16.mxu0 0
      %648 = vmatpush1.bf16.msra.mxu0 0
      %649 = vmatprep.subr.bf16.mxu0 0
      %650 = vmatpush1.bf16.msra.mxu0 0
      %651 = vmatprep.subr.bf16.mxu0 0
      %652 = vmatpush1.bf16.msra.mxu0 0
      %653 = vmatprep.subr.bf16.mxu0 0
      %654 = vmatpush1.bf16.msra.mxu0 0
      %655 = vmatprep.mubr.bf16.mxu0 0
      %656 = vmatmul.mubr.bf16.gmra.mrb[0].mxu0 %v571
      %v657 = vpop.f32.mrb[0].mxu0
      %v658 = vadd.f32 %v561, %v657
      %v659 = vpop.f32.mrb[0].mxu0
      %v660 = vpop.f32.mrb[0].mxu0
      %v661 = vadd.f32 %v561, %v660
      %v662 = vpop.f32.mrb[0].mxu0
      %663 = vmatprep.mubr.bf16.mxu0 0
      %664 = vmatmul.mubr.bf16.gmra.mrb[0].mxu0 %v572
      %v665 = vpop.f32.mrb[0].mxu0
      %v666 = vadd.f32 %v561, %v665
      %v667 = vpop.f32.mrb[0].mxu0
      %v668 = vpop.f32.mrb[0].mxu0
      %v669 = vadd.f32 %v561, %v668
      %v670 = vpop.f32.mrb[0].mxu0
      %671 = vdwg.mxu0
      %v672 = vtanh.pop %v658
      %v673 = vtanh.pop %v661
      %v674 = vtanh.pop %v666
      %v675 = vtanh.pop %v669
      %s676 = scalar_lea.vmem [#allocation2], 96
      %677 = vst [vmem:[%s676] sm:$0xff] %v672
      %678 = vst [vmem:[%s676 + $0x8] sm:$0xff] %v673
      %679 = vst [vmem:[%s676 + $0x10] sm:$0xff] %v674
      %680 = vst [vmem:[%s676 + $0x18] sm:$0xff] %v675
      %s681 = scalar_lea.vmem [#allocation8], 64
      %v682 = vld [vmem:[%s681] sm:$0xf]
      %v683 = vld [vmem:[%s681 + $0x4] sm:$0xf]
      %v684 = vld [vmem:[%s681 + $0x8] sm:$0xf]
      %v685 = vld [vmem:[%s681 + $0xc] sm:$0xf]
      %v686 = vld [vmem:[#allocation11] sm:$0xf]
      %v687 = vld [vmem:[#allocation11 + $0x4] sm:$0xf]
      %v688 = vld [vmem:[#allocation11 + $0x8] sm:$0xf]
      %v689 = vld [vmem:[#allocation11 + $0xc] sm:$0xf]
      %v690 = vld [vmem:[#allocation11 + $0x10] sm:$0xf]
      %v691 = vld [vmem:[#allocation11 + $0x14] sm:$0xf]
      %v692 = vld [vmem:[#allocation11 + $0x18] sm:$0xf]
      %v693 = vld [vmem:[#allocation11 + $0x1c] sm:$0xf]
      %v694 = vld [vmem:[#allocation11 + $0x20] sm:$0xf]
      %v695 = vld [vmem:[#allocation11 + $0x24] sm:$0xf]
      %v696 = vld [vmem:[#allocation11 + $0x28] sm:$0xf]
      %v697 = vld [vmem:[#allocation11 + $0x2c] sm:$0xf]
      %v698 = vld [vmem:[#allocation11 + $0x30] sm:$0xf]
      %v699 = vld [vmem:[#allocation11 + $0x34] sm:$0xf]
      %v700 = vld [vmem:[#allocation11 + $0x38] sm:$0xf]
      %v701 = vld [vmem:[#allocation11 + $0x3c] sm:$0xf]
      %s702 = scalar_lea.vmem %s2, 4
      %v703 = vld [vmem:[%s702] sm:$0x1]
      %v705 = vlaneseq
      %v706 = vshrl.u32 %v705, 7
      %v707 = vsub.s32 0, %v706
      %v708 = vrot.slane %v703, %v707
      %v714 = vunpack.c.l.b16 %v682
      %v715 = vunpack.c.l.b16 %v683
      %v716 = vunpack.c.l.b16 %v684
      %v717 = vunpack.c.l.b16 %v685
      %v718 = vpack.c.b16 %v715, %v714
      %v719 = vpack.c.b16 %v717, %v716
      %v738 = vunpack.c.l.b16 %v686
      %v739 = vunpack.c.l.b16 %v687
      %v740 = vunpack.c.l.b16 %v688
      %v741 = vunpack.c.l.b16 %v689
      %v742 = vunpack.c.l.b16 %v690
      %v743 = vunpack.c.l.b16 %v691
      %v744 = vunpack.c.l.b16 %v692
      %v745 = vunpack.c.l.b16 %v693
      %v746 = vunpack.c.l.b16 %v694
      %v747 = vunpack.c.l.b16 %v695
      %v748 = vunpack.c.l.b16 %v696
      %v749 = vunpack.c.l.b16 %v697
      %v750 = vunpack.c.l.b16 %v698
      %v751 = vunpack.c.l.b16 %v699
      %v752 = vunpack.c.l.b16 %v700
      %v753 = vunpack.c.l.b16 %v701
      %v754 = vpack.c.b16 %v739, %v738
      %v755 = vpack.c.b16 %v741, %v740
      %v756 = vpack.c.b16 %v743, %v742
      %v757 = vpack.c.b16 %v745, %v744
      %v758 = vpack.c.b16 %v747, %v746
      %v759 = vpack.c.b16 %v749, %v748
      %v760 = vpack.c.b16 %v751, %v750
      %v761 = vpack.c.b16 %v753, %v752
      %770 = vmatprep.subr.bf16.mxu0 0
      %771 = vmatpush1.bf16.msra.mxu0 %v754
      %772 = vmatprep.subr.bf16.mxu0 0
      %773 = vmatpush1.bf16.msra.mxu0 %v755
      %774 = vmatprep.subr.bf16.mxu0 0
      %775 = vmatpush1.bf16.msra.mxu0 %v756
      %776 = vmatprep.subr.bf16.mxu0 0
      %777 = vmatpush1.bf16.msra.mxu0 %v757
      %778 = vmatprep.subr.bf16.mxu0 0
      %779 = vmatpush1.bf16.msra.mxu0 %v758
      %780 = vmatprep.subr.bf16.mxu0 0
      %781 = vmatpush1.bf16.msra.mxu0 %v759
      %782 = vmatprep.subr.bf16.mxu0 0
      %783 = vmatpush1.bf16.msra.mxu0 %v760
      %784 = vmatprep.subr.bf16.mxu0 0
      %785 = vmatpush1.bf16.msra.mxu0 %v761
      %786 = vmatprep.subr.bf16.mxu0 0
      %787 = vmatpush1.bf16.msra.mxu0 0
      %788 = vmatprep.subr.bf16.mxu0 0
      %789 = vmatpush1.bf16.msra.mxu0 0
      %790 = vmatprep.subr.bf16.mxu0 0
      %791 = vmatpush1.bf16.msra.mxu0 0
      %792 = vmatprep.subr.bf16.mxu0 0
      %793 = vmatpush1.bf16.msra.mxu0 0
      %794 = vmatprep.subr.bf16.mxu0 0
      %795 = vmatpush1.bf16.msra.mxu0 0
      %796 = vmatprep.subr.bf16.mxu0 0
      %797 = vmatpush1.bf16.msra.mxu0 0
      %798 = vmatprep.subr.bf16.mxu0 0
      %799 = vmatpush1.bf16.msra.mxu0 0
      %800 = vmatprep.subr.bf16.mxu0 0
      %801 = vmatpush1.bf16.msra.mxu0 0
      %802 = vmatprep.mubr.bf16.mxu0 0
      %803 = vmatmul.mubr.bf16.gmra.mrb[0].mxu0 %v718
      %v804 = vpop.f32.mrb[0].mxu0
      %v805 = vadd.f32 %v708, %v804
      %v806 = vpop.f32.mrb[0].mxu0
      %v807 = vpop.f32.mrb[0].mxu0
      %v808 = vadd.f32 %v708, %v807
      %v809 = vpop.f32.mrb[0].mxu0
      %810 = vmatprep.mubr.bf16.mxu0 0
      %811 = vmatmul.mubr.bf16.gmra.mrb[0].mxu0 %v719
      %v812 = vpop.f32.mrb[0].mxu0
      %v813 = vadd.f32 %v708, %v812
      %v814 = vpop.f32.mrb[0].mxu0
      %v815 = vpop.f32.mrb[0].mxu0
      %v816 = vadd.f32 %v708, %v815
      %v817 = vpop.f32.mrb[0].mxu0
      %818 = vdwg.mxu0
      %v819 = vtanh.pop %v805
      %v820 = vtanh.pop %v808
      %v821 = vtanh.pop %v813
      %v822 = vtanh.pop %v816
      %s823 = scalar_lea.vmem [#allocation2], 128
      %824 = vst [vmem:[%s823] sm:$0xff] %v819
      %825 = vst [vmem:[%s823 + $0x8] sm:$0xff] %v820
      %826 = vst [vmem:[%s823 + $0x10] sm:$0xff] %v821
      %827 = vst [vmem:[%s823 + $0x18] sm:$0xff] %v822
      %s828 = scalar_lea.vmem [#allocation8], 80
      %v829 = vld [vmem:[%s828] sm:$0xf]
      %v830 = vld [vmem:[%s828 + $0x4] sm:$0xf]
      %v831 = vld [vmem:[%s828 + $0x8] sm:$0xf]
      %v832 = vld [vmem:[%s828 + $0xc] sm:$0xf]
      %v833 = vld [vmem:[#allocation11] sm:$0xf]
      %v834 = vld [vmem:[#allocation11 + $0x4] sm:$0xf]
      %v835 = vld [vmem:[#allocation11 + $0x8] sm:$0xf]
      %v836 = vld [vmem:[#allocation11 + $0xc] sm:$0xf]
      %v837 = vld [vmem:[#allocation11 + $0x10] sm:$0xf]
      %v838 = vld [vmem:[#allocation11 + $0x14] sm:$0xf]
      %v839 = vld [vmem:[#allocation11 + $0x18] sm:$0xf]
      %v840 = vld [vmem:[#allocation11 + $0x1c] sm:$0xf]
      %v841 = vld [vmem:[#allocation11 + $0x20] sm:$0xf]
      %v842 = vld [vmem:[#allocation11 + $0x24] sm:$0xf]
      %v843 = vld [vmem:[#allocation11 + $0x28] sm:$0xf]
      %v844 = vld [vmem:[#allocation11 + $0x2c] sm:$0xf]
      %v845 = vld [vmem:[#allocation11 + $0x30] sm:$0xf]
      %v846 = vld [vmem:[#allocation11 + $0x34] sm:$0xf]
      %v847 = vld [vmem:[#allocation11 + $0x38] sm:$0xf]
      %v848 = vld [vmem:[#allocation11 + $0x3c] sm:$0xf]
      %s849 = scalar_lea.vmem %s2, 5
      %v850 = vld [vmem:[%s849] sm:$0x1]
      %v852 = vlaneseq
      %v853 = vshrl.u32 %v852, 7
      %v854 = vsub.s32 0, %v853
      %v855 = vrot.slane %v850, %v854
      %v861 = vunpack.c.l.b16 %v829
      %v862 = vunpack.c.l.b16 %v830
      %v863 = vunpack.c.l.b16 %v831
      %v864 = vunpack.c.l.b16 %v832
      %v865 = vpack.c.b16 %v862, %v861
      %v866 = vpack.c.b16 %v864, %v863
      %v885 = vunpack.c.l.b16 %v833
      %v886 = vunpack.c.l.b16 %v834
      %v887 = vunpack.c.l.b16 %v835
      %v888 = vunpack.c.l.b16 %v836
      %v889 = vunpack.c.l.b16 %v837
      %v890 = vunpack.c.l.b16 %v838
      %v891 = vunpack.c.l.b16 %v839
      %v892 = vunpack.c.l.b16 %v840
      %v893 = vunpack.c.l.b16 %v841
      %v894 = vunpack.c.l.b16 %v842
      %v895 = vunpack.c.l.b16 %v843
      %v896 = vunpack.c.l.b16 %v844
      %v897 = vunpack.c.l.b16 %v845
      %v898 = vunpack.c.l.b16 %v846
      %v899 = vunpack.c.l.b16 %v847
      %v900 = vunpack.c.l.b16 %v848
      %v901 = vpack.c.b16 %v886, %v885
      %v902 = vpack.c.b16 %v888, %v887
      %v903 = vpack.c.b16 %v890, %v889
      %v904 = vpack.c.b16 %v892, %v891
      %v905 = vpack.c.b16 %v894, %v893
      %v906 = vpack.c.b16 %v896, %v895
      %v907 = vpack.c.b16 %v898, %v897
      %v908 = vpack.c.b16 %v900, %v899
      %917 = vmatprep.subr.bf16.mxu0 0
      %918 = vmatpush1.bf16.msra.mxu0 %v901
      %919 = vmatprep.subr.bf16.mxu0 0
      %920 = vmatpush1.bf16.msra.mxu0 %v902
      %921 = vmatprep.subr.bf16.mxu0 0
      %922 = vmatpush1.bf16.msra.mxu0 %v903
      %923 = vmatprep.subr.bf16.mxu0 0
      %924 = vmatpush1.bf16.msra.mxu0 %v904
      %925 = vmatprep.subr.bf16.mxu0 0
      %926 = vmatpush1.bf16.msra.mxu0 %v905
      %927 = vmatprep.subr.bf16.mxu0 0
      %928 = vmatpush1.bf16.msra.mxu0 %v906
      %929 = vmatprep.subr.bf16.mxu0 0
      %930 = vmatpush1.bf16.msra.mxu0 %v907
      %931 = vmatprep.subr.bf16.mxu0 0
      %932 = vmatpush1.bf16.msra.mxu0 %v908
      %933 = vmatprep.subr.bf16.mxu0 0
      %934 = vmatpush1.bf16.msra.mxu0 0
      %935 = vmatprep.subr.bf16.mxu0 0
      %936 = vmatpush1.bf16.msra.mxu0 0
      %937 = vmatprep.subr.bf16.mxu0 0
      %938 = vmatpush1.bf16.msra.mxu0 0
      %939 = vmatprep.subr.bf16.mxu0 0
      %940 = vmatpush1.bf16.msra.mxu0 0
      %941 = vmatprep.subr.bf16.mxu0 0
      %942 = vmatpush1.bf16.msra.mxu0 0
      %943 = vmatprep.subr.bf16.mxu0 0
      %944 = vmatpush1.bf16.msra.mxu0 0
      %945 = vmatprep.subr.bf16.mxu0 0
      %946 = vmatpush1.bf16.msra.mxu0 0
      %947 = vmatprep.subr.bf16.mxu0 0
      %948 = vmatpush1.bf16.msra.mxu0 0
      %949 = vmatprep.mubr.bf16.mxu0 0
      %950 = vmatmul.mubr.bf16.gmra.mrb[0].mxu0 %v865
      %v951 = vpop.f32.mrb[0].mxu0
      %v952 = vadd.f32 %v855, %v951
      %v953 = vpop.f32.mrb[0].mxu0
      %v954 = vpop.f32.mrb[0].mxu0
      %v955 = vadd.f32 %v855, %v954
      %v956 = vpop.f32.mrb[0].mxu0
      %957 = vmatprep.mubr.bf16.mxu0 0
      %958 = vmatmul.mubr.bf16.gmra.mrb[0].mxu0 %v866
      %v959 = vpop.f32.mrb[0].mxu0
      %v960 = vadd.f32 %v855, %v959
      %v961 = vpop.f32.mrb[0].mxu0
      %v962 = vpop.f32.mrb[0].mxu0
      %v963 = vadd.f32 %v855, %v962
      %v964 = vpop.f32.mrb[0].mxu0
      %965 = vdwg.mxu0
      %v966 = vtanh.pop %v952
      %v967 = vtanh.pop %v955
      %v968 = vtanh.pop %v960
      %v969 = vtanh.pop %v963
      %s970 = scalar_lea.vmem [#allocation2], 160
      %971 = vst [vmem:[%s970] sm:$0xff] %v966
      %972 = vst [vmem:[%s970 + $0x8] sm:$0xff] %v967
      %973 = vst [vmem:[%s970 + $0x10] sm:$0xff] %v968
      %974 = vst [vmem:[%s970 + $0x18] sm:$0xff] %v969
      %s975 = scalar_lea.vmem [#allocation8], 96
      %v976 = vld [vmem:[%s975] sm:$0xf]
      %v977 = vld [vmem:[%s975 + $0x4] sm:$0xf]
      %v978 = vld [vmem:[%s975 + $0x8] sm:$0xf]
      %v979 = vld [vmem:[%s975 + $0xc] sm:$0xf]
      %v980 = vld [vmem:[#allocation11] sm:$0xf]
      %v981 = vld [vmem:[#allocation11 + $0x4] sm:$0xf]
      %v982 = vld [vmem:[#allocation11 + $0x8] sm:$0xf]
      %v983 = vld [vmem:[#allocation11 + $0xc] sm:$0xf]
      %v984 = vld [vmem:[#allocation11 + $0x10] sm:$0xf]
      %v985 = vld [vmem:[#allocation11 + $0x14] sm:$0xf]
      %v986 = vld [vmem:[#allocation11 + $0x18] sm:$0xf]
      %v987 = vld [vmem:[#allocation11 + $0x1c] sm:$0xf]
      %v988 = vld [vmem:[#allocation11 + $0x20] sm:$0xf]
      %v989 = vld [vmem:[#allocation11 + $0x24] sm:$0xf]
      %v990 = vld [vmem:[#allocation11 + $0x28] sm:$0xf]
      %v991 = vld [vmem:[#allocation11 + $0x2c] sm:$0xf]
      %v992 = vld [vmem:[#allocation11 + $0x30] sm:$0xf]
      %v993 = vld [vmem:[#allocation11 + $0x34] sm:$0xf]
      %v994 = vld [vmem:[#allocation11 + $0x38] sm:$0xf]
      %v995 = vld [vmem:[#allocation11 + $0x3c] sm:$0xf]
      %s996 = scalar_lea.vmem %s2, 6
      %v997 = vld [vmem:[%s996] sm:$0x1]
      %v999 = vlaneseq
      %v1000 = vshrl.u32 %v999, 7
      %v1001 = vsub.s32 0, %v1000
      %v1002 = vrot.slane %v997, %v1001
      %v1008 = vunpack.c.l.b16 %v976
      %v1009 = vunpack.c.l.b16 %v977
      %v1010 = vunpack.c.l.b16 %v978
      %v1011 = vunpack.c.l.b16 %v979
      %v1012 = vpack.c.b16 %v1009, %v1008
      %v1013 = vpack.c.b16 %v1011, %v1010
      %v1032 = vunpack.c.l.b16 %v980
      %v1033 = vunpack.c.l.b16 %v981
      %v1034 = vunpack.c.l.b16 %v982
      %v1035 = vunpack.c.l.b16 %v983
      %v1036 = vunpack.c.l.b16 %v984
      %v1037 = vunpack.c.l.b16 %v985
      %v1038 = vunpack.c.l.b16 %v986
      %v1039 = vunpack.c.l.b16 %v987
      %v1040 = vunpack.c.l.b16 %v988
      %v1041 = vunpack.c.l.b16 %v989
      %v1042 = vunpack.c.l.b16 %v990
      %v1043 = vunpack.c.l.b16 %v991
      %v1044 = vunpack.c.l.b16 %v992
      %v1045 = vunpack.c.l.b16 %v993
      %v1046 = vunpack.c.l.b16 %v994
      %v1047 = vunpack.c.l.b16 %v995
      %v1048 = vpack.c.b16 %v1033, %v1032
      %v1049 = vpack.c.b16 %v1035, %v1034
      %v1050 = vpack.c.b16 %v1037, %v1036
      %v1051 = vpack.c.b16 %v1039, %v1038
      %v1052 = vpack.c.b16 %v1041, %v1040
      %v1053 = vpack.c.b16 %v1043, %v1042
      %v1054 = vpack.c.b16 %v1045, %v1044
      %v1055 = vpack.c.b16 %v1047, %v1046
      %1064 = vmatprep.subr.bf16.mxu0 0
      %1065 = vmatpush1.bf16.msra.mxu0 %v1048
      %1066 = vmatprep.subr.bf16.mxu0 0
      %1067 = vmatpush1.bf16.msra.mxu0 %v1049
      %1068 = vmatprep.subr.bf16.mxu0 0
      %1069 = vmatpush1.bf16.msra.mxu0 %v1050
      %1070 = vmatprep.subr.bf16.mxu0 0
      %1071 = vmatpush1.bf16.msra.mxu0 %v1051
      %1072 = vmatprep.subr.bf16.mxu0 0
      %1073 = vmatpush1.bf16.msra.mxu0 %v1052
      %1074 = vmatprep.subr.bf16.mxu0 0
      %1075 = vmatpush1.bf16.msra.mxu0 %v1053
      %1076 = vmatprep.subr.bf16.mxu0 0
      %1077 = vmatpush1.bf16.msra.mxu0 %v1054
      %1078 = vmatprep.subr.bf16.mxu0 0
      %1079 = vmatpush1.bf16.msra.mxu0 %v1055
      %1080 = vmatprep.subr.bf16.mxu0 0
      %1081 = vmatpush1.bf16.msra.mxu0 0
      %1082 = vmatprep.subr.bf16.mxu0 0
      %1083 = vmatpush1.bf16.msra.mxu0 0
      %1084 = vmatprep.subr.bf16.mxu0 0
      %1085 = vmatpush1.bf16.msra.mxu0 0
      %1086 = vmatprep.subr.bf16.mxu0 0
      %1087 = vmatpush1.bf16.msra.mxu0 0
      %1088 = vmatprep.subr.bf16.mxu0 0
      %1089 = vmatpush1.bf16.msra.mxu0 0
      %1090 = vmatprep.subr.bf16.mxu0 0
      %1091 = vmatpush1.bf16.msra.mxu0 0
      %1092 = vmatprep.subr.bf16.mxu0 0
      %1093 = vmatpush1.bf16.msra.mxu0 0
      %1094 = vmatprep.subr.bf16.mxu0 0
      %1095 = vmatpush1.bf16.msra.mxu0 0
      %1096 = vmatprep.mubr.bf16.mxu0 0
      %1097 = vmatmul.mubr.bf16.gmra.mrb[0].mxu0 %v1012
      %v1098 = vpop.f32.mrb[0].mxu0
      %v1099 = vadd.f32 %v1002, %v1098
      %v1100 = vpop.f32.mrb[0].mxu0
      %v1101 = vpop.f32.mrb[0].mxu0
      %v1102 = vadd.f32 %v1002, %v1101
      %v1103 = vpop.f32.mrb[0].mxu0
      %1104 = vmatprep.mubr.bf16.mxu0 0
      %1105 = vmatmul.mubr.bf16.gmra.mrb[0].mxu0 %v1013
      %v1106 = vpop.f32.mrb[0].mxu0
      %v1107 = vadd.f32 %v1002, %v1106
      %v1108 = vpop.f32.mrb[0].mxu0
      %v1109 = vpop.f32.mrb[0].mxu0
      %v1110 = vadd.f32 %v1002, %v1109
      %v1111 = vpop.f32.mrb[0].mxu0
      %1112 = vdwg.mxu0
      %v1113 = vtanh.pop %v1099
      %v1114 = vtanh.pop %v1102
      %v1115 = vtanh.pop %v1107
      %v1116 = vtanh.pop %v1110
      %s1117 = scalar_lea.vmem [#allocation2], 192
      %1118 = vst [vmem:[%s1117] sm:$0xff] %v1113
      %1119 = vst [vmem:[%s1117 + $0x8] sm:$0xff] %v1114
      %1120 = vst [vmem:[%s1117 + $0x10] sm:$0xff] %v1115
      %1121 = vst [vmem:[%s1117 + $0x18] sm:$0xff] %v1116
      %s1122 = scalar_lea.vmem [#allocation8], 112
      %v1123 = vld [vmem:[%s1122] sm:$0xf]
      %v1124 = vld [vmem:[%s1122 + $0x4] sm:$0xf]
      %v1125 = vld [vmem:[%s1122 + $0x8] sm:$0xf]
      %v1126 = vld [vmem:[%s1122 + $0xc] sm:$0xf]
      %v1127 = vld [vmem:[#allocation11] sm:$0xf]
      %v1128 = vld [vmem:[#allocation11 + $0x4] sm:$0xf]
      %v1129 = vld [vmem:[#allocation11 + $0x8] sm:$0xf]
      %v1130 = vld [vmem:[#allocation11 + $0xc] sm:$0xf]
      %v1131 = vld [vmem:[#allocation11 + $0x10] sm:$0xf]
      %v1132 = vld [vmem:[#allocation11 + $0x14] sm:$0xf]
      %v1133 = vld [vmem:[#allocation11 + $0x18] sm:$0xf]
      %v1134 = vld [vmem:[#allocation11 + $0x1c] sm:$0xf]
      %v1135 = vld [vmem:[#allocation11 + $0x20] sm:$0xf]
      %v1136 = vld [vmem:[#allocation11 + $0x24] sm:$0xf]
      %v1137 = vld [vmem:[#allocation11 + $0x28] sm:$0xf]
      %v1138 = vld [vmem:[#allocation11 + $0x2c] sm:$0xf]
      %v1139 = vld [vmem:[#allocation11 + $0x30] sm:$0xf]
      %v1140 = vld [vmem:[#allocation11 + $0x34] sm:$0xf]
      %v1141 = vld [vmem:[#allocation11 + $0x38] sm:$0xf]
      %v1142 = vld [vmem:[#allocation11 + $0x3c] sm:$0xf]
      %s1143 = scalar_lea.vmem %s2, 7
      %v1144 = vld [vmem:[%s1143] sm:$0x1]
      %v1146 = vlaneseq
      %v1147 = vshrl.u32 %v1146, 7
      %v1148 = vsub.s32 0, %v1147
      %v1149 = vrot.slane %v1144, %v1148
      %v1155 = vunpack.c.l.b16 %v1123
      %v1156 = vunpack.c.l.b16 %v1124
      %v1157 = vunpack.c.l.b16 %v1125
      %v1158 = vunpack.c.l.b16 %v1126
      %v1159 = vpack.c.b16 %v1156, %v1155
      %v1160 = vpack.c.b16 %v1158, %v1157
      %v1179 = vunpack.c.l.b16 %v1127
      %v1180 = vunpack.c.l.b16 %v1128
      %v1181 = vunpack.c.l.b16 %v1129
      %v1182 = vunpack.c.l.b16 %v1130
      %v1183 = vunpack.c.l.b16 %v1131
      %v1184 = vunpack.c.l.b16 %v1132
      %v1185 = vunpack.c.l.b16 %v1133
      %v1186 = vunpack.c.l.b16 %v1134
      %v1187 = vunpack.c.l.b16 %v1135
      %v1188 = vunpack.c.l.b16 %v1136
      %v1189 = vunpack.c.l.b16 %v1137
      %v1190 = vunpack.c.l.b16 %v1138
      %v1191 = vunpack.c.l.b16 %v1139
      %v1192 = vunpack.c.l.b16 %v1140
      %v1193 = vunpack.c.l.b16 %v1141
      %v1194 = vunpack.c.l.b16 %v1142
      %v1195 = vpack.c.b16 %v1180, %v1179
      %v1196 = vpack.c.b16 %v1182, %v1181
      %v1197 = vpack.c.b16 %v1184, %v1183
      %v1198 = vpack.c.b16 %v1186, %v1185
      %v1199 = vpack.c.b16 %v1188, %v1187
      %v1200 = vpack.c.b16 %v1190, %v1189
      %v1201 = vpack.c.b16 %v1192, %v1191
      %v1202 = vpack.c.b16 %v1194, %v1193
      %1211 = vmatprep.subr.bf16.mxu0 0
      %1212 = vmatpush1.bf16.msra.mxu0 %v1195
      %1213 = vmatprep.subr.bf16.mxu0 0
      %1214 = vmatpush1.bf16.msra.mxu0 %v1196
      %1215 = vmatprep.subr.bf16.mxu0 0
      %1216 = vmatpush1.bf16.msra.mxu0 %v1197
      %1217 = vmatprep.subr.bf16.mxu0 0
      %1218 = vmatpush1.bf16.msra.mxu0 %v1198
      %1219 = vmatprep.subr.bf16.mxu0 0
      %1220 = vmatpush1.bf16.msra.mxu0 %v1199
      %1221 = vmatprep.subr.bf16.mxu0 0
      %1222 = vmatpush1.bf16.msra.mxu0 %v1200
      %1223 = vmatprep.subr.bf16.mxu0 0
      %1224 = vmatpush1.bf16.msra.mxu0 %v1201
      %1225 = vmatprep.subr.bf16.mxu0 0
      %1226 = vmatpush1.bf16.msra.mxu0 %v1202
      %1227 = vmatprep.subr.bf16.mxu0 0
      %1228 = vmatpush1.bf16.msra.mxu0 0
      %1229 = vmatprep.subr.bf16.mxu0 0
      %1230 = vmatpush1.bf16.msra.mxu0 0
      %1231 = vmatprep.subr.bf16.mxu0 0
      %1232 = vmatpush1.bf16.msra.mxu0 0
      %1233 = vmatprep.subr.bf16.mxu0 0
      %1234 = vmatpush1.bf16.msra.mxu0 0
      %1235 = vmatprep.subr.bf16.mxu0 0
      %1236 = vmatpush1.bf16.msra.mxu0 0
      %1237 = vmatprep.subr.bf16.mxu0 0
      %1238 = vmatpush1.bf16.msra.mxu0 0
      %1239 = vmatprep.subr.bf16.mxu0 0
      %1240 = vmatpush1.bf16.msra.mxu0 0
      %1241 = vmatprep.subr.bf16.mxu0 0
      %1242 = vmatpush1.bf16.msra.mxu0 0
      %1243 = vmatprep.mubr.bf16.mxu0 0
      %1244 = vmatmul.mubr.bf16.gmra.mrb[0].mxu0 %v1159
      %v1245 = vpop.f32.mrb[0].mxu0
      %v1246 = vadd.f32 %v1149, %v1245
      %v1247 = vpop.f32.mrb[0].mxu0
      %v1248 = vpop.f32.mrb[0].mxu0
      %v1249 = vadd.f32 %v1149, %v1248
      %v1250 = vpop.f32.mrb[0].mxu0
      %1251 = vmatprep.mubr.bf16.mxu0 0
      %1252 = vmatmul.mubr.bf16.gmra.mrb[0].mxu0 %v1160
      %v1253 = vpop.f32.mrb[0].mxu0
      %v1254 = vadd.f32 %v1149, %v1253
      %v1255 = vpop.f32.mrb[0].mxu0
      %v1256 = vpop.f32.mrb[0].mxu0
      %v1257 = vadd.f32 %v1149, %v1256
      %v1258 = vpop.f32.mrb[0].mxu0
      %1259 = vdwg.mxu0
      %v1260 = vtanh.pop %v1246
      %v1261 = vtanh.pop %v1249
      %v1262 = vtanh.pop %v1254
      %v1263 = vtanh.pop %v1257
      %s1264 = scalar_lea.vmem [#allocation2], 224
      %1265 = vst [vmem:[%s1264] sm:$0xff] %v1260
      %1266 = vst [vmem:[%s1264 + $0x8] sm:$0xff] %v1261
      %1267 = vst [vmem:[%s1264 + $0x10] sm:$0xff] %v1262
      %1268 = vst [vmem:[%s1264 + $0x18] sm:$0xff] %v1263
      %v1269 = vld [vmem:[#allocation2] sm:$0xff]
      %v1270 = vld [vmem:[#allocation2 + $0x8] sm:$0xff]
      %v1271 = vld [vmem:[#allocation2 + $0x10] sm:$0xff]
      %v1272 = vld [vmem:[#allocation2 + $0x18] sm:$0xff]
      %v1273 = vld [vmem:[#allocation2 + $0x20] sm:$0xff]
      %v1274 = vld [vmem:[#allocation2 + $0x28] sm:$0xff]
      %v1275 = vld [vmem:[#allocation2 + $0x30] sm:$0xff]
      %v1276 = vld [vmem:[#allocation2 + $0x38] sm:$0xff]
      %v1277 = vld [vmem:[#allocation2 + $0x40] sm:$0xff]
      %v1278 = vld [vmem:[#allocation2 + $0x48] sm:$0xff]
      %v1279 = vld [vmem:[#allocation2 + $0x50] sm:$0xff]
      %v1280 = vld [vmem:[#allocation2 + $0x58] sm:$0xff]
      %v1281 = vld [vmem:[#allocation2 + $0x60] sm:$0xff]
      %v1282 = vld [vmem:[#allocation2 + $0x68] sm:$0xff]
      %v1283 = vld [vmem:[#allocation2 + $0x70] sm:$0xff]
      %v1284 = vld [vmem:[#allocation2 + $0x78] sm:$0xff]
      %v1285 = vld [vmem:[#allocation2 + $0x80] sm:$0xff]
      %v1286 = vld [vmem:[#allocation2 + $0x88] sm:$0xff]
      %v1287 = vld [vmem:[#allocation2 + $0x90] sm:$0xff]
      %v1288 = vld [vmem:[#allocation2 + $0x98] sm:$0xff]
      %v1289 = vld [vmem:[#allocation2 + $0xa0] sm:$0xff]
      %v1290 = vld [vmem:[#allocation2 + $0xa8] sm:$0xff]
      %v1291 = vld [vmem:[#allocation2 + $0xb0] sm:$0xff]
      %v1292 = vld [vmem:[#allocation2 + $0xb8] sm:$0xff]
      %v1293 = vld [vmem:[#allocation2 + $0xc0] sm:$0xff]
      %v1294 = vld [vmem:[#allocation2 + $0xc8] sm:$0xff]
      %v1295 = vld [vmem:[#allocation2 + $0xd0] sm:$0xff]
      %v1296 = vld [vmem:[#allocation2 + $0xd8] sm:$0xff]
      %v1297 = vld [vmem:[#allocation2 + $0xe0] sm:$0xff]
      %v1298 = vld [vmem:[#allocation2 + $0xe8] sm:$0xff]
      %v1299 = vld [vmem:[#allocation2 + $0xf0] sm:$0xff]
      %v1300 = vld [vmem:[#allocation2 + $0xf8] sm:$0xff]
      %v1301 = vld [vmem:[%s5] sm:$0x1]
      %1302 = vmatprep.subr.mxu0 0.0
      %1303 = vmatpush1.xpose.msra.mxu0 %v1269
      %1304 = vmatprep.subr.mxu0 0.0
      %1305 = vmatpush1.xpose.msra.mxu0 %v1270
      %1306 = vmatprep.subr.mxu0 0.0
      %1307 = vmatpush1.xpose.msra.mxu0 %v1271
      %1308 = vmatprep.subr.mxu0 0.0
      %1309 = vmatpush1.xpose.msra.mxu0 %v1272
      %1310 = vmatprep.subr.mxu0 0.0
      %1311 = vmatpush1.xpose.msra.mxu0 0.0
      %1312 = vmatprep.subr.mxu0 0.0
      %1313 = vmatpush1.xpose.msra.mxu0 0.0
      %1314 = vmatprep.subr.mxu0 0.0
      %1315 = vmatpush1.xpose.msra.mxu0 0.0
      %1316 = vmatprep.subr.mxu0 0.0
      %1317 = vmatpush1.xpose.msra.mxu0 0.0
      %1318 = vmatprep.subr.mxu0 0.0
      %1319 = vmatpush1.xpose.msra.mxu0 0.0
      %1320 = vmatprep.subr.mxu0 0.0
      %1321 = vmatpush1.xpose.msra.mxu0 0.0
      %1322 = vmatprep.subr.mxu0 0.0
      %1323 = vmatpush1.xpose.msra.mxu0 0.0
      %1324 = vmatprep.subr.mxu0 0.0
      %1325 = vmatpush1.xpose.msra.mxu0 0.0
      %1326 = vmatprep.subr.mxu0 0.0
      %1327 = vmatpush1.xpose.msra.mxu0 0.0
      %1328 = vmatprep.subr.mxu0 0.0
      %1329 = vmatpush1.xpose.msra.mxu0 0.0
      %1330 = vmatprep.subr.mxu0 0.0
      %1331 = vmatpush1.xpose.msra.mxu0 0.0
      %1332 = vmatprep.subr.mxu0 0.0
      %1333 = vmatpush1.xpose.msra.mxu0 0.0
      %1334 = vmatprep.subr.mxu0 0.0
      %1335 = vmatpush1.xpose.msra.mxu0 0.0
      %1336 = vmatprep.subr.mxu0 0.0
      %1337 = vmatpush1.xpose.msra.mxu0 0.0
      %1338 = vmatprep.subr.mxu0 0.0
      %1339 = vmatpush1.xpose.msra.mxu0 0.0
      %1340 = vmatprep.subr.mxu0 0.0
      %1341 = vmatpush1.xpose.msra.mxu0 0.0
      %1342 = vmatprep.subr.mxu0 0.0
      %1343 = vmatpush1.xpose.msra.mxu0 0.0
      %1344 = vmatprep.subr.mxu0 0.0
      %1345 = vmatpush1.xpose.msra.mxu0 0.0
      %1346 = vmatprep.subr.mxu0 0.0
      %1347 = vmatpush1.xpose.msra.mxu0 0.0
      %1348 = vmatprep.subr.mxu0 0.0
      %1349 = vmatpush1.xpose.msra.mxu0 0.0
      %1350 = vmatprep.subr.mxu0 0.0
      %1351 = vmatpush1.xpose.msra.mxu0 0.0
      %1352 = vmatprep.subr.mxu0 0.0
      %1353 = vmatpush1.xpose.msra.mxu0 0.0
      %1354 = vmatprep.subr.mxu0 0.0
      %1355 = vmatpush1.xpose.msra.mxu0 0.0
      %1356 = vmatprep.subr.mxu0 0.0
      %1357 = vmatpush1.xpose.msra.mxu0 0.0
      %1358 = vmatprep.subr.mxu0 0.0
      %1359 = vmatpush1.xpose.msra.mxu0 0.0
      %1360 = vmatprep.subr.mxu0 0.0
      %1361 = vmatpush1.xpose.msra.mxu0 0.0
      %1362 = vmatprep.subr.mxu0 0.0
      %1363 = vmatpush1.xpose.msra.mxu0 0.0
      %1364 = vmatprep.subr.mxu0 0.0
      %1365 = vmatpush1.xpose.msra.mxu0 0.0
      %1366 = vmatprep.mubr.f32.mxu0 0.0
      %1367 = vmatmul.mubr.f32.gmra.mrb[0].mxu0 %v1301
      %v1368 = vpop.f32.mrb[0].mxu0
      %v1369 = vadd.f32 0.0, %v1368
      %v1370 = vpop.f32.mrb[0].mxu0
      %1371 = vdwg.mxu0
      %1372 = vmatprep.subr.mxu0 0.0
      %1373 = vmatpush1.xpose.msra.mxu0 %v1273
      %1374 = vmatprep.subr.mxu0 0.0
      %1375 = vmatpush1.xpose.msra.mxu0 %v1274
      %1376 = vmatprep.subr.mxu0 0.0
      %1377 = vmatpush1.xpose.msra.mxu0 %v1275
      %1378 = vmatprep.subr.mxu0 0.0
      %1379 = vmatpush1.xpose.msra.mxu0 %v1276
      %1380 = vmatprep.subr.mxu0 0.0
      %1381 = vmatpush1.xpose.msra.mxu0 0.0
      %1382 = vmatprep.subr.mxu0 0.0
      %1383 = vmatpush1.xpose.msra.mxu0 0.0
      %1384 = vmatprep.subr.mxu0 0.0
      %1385 = vmatpush1.xpose.msra.mxu0 0.0
      %1386 = vmatprep.subr.mxu0 0.0
      %1387 = vmatpush1.xpose.msra.mxu0 0.0
      %1388 = vmatprep.subr.mxu0 0.0
      %1389 = vmatpush1.xpose.msra.mxu0 0.0
      %1390 = vmatprep.subr.mxu0 0.0
      %1391 = vmatpush1.xpose.msra.mxu0 0.0
      %1392 = vmatprep.subr.mxu0 0.0
      %1393 = vmatpush1.xpose.msra.mxu0 0.0
      %1394 = vmatprep.subr.mxu0 0.0
      %1395 = vmatpush1.xpose.msra.mxu0 0.0
      %1396 = vmatprep.subr.mxu0 0.0
      %1397 = vmatpush1.xpose.msra.mxu0 0.0
      %1398 = vmatprep.subr.mxu0 0.0
      %1399 = vmatpush1.xpose.msra.mxu0 0.0
      %1400 = vmatprep.subr.mxu0 0.0
      %1401 = vmatpush1.xpose.msra.mxu0 0.0
      %1402 = vmatprep.subr.mxu0 0.0
      %1403 = vmatpush1.xpose.msra.mxu0 0.0
      %1404 = vmatprep.subr.mxu0 0.0
      %1405 = vmatpush1.xpose.msra.mxu0 0.0
      %1406 = vmatprep.subr.mxu0 0.0
      %1407 = vmatpush1.xpose.msra.mxu0 0.0
      %1408 = vmatprep.subr.mxu0 0.0
      %1409 = vmatpush1.xpose.msra.mxu0 0.0
      %1410 = vmatprep.subr.mxu0 0.0
      %1411 = vmatpush1.xpose.msra.mxu0 0.0
      %1412 = vmatprep.subr.mxu0 0.0
      %1413 = vmatpush1.xpose.msra.mxu0 0.0
      %1414 = vmatprep.subr.mxu0 0.0
      %1415 = vmatpush1.xpose.msra.mxu0 0.0
      %1416 = vmatprep.subr.mxu0 0.0
      %1417 = vmatpush1.xpose.msra.mxu0 0.0
      %1418 = vmatprep.subr.mxu0 0.0
      %1419 = vmatpush1.xpose.msra.mxu0 0.0
      %1420 = vmatprep.subr.mxu0 0.0
      %1421 = vmatpush1.xpose.msra.mxu0 0.0
      %1422 = vmatprep.subr.mxu0 0.0
      %1423 = vmatpush1.xpose.msra.mxu0 0.0
      %1424 = vmatprep.subr.mxu0 0.0
      %1425 = vmatpush1.xpose.msra.mxu0 0.0
      %1426 = vmatprep.subr.mxu0 0.0
      %1427 = vmatpush1.xpose.msra.mxu0 0.0
      %1428 = vmatprep.subr.mxu0 0.0
      %1429 = vmatpush1.xpose.msra.mxu0 0.0
      %1430 = vmatprep.subr.mxu0 0.0
      %1431 = vmatpush1.xpose.msra.mxu0 0.0
      %1432 = vmatprep.subr.mxu0 0.0
      %1433 = vmatpush1.xpose.msra.mxu0 0.0
      %1434 = vmatprep.subr.mxu0 0.0
      %1435 = vmatpush1.xpose.msra.mxu0 0.0
      %1436 = vmatprep.mubr.f32.mxu0 0.0
      %1437 = vmatmul.mubr.f32.gmra.mrb[0].mxu0 %v1301
      %v1438 = vpop.f32.mrb[0].mxu0
      %v1439 = vadd.f32 0.0, %v1438
      %v1440 = vpop.f32.mrb[0].mxu0
      %1441 = vdwg.mxu0
      %1442 = vmatprep.subr.mxu0 0.0
      %1443 = vmatpush1.xpose.msra.mxu0 %v1277
      %1444 = vmatprep.subr.mxu0 0.0
      %1445 = vmatpush1.xpose.msra.mxu0 %v1278
      %1446 = vmatprep.subr.mxu0 0.0
      %1447 = vmatpush1.xpose.msra.mxu0 %v1279
      %1448 = vmatprep.subr.mxu0 0.0
      %1449 = vmatpush1.xpose.msra.mxu0 %v1280
      %1450 = vmatprep.subr.mxu0 0.0
      %1451 = vmatpush1.xpose.msra.mxu0 0.0
      %1452 = vmatprep.subr.mxu0 0.0
      %1453 = vmatpush1.xpose.msra.mxu0 0.0
      %1454 = vmatprep.subr.mxu0 0.0
      %1455 = vmatpush1.xpose.msra.mxu0 0.0
      %1456 = vmatprep.subr.mxu0 0.0
      %1457 = vmatpush1.xpose.msra.mxu0 0.0
      %1458 = vmatprep.subr.mxu0 0.0
      %1459 = vmatpush1.xpose.msra.mxu0 0.0
      %1460 = vmatprep.subr.mxu0 0.0
      %1461 = vmatpush1.xpose.msra.mxu0 0.0
      %1462 = vmatprep.subr.mxu0 0.0
      %1463 = vmatpush1.xpose.msra.mxu0 0.0
      %1464 = vmatprep.subr.mxu0 0.0
      %1465 = vmatpush1.xpose.msra.mxu0 0.0
      %1466 = vmatprep.subr.mxu0 0.0
      %1467 = vmatpush1.xpose.msra.mxu0 0.0
      %1468 = vmatprep.subr.mxu0 0.0
      %1469 = vmatpush1.xpose.msra.mxu0 0.0
      %1470 = vmatprep.subr.mxu0 0.0
      %1471 = vmatpush1.xpose.msra.mxu0 0.0
      %1472 = vmatprep.subr.mxu0 0.0
      %1473 = vmatpush1.xpose.msra.mxu0 0.0
      %1474 = vmatprep.subr.mxu0 0.0
      %1475 = vmatpush1.xpose.msra.mxu0 0.0
      %1476 = vmatprep.subr.mxu0 0.0
      %1477 = vmatpush1.xpose.msra.mxu0 0.0
      %1478 = vmatprep.subr.mxu0 0.0
      %1479 = vmatpush1.xpose.msra.mxu0 0.0
      %1480 = vmatprep.subr.mxu0 0.0
      %1481 = vmatpush1.xpose.msra.mxu0 0.0
      %1482 = vmatprep.subr.mxu0 0.0
      %1483 = vmatpush1.xpose.msra.mxu0 0.0
      %1484 = vmatprep.subr.mxu0 0.0
      %1485 = vmatpush1.xpose.msra.mxu0 0.0
      %1486 = vmatprep.subr.mxu0 0.0
      %1487 = vmatpush1.xpose.msra.mxu0 0.0
      %1488 = vmatprep.subr.mxu0 0.0
      %1489 = vmatpush1.xpose.msra.mxu0 0.0
      %1490 = vmatprep.subr.mxu0 0.0
      %1491 = vmatpush1.xpose.msra.mxu0 0.0
      %1492 = vmatprep.subr.mxu0 0.0
      %1493 = vmatpush1.xpose.msra.mxu0 0.0
      %1494 = vmatprep.subr.mxu0 0.0
      %1495 = vmatpush1.xpose.msra.mxu0 0.0
      %1496 = vmatprep.subr.mxu0 0.0
      %1497 = vmatpush1.xpose.msra.mxu0 0.0
      %1498 = vmatprep.subr.mxu0 0.0
      %1499 = vmatpush1.xpose.msra.mxu0 0.0
      %1500 = vmatprep.subr.mxu0 0.0
      %1501 = vmatpush1.xpose.msra.mxu0 0.0
      %1502 = vmatprep.subr.mxu0 0.0
      %1503 = vmatpush1.xpose.msra.mxu0 0.0
      %1504 = vmatprep.subr.mxu0 0.0
      %1505 = vmatpush1.xpose.msra.mxu0 0.0
      %1506 = vmatprep.mubr.f32.mxu0 0.0
      %1507 = vmatmul.mubr.f32.gmra.mrb[0].mxu0 %v1301
      %v1508 = vpop.f32.mrb[0].mxu0
      %v1509 = vadd.f32 0.0, %v1508
      %v1510 = vpop.f32.mrb[0].mxu0
      %1511 = vdwg.mxu0
      %1512 = vmatprep.subr.mxu0 0.0
      %1513 = vmatpush1.xpose.msra.mxu0 %v1281
      %1514 = vmatprep.subr.mxu0 0.0
      %1515 = vmatpush1.xpose.msra.mxu0 %v1282
      %1516 = vmatprep.subr.mxu0 0.0
      %1517 = vmatpush1.xpose.msra.mxu0 %v1283
      %1518 = vmatprep.subr.mxu0 0.0
      %1519 = vmatpush1.xpose.msra.mxu0 %v1284
      %1520 = vmatprep.subr.mxu0 0.0
      %1521 = vmatpush1.xpose.msra.mxu0 0.0
      %1522 = vmatprep.subr.mxu0 0.0
      %1523 = vmatpush1.xpose.msra.mxu0 0.0
      %1524 = vmatprep.subr.mxu0 0.0
      %1525 = vmatpush1.xpose.msra.mxu0 0.0
      %1526 = vmatprep.subr.mxu0 0.0
      %1527 = vmatpush1.xpose.msra.mxu0 0.0
      %1528 = vmatprep.subr.mxu0 0.0
      %1529 = vmatpush1.xpose.msra.mxu0 0.0
      %1530 = vmatprep.subr.mxu0 0.0
      %1531 = vmatpush1.xpose.msra.mxu0 0.0
      %1532 = vmatprep.subr.mxu0 0.0
      %1533 = vmatpush1.xpose.msra.mxu0 0.0
      %1534 = vmatprep.subr.mxu0 0.0
      %1535 = vmatpush1.xpose.msra.mxu0 0.0
      %1536 = vmatprep.subr.mxu0 0.0
      %1537 = vmatpush1.xpose.msra.mxu0 0.0
      %1538 = vmatprep.subr.mxu0 0.0
      %1539 = vmatpush1.xpose.msra.mxu0 0.0
      %1540 = vmatprep.subr.mxu0 0.0
      %1541 = vmatpush1.xpose.msra.mxu0 0.0
      %1542 = vmatprep.subr.mxu0 0.0
      %1543 = vmatpush1.xpose.msra.mxu0 0.0
      %1544 = vmatprep.subr.mxu0 0.0
      %1545 = vmatpush1.xpose.msra.mxu0 0.0
      %1546 = vmatprep.subr.mxu0 0.0
      %1547 = vmatpush1.xpose.msra.mxu0 0.0
      %1548 = vmatprep.subr.mxu0 0.0
      %1549 = vmatpush1.xpose.msra.mxu0 0.0
      %1550 = vmatprep.subr.mxu0 0.0
      %1551 = vmatpush1.xpose.msra.mxu0 0.0
      %1552 = vmatprep.subr.mxu0 0.0
      %1553 = vmatpush1.xpose.msra.mxu0 0.0
      %1554 = vmatprep.subr.mxu0 0.0
      %1555 = vmatpush1.xpose.msra.mxu0 0.0
      %1556 = vmatprep.subr.mxu0 0.0
      %1557 = vmatpush1.xpose.msra.mxu0 0.0
      %1558 = vmatprep.subr.mxu0 0.0
      %1559 = vmatpush1.xpose.msra.mxu0 0.0
      %1560 = vmatprep.subr.mxu0 0.0
      %1561 = vmatpush1.xpose.msra.mxu0 0.0
      %1562 = vmatprep.subr.mxu0 0.0
      %1563 = vmatpush1.xpose.msra.mxu0 0.0
      %1564 = vmatprep.subr.mxu0 0.0
      %1565 = vmatpush1.xpose.msra.mxu0 0.0
      %1566 = vmatprep.subr.mxu0 0.0
      %1567 = vmatpush1.xpose.msra.mxu0 0.0
      %1568 = vmatprep.subr.mxu0 0.0
      %1569 = vmatpush1.xpose.msra.mxu0 0.0
      %1570 = vmatprep.subr.mxu0 0.0
      %1571 = vmatpush1.xpose.msra.mxu0 0.0
      %1572 = vmatprep.subr.mxu0 0.0
      %1573 = vmatpush1.xpose.msra.mxu0 0.0
      %1574 = vmatprep.subr.mxu0 0.0
      %1575 = vmatpush1.xpose.msra.mxu0 0.0
      %1576 = vmatprep.mubr.f32.mxu0 0.0
      %1577 = vmatmul.mubr.f32.gmra.mrb[0].mxu0 %v1301
      %v1578 = vpop.f32.mrb[0].mxu0
      %v1579 = vadd.f32 0.0, %v1578
      %v1580 = vpop.f32.mrb[0].mxu0
      %1581 = vdwg.mxu0
      %1582 = vmatprep.subr.mxu0 0.0
      %1583 = vmatpush1.xpose.msra.mxu0 %v1285
      %1584 = vmatprep.subr.mxu0 0.0
      %1585 = vmatpush1.xpose.msra.mxu0 %v1286
      %1586 = vmatprep.subr.mxu0 0.0
      %1587 = vmatpush1.xpose.msra.mxu0 %v1287
      %1588 = vmatprep.subr.mxu0 0.0
      %1589 = vmatpush1.xpose.msra.mxu0 %v1288
      %1590 = vmatprep.subr.mxu0 0.0
      %1591 = vmatpush1.xpose.msra.mxu0 0.0
      %1592 = vmatprep.subr.mxu0 0.0
      %1593 = vmatpush1.xpose.msra.mxu0 0.0
      %1594 = vmatprep.subr.mxu0 0.0
      %1595 = vmatpush1.xpose.msra.mxu0 0.0
      %1596 = vmatprep.subr.mxu0 0.0
      %1597 = vmatpush1.xpose.msra.mxu0 0.0
      %1598 = vmatprep.subr.mxu0 0.0
      %1599 = vmatpush1.xpose.msra.mxu0 0.0
      %1600 = vmatprep.subr.mxu0 0.0
      %1601 = vmatpush1.xpose.msra.mxu0 0.0
      %1602 = vmatprep.subr.mxu0 0.0
      %1603 = vmatpush1.xpose.msra.mxu0 0.0
      %1604 = vmatprep.subr.mxu0 0.0
      %1605 = vmatpush1.xpose.msra.mxu0 0.0
      %1606 = vmatprep.subr.mxu0 0.0
      %1607 = vmatpush1.xpose.msra.mxu0 0.0
      %1608 = vmatprep.subr.mxu0 0.0
      %1609 = vmatpush1.xpose.msra.mxu0 0.0
      %1610 = vmatprep.subr.mxu0 0.0
      %1611 = vmatpush1.xpose.msra.mxu0 0.0
      %1612 = vmatprep.subr.mxu0 0.0
      %1613 = vmatpush1.xpose.msra.mxu0 0.0
      %1614 = vmatprep.subr.mxu0 0.0
      %1615 = vmatpush1.xpose.msra.mxu0 0.0
      %1616 = vmatprep.subr.mxu0 0.0
      %1617 = vmatpush1.xpose.msra.mxu0 0.0
      %1618 = vmatprep.subr.mxu0 0.0
      %1619 = vmatpush1.xpose.msra.mxu0 0.0
      %1620 = vmatprep.subr.mxu0 0.0
      %1621 = vmatpush1.xpose.msra.mxu0 0.0
      %1622 = vmatprep.subr.mxu0 0.0
      %1623 = vmatpush1.xpose.msra.mxu0 0.0
      %1624 = vmatprep.subr.mxu0 0.0
      %1625 = vmatpush1.xpose.msra.mxu0 0.0
      %1626 = vmatprep.subr.mxu0 0.0
      %1627 = vmatpush1.xpose.msra.mxu0 0.0
      %1628 = vmatprep.subr.mxu0 0.0
      %1629 = vmatpush1.xpose.msra.mxu0 0.0
      %1630 = vmatprep.subr.mxu0 0.0
      %1631 = vmatpush1.xpose.msra.mxu0 0.0
      %1632 = vmatprep.subr.mxu0 0.0
      %1633 = vmatpush1.xpose.msra.mxu0 0.0
      %1634 = vmatprep.subr.mxu0 0.0
      %1635 = vmatpush1.xpose.msra.mxu0 0.0
      %1636 = vmatprep.subr.mxu0 0.0
      %1637 = vmatpush1.xpose.msra.mxu0 0.0
      %1638 = vmatprep.subr.mxu0 0.0
      %1639 = vmatpush1.xpose.msra.mxu0 0.0
      %1640 = vmatprep.subr.mxu0 0.0
      %1641 = vmatpush1.xpose.msra.mxu0 0.0
      %1642 = vmatprep.subr.mxu0 0.0
      %1643 = vmatpush1.xpose.msra.mxu0 0.0
      %1644 = vmatprep.subr.mxu0 0.0
      %1645 = vmatpush1.xpose.msra.mxu0 0.0
      %1646 = vmatprep.mubr.f32.mxu0 0.0
      %1647 = vmatmul.mubr.f32.gmra.mrb[0].mxu0 %v1301
      %v1648 = vpop.f32.mrb[0].mxu0
      %v1649 = vadd.f32 0.0, %v1648
      %v1650 = vpop.f32.mrb[0].mxu0
      %1651 = vdwg.mxu0
      %1652 = vmatprep.subr.mxu0 0.0
      %1653 = vmatpush1.xpose.msra.mxu0 %v1289
      %1654 = vmatprep.subr.mxu0 0.0
      %1655 = vmatpush1.xpose.msra.mxu0 %v1290
      %1656 = vmatprep.subr.mxu0 0.0
      %1657 = vmatpush1.xpose.msra.mxu0 %v1291
      %1658 = vmatprep.subr.mxu0 0.0
      %1659 = vmatpush1.xpose.msra.mxu0 %v1292
      %1660 = vmatprep.subr.mxu0 0.0
      %1661 = vmatpush1.xpose.msra.mxu0 0.0
      %1662 = vmatprep.subr.mxu0 0.0
      %1663 = vmatpush1.xpose.msra.mxu0 0.0
      %1664 = vmatprep.subr.mxu0 0.0
      %1665 = vmatpush1.xpose.msra.mxu0 0.0
      %1666 = vmatprep.subr.mxu0 0.0
      %1667 = vmatpush1.xpose.msra.mxu0 0.0
      %1668 = vmatprep.subr.mxu0 0.0
      %1669 = vmatpush1.xpose.msra.mxu0 0.0
      %1670 = vmatprep.subr.mxu0 0.0
      %1671 = vmatpush1.xpose.msra.mxu0 0.0
      %1672 = vmatprep.subr.mxu0 0.0
      %1673 = vmatpush1.xpose.msra.mxu0 0.0
      %1674 = vmatprep.subr.mxu0 0.0
      %1675 = vmatpush1.xpose.msra.mxu0 0.0
      %1676 = vmatprep.subr.mxu0 0.0
      %1677 = vmatpush1.xpose.msra.mxu0 0.0
      %1678 = vmatprep.subr.mxu0 0.0
      %1679 = vmatpush1.xpose.msra.mxu0 0.0
      %1680 = vmatprep.subr.mxu0 0.0
      %1681 = vmatpush1.xpose.msra.mxu0 0.0
      %1682 = vmatprep.subr.mxu0 0.0
      %1683 = vmatpush1.xpose.msra.mxu0 0.0
      %1684 = vmatprep.subr.mxu0 0.0
      %1685 = vmatpush1.xpose.msra.mxu0 0.0
      %1686 = vmatprep.subr.mxu0 0.0
      %1687 = vmatpush1.xpose.msra.mxu0 0.0
      %1688 = vmatprep.subr.mxu0 0.0
      %1689 = vmatpush1.xpose.msra.mxu0 0.0
      %1690 = vmatprep.subr.mxu0 0.0
      %1691 = vmatpush1.xpose.msra.mxu0 0.0
      %1692 = vmatprep.subr.mxu0 0.0
      %1693 = vmatpush1.xpose.msra.mxu0 0.0
      %1694 = vmatprep.subr.mxu0 0.0
      %1695 = vmatpush1.xpose.msra.mxu0 0.0
      %1696 = vmatprep.subr.mxu0 0.0
      %1697 = vmatpush1.xpose.msra.mxu0 0.0
      %1698 = vmatprep.subr.mxu0 0.0
      %1699 = vmatpush1.xpose.msra.mxu0 0.0
      %1700 = vmatprep.subr.mxu0 0.0
      %1701 = vmatpush1.xpose.msra.mxu0 0.0
      %1702 = vmatprep.subr.mxu0 0.0
      %1703 = vmatpush1.xpose.msra.mxu0 0.0
      %1704 = vmatprep.subr.mxu0 0.0
      %1705 = vmatpush1.xpose.msra.mxu0 0.0
      %1706 = vmatprep.subr.mxu0 0.0
      %1707 = vmatpush1.xpose.msra.mxu0 0.0
      %1708 = vmatprep.subr.mxu0 0.0
      %1709 = vmatpush1.xpose.msra.mxu0 0.0
      %1710 = vmatprep.subr.mxu0 0.0
      %1711 = vmatpush1.xpose.msra.mxu0 0.0
      %1712 = vmatprep.subr.mxu0 0.0
      %1713 = vmatpush1.xpose.msra.mxu0 0.0
      %1714 = vmatprep.subr.mxu0 0.0
      %1715 = vmatpush1.xpose.msra.mxu0 0.0
      %1716 = vmatprep.mubr.f32.mxu0 0.0
      %1717 = vmatmul.mubr.f32.gmra.mrb[0].mxu0 %v1301
      %v1718 = vpop.f32.mrb[0].mxu0
      %v1719 = vadd.f32 0.0, %v1718
      %v1720 = vpop.f32.mrb[0].mxu0
      %1721 = vdwg.mxu0
      %1722 = vmatprep.subr.mxu0 0.0
      %1723 = vmatpush1.xpose.msra.mxu0 %v1293
      %1724 = vmatprep.subr.mxu0 0.0
      %1725 = vmatpush1.xpose.msra.mxu0 %v1294
      %1726 = vmatprep.subr.mxu0 0.0
      %1727 = vmatpush1.xpose.msra.mxu0 %v1295
      %1728 = vmatprep.subr.mxu0 0.0
      %1729 = vmatpush1.xpose.msra.mxu0 %v1296
      %1730 = vmatprep.subr.mxu0 0.0
      %1731 = vmatpush1.xpose.msra.mxu0 0.0
      %1732 = vmatprep.subr.mxu0 0.0
      %1733 = vmatpush1.xpose.msra.mxu0 0.0
      %1734 = vmatprep.subr.mxu0 0.0
      %1735 = vmatpush1.xpose.msra.mxu0 0.0
      %1736 = vmatprep.subr.mxu0 0.0
      %1737 = vmatpush1.xpose.msra.mxu0 0.0
      %1738 = vmatprep.subr.mxu0 0.0
      %1739 = vmatpush1.xpose.msra.mxu0 0.0
      %1740 = vmatprep.subr.mxu0 0.0
      %1741 = vmatpush1.xpose.msra.mxu0 0.0
      %1742 = vmatprep.subr.mxu0 0.0
      %1743 = vmatpush1.xpose.msra.mxu0 0.0
      %1744 = vmatprep.subr.mxu0 0.0
      %1745 = vmatpush1.xpose.msra.mxu0 0.0
      %1746 = vmatprep.subr.mxu0 0.0
      %1747 = vmatpush1.xpose.msra.mxu0 0.0
      %1748 = vmatprep.subr.mxu0 0.0
      %1749 = vmatpush1.xpose.msra.mxu0 0.0
      %1750 = vmatprep.subr.mxu0 0.0
      %1751 = vmatpush1.xpose.msra.mxu0 0.0
      %1752 = vmatprep.subr.mxu0 0.0
      %1753 = vmatpush1.xpose.msra.mxu0 0.0
      %1754 = vmatprep.subr.mxu0 0.0
      %1755 = vmatpush1.xpose.msra.mxu0 0.0
      %1756 = vmatprep.subr.mxu0 0.0
      %1757 = vmatpush1.xpose.msra.mxu0 0.0
      %1758 = vmatprep.subr.mxu0 0.0
      %1759 = vmatpush1.xpose.msra.mxu0 0.0
      %1760 = vmatprep.subr.mxu0 0.0
      %1761 = vmatpush1.xpose.msra.mxu0 0.0
      %1762 = vmatprep.subr.mxu0 0.0
      %1763 = vmatpush1.xpose.msra.mxu0 0.0
      %1764 = vmatprep.subr.mxu0 0.0
      %1765 = vmatpush1.xpose.msra.mxu0 0.0
      %1766 = vmatprep.subr.mxu0 0.0
      %1767 = vmatpush1.xpose.msra.mxu0 0.0
      %1768 = vmatprep.subr.mxu0 0.0
      %1769 = vmatpush1.xpose.msra.mxu0 0.0
      %1770 = vmatprep.subr.mxu0 0.0
      %1771 = vmatpush1.xpose.msra.mxu0 0.0
      %1772 = vmatprep.subr.mxu0 0.0
      %1773 = vmatpush1.xpose.msra.mxu0 0.0
      %1774 = vmatprep.subr.mxu0 0.0
      %1775 = vmatpush1.xpose.msra.mxu0 0.0
      %1776 = vmatprep.subr.mxu0 0.0
      %1777 = vmatpush1.xpose.msra.mxu0 0.0
      %1778 = vmatprep.subr.mxu0 0.0
      %1779 = vmatpush1.xpose.msra.mxu0 0.0
      %1780 = vmatprep.subr.mxu0 0.0
      %1781 = vmatpush1.xpose.msra.mxu0 0.0
      %1782 = vmatprep.subr.mxu0 0.0
      %1783 = vmatpush1.xpose.msra.mxu0 0.0
      %1784 = vmatprep.subr.mxu0 0.0
      %1785 = vmatpush1.xpose.msra.mxu0 0.0
      %1786 = vmatprep.mubr.f32.mxu0 0.0
      %1787 = vmatmul.mubr.f32.gmra.mrb[0].mxu0 %v1301
      %v1788 = vpop.f32.mrb[0].mxu0
      %v1789 = vadd.f32 0.0, %v1788
      %v1790 = vpop.f32.mrb[0].mxu0
      %1791 = vdwg.mxu0
      %1792 = vmatprep.subr.mxu0 0.0
      %1793 = vmatpush1.xpose.msra.mxu0 %v1297
      %1794 = vmatprep.subr.mxu0 0.0
      %1795 = vmatpush1.xpose.msra.mxu0 %v1298
      %1796 = vmatprep.subr.mxu0 0.0
      %1797 = vmatpush1.xpose.msra.mxu0 %v1299
      %1798 = vmatprep.subr.mxu0 0.0
      %1799 = vmatpush1.xpose.msra.mxu0 %v1300
      %1800 = vmatprep.subr.mxu0 0.0
      %1801 = vmatpush1.xpose.msra.mxu0 0.0
      %1802 = vmatprep.subr.mxu0 0.0
      %1803 = vmatpush1.xpose.msra.mxu0 0.0
      %1804 = vmatprep.subr.mxu0 0.0
      %1805 = vmatpush1.xpose.msra.mxu0 0.0
      %1806 = vmatprep.subr.mxu0 0.0
      %1807 = vmatpush1.xpose.msra.mxu0 0.0
      %1808 = vmatprep.subr.mxu0 0.0
      %1809 = vmatpush1.xpose.msra.mxu0 0.0
      %1810 = vmatprep.subr.mxu0 0.0
      %1811 = vmatpush1.xpose.msra.mxu0 0.0
      %1812 = vmatprep.subr.mxu0 0.0
      %1813 = vmatpush1.xpose.msra.mxu0 0.0
      %1814 = vmatprep.subr.mxu0 0.0
      %1815 = vmatpush1.xpose.msra.mxu0 0.0
      %1816 = vmatprep.subr.mxu0 0.0
      %1817 = vmatpush1.xpose.msra.mxu0 0.0
      %1818 = vmatprep.subr.mxu0 0.0
      %1819 = vmatpush1.xpose.msra.mxu0 0.0
      %1820 = vmatprep.subr.mxu0 0.0
      %1821 = vmatpush1.xpose.msra.mxu0 0.0
      %1822 = vmatprep.subr.mxu0 0.0
      %1823 = vmatpush1.xpose.msra.mxu0 0.0
      %1824 = vmatprep.subr.mxu0 0.0
      %1825 = vmatpush1.xpose.msra.mxu0 0.0
      %1826 = vmatprep.subr.mxu0 0.0
      %1827 = vmatpush1.xpose.msra.mxu0 0.0
      %1828 = vmatprep.subr.mxu0 0.0
      %1829 = vmatpush1.xpose.msra.mxu0 0.0
      %1830 = vmatprep.subr.mxu0 0.0
      %1831 = vmatpush1.xpose.msra.mxu0 0.0
      %1832 = vmatprep.subr.mxu0 0.0
      %1833 = vmatpush1.xpose.msra.mxu0 0.0
      %1834 = vmatprep.subr.mxu0 0.0
      %1835 = vmatpush1.xpose.msra.mxu0 0.0
      %1836 = vmatprep.subr.mxu0 0.0
      %1837 = vmatpush1.xpose.msra.mxu0 0.0
      %1838 = vmatprep.subr.mxu0 0.0
      %1839 = vmatpush1.xpose.msra.mxu0 0.0
      %1840 = vmatprep.subr.mxu0 0.0
      %1841 = vmatpush1.xpose.msra.mxu0 0.0
      %1842 = vmatprep.subr.mxu0 0.0
      %1843 = vmatpush1.xpose.msra.mxu0 0.0
      %1844 = vmatprep.subr.mxu0 0.0
      %1845 = vmatpush1.xpose.msra.mxu0 0.0
      %1846 = vmatprep.subr.mxu0 0.0
      %1847 = vmatpush1.xpose.msra.mxu0 0.0
      %1848 = vmatprep.subr.mxu0 0.0
      %1849 = vmatpush1.xpose.msra.mxu0 0.0
      %1850 = vmatprep.subr.mxu0 0.0
      %1851 = vmatpush1.xpose.msra.mxu0 0.0
      %1852 = vmatprep.subr.mxu0 0.0
      %1853 = vmatpush1.xpose.msra.mxu0 0.0
      %1854 = vmatprep.subr.mxu0 0.0
      %1855 = vmatpush1.xpose.msra.mxu0 0.0
      %1856 = vmatprep.mubr.f32.mxu0 0.0
      %1857 = vmatmul.mubr.f32.gmra.mrb[0].mxu0 %v1301
      %v1858 = vpop.f32.mrb[0].mxu0
      %v1859 = vadd.f32 0.0, %v1858
      %v1860 = vpop.f32.mrb[0].mxu0
      %1861 = vdwg.mxu0
      %s1862 = smul.u32 0, 32
      %v1863 = vlaneseq
      %v1864 = vand.u32 %v1863, 127
      %v1865 = vstv %s1862
      %v1866 = vadd.s32 %v1865, %v1864
      %v1867 = vld [vmem:[%s1] sm:$0x1]
      %v1868 = vld [vmem:[%s1 + $0x1] sm:$0x1]
      %v1869 = vld [vmem:[%s1 + $0x2] sm:$0x1]
      %v1870 = vld [vmem:[%s1 + $0x3] sm:$0x1]
      %v1871 = vld [vmem:[%s1 + $0x4] sm:$0x1]
      %v1872 = vld [vmem:[%s1 + $0x5] sm:$0x1]
      %v1873 = vld [vmem:[%s1 + $0x6] sm:$0x1]
      %v1874 = vld [vmem:[%s1 + $0x7] sm:$0x1]
      %1875 = vset.pattern.permute.xlu0 0
      %1876 = vperm.xlu0 %1875, %v1867
      %v1877 = vpop.permute.xlu0 %1876
      %v1878 = vlaneseq
      %v1879 = vshrl.u32 %v1878, 7
      %v1880 = vsub.s32 0, %v1879
      %v1881 = vrot.slane %v1877, %v1880
      %1882 = vset.pattern.permute.xlu0 0
      %1883 = vperm.xlu0 %1882, %v1868
      %v1884 = vpop.permute.xlu0 %1883
      %v1885 = vlaneseq
      %v1886 = vshrl.u32 %v1885, 7
      %v1887 = vsub.s32 0, %v1886
      %v1888 = vrot.slane %v1884, %v1887
      %1889 = vset.pattern.permute.xlu0 0
      %1890 = vperm.xlu0 %1889, %v1869
      %v1891 = vpop.permute.xlu0 %1890
      %v1892 = vlaneseq
      %v1893 = vshrl.u32 %v1892, 7
      %v1894 = vsub.s32 0, %v1893
      %v1895 = vrot.slane %v1891, %v1894
      %1896 = vset.pattern.permute.xlu0 0
      %1897 = vperm.xlu0 %1896, %v1870
      %v1898 = vpop.permute.xlu0 %1897
      %v1899 = vlaneseq
      %v1900 = vshrl.u32 %v1899, 7
      %v1901 = vsub.s32 0, %v1900
      %v1902 = vrot.slane %v1898, %v1901
      %1903 = vset.pattern.permute.xlu0 0
      %1904 = vperm.xlu0 %1903, %v1871
      %v1905 = vpop.permute.xlu0 %1904
      %v1906 = vlaneseq
      %v1907 = vshrl.u32 %v1906, 7
      %v1908 = vsub.s32 0, %v1907
      %v1909 = vrot.slane %v1905, %v1908
      %1910 = vset.pattern.permute.xlu0 0
      %1911 = vperm.xlu0 %1910, %v1872
      %v1912 = vpop.permute.xlu0 %1911
      %v1913 = vlaneseq
      %v1914 = vshrl.u32 %v1913, 7
      %v1915 = vsub.s32 0, %v1914
      %v1916 = vrot.slane %v1912, %v1915
      %1917 = vset.pattern.permute.xlu0 0
      %1918 = vperm.xlu0 %1917, %v1873
      %v1919 = vpop.permute.xlu0 %1918
      %v1920 = vlaneseq
      %v1921 = vshrl.u32 %v1920, 7
      %v1922 = vsub.s32 0, %v1921
      %v1923 = vrot.slane %v1919, %v1922
      %1924 = vset.pattern.permute.xlu0 0
      %1925 = vperm.xlu0 %1924, %v1874
      %v1926 = vpop.permute.xlu0 %1925
      %v1927 = vlaneseq
      %v1928 = vshrl.u32 %v1927, 7
      %v1929 = vsub.s32 0, %v1928
      %v1930 = vrot.slane %v1926, %v1929
      %vm1931 = vcmp.lt.s32.totalorder %v1866, %v1881
      %vm1932 = vcmp.lt.s32.totalorder %v1866, %v1888
      %vm1933 = vcmp.lt.s32.totalorder %v1866, %v1895
      %vm1934 = vcmp.lt.s32.totalorder %v1866, %v1902
      %vm1935 = vcmp.lt.s32.totalorder %v1866, %v1909
      %vm1936 = vcmp.lt.s32.totalorder %v1866, %v1916
      %vm1937 = vcmp.lt.s32.totalorder %v1866, %v1923
      %vm1938 = vcmp.lt.s32.totalorder %v1866, %v1930
      %v1939 = vsel %vm1931, %v1369, -1e+30
      %v1940 = vsel %vm1932, %v1439, -1e+30
      %v1941 = vsel %vm1933, %v1509, -1e+30
      %v1942 = vsel %vm1934, %v1579, -1e+30
      %v1943 = vsel %vm1935, %v1649, -1e+30
      %v1944 = vsel %vm1936, %v1719, -1e+30
      %v1945 = vsel %vm1937, %v1789, -1e+30
      %v1946 = vsel %vm1938, %v1859, -1e+30
      %v1947 = vld [vmem:[#allocation3] sm:$0x1]
      %v1948 = vld [vmem:[#allocation3 + $0x1] sm:$0x1]
      %v1949 = vld [vmem:[#allocation3 + $0x2] sm:$0x1]
      %v1950 = vld [vmem:[#allocation3 + $0x3] sm:$0x1]
      %v1951 = vld [vmem:[#allocation3 + $0x4] sm:$0x1]
      %v1952 = vld [vmem:[#allocation3 + $0x5] sm:$0x1]
      %v1953 = vld [vmem:[#allocation3 + $0x6] sm:$0x1]
      %v1954 = vld [vmem:[#allocation3 + $0x7] sm:$0x1]
      %vm1955 = vcmask 253952
      %v1956 = vsel %vm1955, %v1939, -inf
      %1957 = vmax.xlane.f32.xlu0 %v1956
      %v1958 = vpop.xlane.xlu0 %1957
      %v1959 = vsel %vm1955, %v1940, -inf
      %1960 = vmax.xlane.f32.xlu0 %v1959
      %v1961 = vpop.xlane.xlu0 %1960
      %v1962 = vsel %vm1955, %v1941, -inf
      %1963 = vmax.xlane.f32.xlu0 %v1962
      %v1964 = vpop.xlane.xlu0 %1963
      %v1965 = vsel %vm1955, %v1942, -inf
      %1966 = vmax.xlane.f32.xlu0 %v1965
      %v1967 = vpop.xlane.xlu0 %1966
      %v1968 = vsel %vm1955, %v1943, -inf
      %1969 = vmax.xlane.f32.xlu0 %v1968
      %v1970 = vpop.xlane.xlu0 %1969
      %v1971 = vsel %vm1955, %v1944, -inf
      %1972 = vmax.xlane.f32.xlu0 %v1971
      %v1973 = vpop.xlane.xlu0 %1972
      %v1974 = vsel %vm1955, %v1945, -inf
      %1975 = vmax.xlane.f32.xlu0 %v1974
      %v1976 = vpop.xlane.xlu0 %1975
      %v1977 = vsel %vm1955, %v1946, -inf
      %1978 = vmax.xlane.f32.xlu0 %v1977
      %v1979 = vpop.xlane.xlu0 %1978
      %v1980 = vmax.f32 %v1947, %v1958
      %v1981 = vmax.f32 %v1948, %v1961
      %v1982 = vmax.f32 %v1949, %v1964
      %v1983 = vmax.f32 %v1950, %v1967
      %v1984 = vmax.f32 %v1951, %v1970
      %v1985 = vmax.f32 %v1952, %v1973
      %v1986 = vmax.f32 %v1953, %v1976
      %v1987 = vmax.f32 %v1954, %v1979
      %v1988 = vsub.f32 %v1947, %v1980
      %v1989 = vsub.f32 %v1948, %v1981
      %v1990 = vsub.f32 %v1949, %v1982
      %v1991 = vsub.f32 %v1950, %v1983
      %v1992 = vsub.f32 %v1951, %v1984
      %v1993 = vsub.f32 %v1952, %v1985
      %v1994 = vsub.f32 %v1953, %v1986
      %v1995 = vsub.f32 %v1954, %v1987
      %v1996 = vmul.f32 %v1988, 1.442695
      %v1997 = vpow.pop %v1996
      %v1998 = vmul.f32 %v1989, 1.442695
      %v1999 = vpow.pop %v1998
      %v2000 = vmul.f32 %v1990, 1.442695
      %v2001 = vpow.pop %v2000
      %v2002 = vmul.f32 %v1991, 1.442695
      %v2003 = vpow.pop %v2002
      %v2004 = vmul.f32 %v1992, 1.442695
      %v2005 = vpow.pop %v2004
      %v2006 = vmul.f32 %v1993, 1.442695
      %v2007 = vpow.pop %v2006
      %v2008 = vmul.f32 %v1994, 1.442695
      %v2009 = vpow.pop %v2008
      %v2010 = vmul.f32 %v1995, 1.442695
      %v2011 = vpow.pop %v2010
      %2013 = vset.pattern.permute.xlu0 0
      %2014 = vperm.xlu0 %2013, %v1980
      %v2015 = vpop.permute.xlu0 %2014
      %v2017 = vlaneseq
      %v2018 = vshrl.u32 %v2017, 7
      %v2019 = vsub.s32 0, %v2018
      %v2020 = vrot.slane %v2015, %v2019
      %2022 = vset.pattern.permute.xlu0 0
      %2023 = vperm.xlu0 %2022, %v1981
      %v2024 = vpop.permute.xlu0 %2023
      %v2026 = vlaneseq
      %v2027 = vshrl.u32 %v2026, 7
      %v2028 = vsub.s32 0, %v2027
      %v2029 = vrot.slane %v2024, %v2028
      %2031 = vset.pattern.permute.xlu0 0
      %2032 = vperm.xlu0 %2031, %v1982
      %v2033 = vpop.permute.xlu0 %2032
      %v2035 = vlaneseq
      %v2036 = vshrl.u32 %v2035, 7
      %v2037 = vsub.s32 0, %v2036
      %v2038 = vrot.slane %v2033, %v2037
      %2040 = vset.pattern.permute.xlu0 0
      %2041 = vperm.xlu0 %2040, %v1983
      %v2042 = vpop.permute.xlu0 %2041
      %v2044 = vlaneseq
      %v2045 = vshrl.u32 %v2044, 7
      %v2046 = vsub.s32 0, %v2045
      %v2047 = vrot.slane %v2042, %v2046
      %2049 = vset.pattern.permute.xlu0 0
      %2050 = vperm.xlu0 %2049, %v1984
      %v2051 = vpop.permute.xlu0 %2050
      %v2053 = vlaneseq
      %v2054 = vshrl.u32 %v2053, 7
      %v2055 = vsub.s32 0, %v2054
      %v2056 = vrot.slane %v2051, %v2055
      %2058 = vset.pattern.permute.xlu0 0
      %2059 = vperm.xlu0 %2058, %v1985
      %v2060 = vpop.permute.xlu0 %2059
      %v2062 = vlaneseq
      %v2063 = vshrl.u32 %v2062, 7
      %v2064 = vsub.s32 0, %v2063
      %v2065 = vrot.slane %v2060, %v2064
      %2067 = vset.pattern.permute.xlu0 0
      %2068 = vperm.xlu0 %2067, %v1986
      %v2069 = vpop.permute.xlu0 %2068
      %v2071 = vlaneseq
      %v2072 = vshrl.u32 %v2071, 7
      %v2073 = vsub.s32 0, %v2072
      %v2074 = vrot.slane %v2069, %v2073
      %2076 = vset.pattern.permute.xlu0 0
      %2077 = vperm.xlu0 %2076, %v1987
      %v2078 = vpop.permute.xlu0 %2077
      %v2080 = vlaneseq
      %v2081 = vshrl.u32 %v2080, 7
      %v2082 = vsub.s32 0, %v2081
      %v2083 = vrot.slane %v2078, %v2082
      %v2084 = vsub.f32 %v1939, %v2020
      %v2085 = vsub.f32 %v1940, %v2029
      %v2086 = vsub.f32 %v1941, %v2038
      %v2087 = vsub.f32 %v1942, %v2047
      %v2088 = vsub.f32 %v1943, %v2056
      %v2089 = vsub.f32 %v1944, %v2065
      %v2090 = vsub.f32 %v1945, %v2074
      %v2091 = vsub.f32 %v1946, %v2083
      %v2092 = vmul.f32 %v2084, 1.442695
      %v2093 = vpow.pop %v2092
      %v2094 = vmul.f32 %v2085, 1.442695
      %v2095 = vpow.pop %v2094
      %v2096 = vmul.f32 %v2086, 1.442695
      %v2097 = vpow.pop %v2096
      %v2098 = vmul.f32 %v2087, 1.442695
      %v2099 = vpow.pop %v2098
      %v2100 = vmul.f32 %v2088, 1.442695
      %v2101 = vpow.pop %v2100
      %v2102 = vmul.f32 %v2089, 1.442695
      %v2103 = vpow.pop %v2102
      %v2104 = vmul.f32 %v2090, 1.442695
      %v2105 = vpow.pop %v2104
      %v2106 = vmul.f32 %v2091, 1.442695
      %v2107 = vpow.pop %v2106
      %v2108 = vld [vmem:[#allocation4] sm:$0x1]
      %v2109 = vld [vmem:[#allocation4 + $0x1] sm:$0x1]
      %v2110 = vld [vmem:[#allocation4 + $0x2] sm:$0x1]
      %v2111 = vld [vmem:[#allocation4 + $0x3] sm:$0x1]
      %v2112 = vld [vmem:[#allocation4 + $0x4] sm:$0x1]
      %v2113 = vld [vmem:[#allocation4 + $0x5] sm:$0x1]
      %v2114 = vld [vmem:[#allocation4 + $0x6] sm:$0x1]
      %v2115 = vld [vmem:[#allocation4 + $0x7] sm:$0x1]
      %v2116 = vmul.f32 %v1997, %v2108
      %v2117 = vmul.f32 %v1999, %v2109
      %v2118 = vmul.f32 %v2001, %v2110
      %v2119 = vmul.f32 %v2003, %v2111
      %v2120 = vmul.f32 %v2005, %v2112
      %v2121 = vmul.f32 %v2007, %v2113
      %v2122 = vmul.f32 %v2009, %v2114
      %v2123 = vmul.f32 %v2011, %v2115
      %v2124 = vsel %vm1955, %v2093, 0.0
      %2125 = vadd.xlane.f32.xlu0 %v2124
      %v2126 = vpop.xlane.xlu0 %2125
      %v2127 = vsel %vm1955, %v2095, 0.0
      %2128 = vadd.xlane.f32.xlu0 %v2127
      %v2129 = vpop.xlane.xlu0 %2128
      %v2130 = vsel %vm1955, %v2097, 0.0
      %2131 = vadd.xlane.f32.xlu0 %v2130
      %v2132 = vpop.xlane.xlu0 %2131
      %v2133 = vsel %vm1955, %v2099, 0.0
      %2134 = vadd.xlane.f32.xlu0 %v2133
      %v2135 = vpop.xlane.xlu0 %2134
      %v2136 = vsel %vm1955, %v2101, 0.0
      %2137 = vadd.xlane.f32.xlu0 %v2136
      %v2138 = vpop.xlane.xlu0 %2137
      %v2139 = vsel %vm1955, %v2103, 0.0
      %2140 = vadd.xlane.f32.xlu0 %v2139
      %v2141 = vpop.xlane.xlu0 %2140
      %v2142 = vsel %vm1955, %v2105, 0.0
      %2143 = vadd.xlane.f32.xlu0 %v2142
      %v2144 = vpop.xlane.xlu0 %2143
      %v2145 = vsel %vm1955, %v2107, 0.0
      %2146 = vadd.xlane.f32.xlu0 %v2145
      %v2147 = vpop.xlane.xlu0 %2146
      %v2148 = vadd.f32 %v2116, %v2126
      %v2149 = vadd.f32 %v2117, %v2129
      %v2150 = vadd.f32 %v2118, %v2132
      %v2151 = vadd.f32 %v2119, %v2135
      %v2152 = vadd.f32 %v2120, %v2138
      %v2153 = vadd.f32 %v2121, %v2141
      %v2154 = vadd.f32 %v2122, %v2144
      %v2155 = vadd.f32 %v2123, %v2147
      %vm2156 = vcmask 0
      %2157 = vst.msk [vmem:[#allocation4] sm:$0x1] %vm2156, %v2148
      %2158 = vst.msk [vmem:[#allocation4 + $0x1] sm:$0x1] %vm2156, %v2149
      %2159 = vst.msk [vmem:[#allocation4 + $0x2] sm:$0x1] %vm2156, %v2150
      %2160 = vst.msk [vmem:[#allocation4 + $0x3] sm:$0x1] %vm2156, %v2151
      %2161 = vst.msk [vmem:[#allocation4 + $0x4] sm:$0x1] %vm2156, %v2152
      %2162 = vst.msk [vmem:[#allocation4 + $0x5] sm:$0x1] %vm2156, %v2153
      %2163 = vst.msk [vmem:[#allocation4 + $0x6] sm:$0x1] %vm2156, %v2154
      %2164 = vst.msk [vmem:[#allocation4 + $0x7] sm:$0x1] %vm2156, %v2155
      %v2165 = vld [vmem:[#allocation5] sm:$0x1]
      %v2166 = vld [vmem:[#allocation5 + $0x1] sm:$0x1]
      %v2167 = vld [vmem:[#allocation5 + $0x2] sm:$0x1]
      %v2168 = vld [vmem:[#allocation5 + $0x3] sm:$0x1]
      %v2169 = vld [vmem:[#allocation5 + $0x4] sm:$0x1]
      %v2170 = vld [vmem:[#allocation5 + $0x5] sm:$0x1]
      %v2171 = vld [vmem:[#allocation5 + $0x6] sm:$0x1]
      %v2172 = vld [vmem:[#allocation5 + $0x7] sm:$0x1]
      %2174 = vset.pattern.permute.xlu0 0
      %2175 = vperm.xlu0 %2174, %v1997
      %v2176 = vpop.permute.xlu0 %2175
      %v2178 = vlaneseq
      %v2179 = vshrl.u32 %v2178, 7
      %v2180 = vsub.s32 0, %v2179
      %v2181 = vrot.slane %v2176, %v2180
      %2183 = vset.pattern.permute.xlu0 0
      %2184 = vperm.xlu0 %2183, %v1999
      %v2185 = vpop.permute.xlu0 %2184
      %v2187 = vlaneseq
      %v2188 = vshrl.u32 %v2187, 7
      %v2189 = vsub.s32 0, %v2188
      %v2190 = vrot.slane %v2185, %v2189
      %2192 = vset.pattern.permute.xlu0 0
      %2193 = vperm.xlu0 %2192, %v2001
      %v2194 = vpop.permute.xlu0 %2193
      %v2196 = vlaneseq
      %v2197 = vshrl.u32 %v2196, 7
      %v2198 = vsub.s32 0, %v2197
      %v2199 = vrot.slane %v2194, %v2198
      %2201 = vset.pattern.permute.xlu0 0
      %2202 = vperm.xlu0 %2201, %v2003
      %v2203 = vpop.permute.xlu0 %2202
      %v2205 = vlaneseq
      %v2206 = vshrl.u32 %v2205, 7
      %v2207 = vsub.s32 0, %v2206
      %v2208 = vrot.slane %v2203, %v2207
      %2210 = vset.pattern.permute.xlu0 0
      %2211 = vperm.xlu0 %2210, %v2005
      %v2212 = vpop.permute.xlu0 %2211
      %v2214 = vlaneseq
      %v2215 = vshrl.u32 %v2214, 7
      %v2216 = vsub.s32 0, %v2215
      %v2217 = vrot.slane %v2212, %v2216
      %2219 = vset.pattern.permute.xlu0 0
      %2220 = vperm.xlu0 %2219, %v2007
      %v2221 = vpop.permute.xlu0 %2220
      %v2223 = vlaneseq
      %v2224 = vshrl.u32 %v2223, 7
      %v2225 = vsub.s32 0, %v2224
      %v2226 = vrot.slane %v2221, %v2225
      %2228 = vset.pattern.permute.xlu0 0
      %2229 = vperm.xlu0 %2228, %v2009
      %v2230 = vpop.permute.xlu0 %2229
      %v2232 = vlaneseq
      %v2233 = vshrl.u32 %v2232, 7
      %v2234 = vsub.s32 0, %v2233
      %v2235 = vrot.slane %v2230, %v2234
      %2237 = vset.pattern.permute.xlu0 0
      %2238 = vperm.xlu0 %2237, %v2011
      %v2239 = vpop.permute.xlu0 %2238
      %v2241 = vlaneseq
      %v2242 = vshrl.u32 %v2241, 7
      %v2243 = vsub.s32 0, %v2242
      %v2244 = vrot.slane %v2239, %v2243
      %v2245 = vmul.f32 %v2181, %v2165
      %v2246 = vmul.f32 %v2190, %v2166
      %v2247 = vmul.f32 %v2199, %v2167
      %v2248 = vmul.f32 %v2208, %v2168
      %v2249 = vmul.f32 %v2217, %v2169
      %v2250 = vmul.f32 %v2226, %v2170
      %v2251 = vmul.f32 %v2235, %v2171
      %v2252 = vmul.f32 %v2244, %v2172
      %v2253 = vpack.c.bf16 %v2093, %v2093
      %v2254 = vpack.c.bf16 %v2095, %v2095
      %v2255 = vpack.c.bf16 %v2097, %v2097
      %v2256 = vpack.c.bf16 %v2099, %v2099
      %v2257 = vpack.c.bf16 %v2101, %v2101
      %v2258 = vpack.c.bf16 %v2103, %v2103
      %v2259 = vpack.c.bf16 %v2105, %v2105
      %v2260 = vpack.c.bf16 %v2107, %v2107
      %v2261 = vld [vmem:[#allocation8] sm:$0xf]
      %v2262 = vld [vmem:[#allocation8 + $0x4] sm:$0xf]
      %v2263 = vld [vmem:[#allocation8 + $0x8] sm:$0xf]
      %v2264 = vld [vmem:[#allocation8 + $0xc] sm:$0xf]
      %v2265 = vld [vmem:[#allocation8 + $0x10] sm:$0xf]
      %v2266 = vld [vmem:[#allocation8 + $0x14] sm:$0xf]
      %v2267 = vld [vmem:[#allocation8 + $0x18] sm:$0xf]
      %v2268 = vld [vmem:[#allocation8 + $0x1c] sm:$0xf]
      %v2269 = vld [vmem:[#allocation8 + $0x20] sm:$0xf]
      %v2270 = vld [vmem:[#allocation8 + $0x24] sm:$0xf]
      %v2271 = vld [vmem:[#allocation8 + $0x28] sm:$0xf]
      %v2272 = vld [vmem:[#allocation8 + $0x2c] sm:$0xf]
      %v2273 = vld [vmem:[#allocation8 + $0x30] sm:$0xf]
      %v2274 = vld [vmem:[#allocation8 + $0x34] sm:$0xf]
      %v2275 = vld [vmem:[#allocation8 + $0x38] sm:$0xf]
      %v2276 = vld [vmem:[#allocation8 + $0x3c] sm:$0xf]
      %v2277 = vld [vmem:[#allocation8 + $0x40] sm:$0xf]
      %v2278 = vld [vmem:[#allocation8 + $0x44] sm:$0xf]
      %v2279 = vld [vmem:[#allocation8 + $0x48] sm:$0xf]
      %v2280 = vld [vmem:[#allocation8 + $0x4c] sm:$0xf]
      %v2281 = vld [vmem:[#allocation8 + $0x50] sm:$0xf]
      %v2282 = vld [vmem:[#allocation8 + $0x54] sm:$0xf]
      %v2283 = vld [vmem:[#allocation8 + $0x58] sm:$0xf]
      %v2284 = vld [vmem:[#allocation8 + $0x5c] sm:$0xf]
      %v2285 = vld [vmem:[#allocation8 + $0x60] sm:$0xf]
      %v2286 = vld [vmem:[#allocation8 + $0x64] sm:$0xf]
      %v2287 = vld [vmem:[#allocation8 + $0x68] sm:$0xf]
      %v2288 = vld [vmem:[#allocation8 + $0x6c] sm:$0xf]
      %v2289 = vld [vmem:[#allocation8 + $0x70] sm:$0xf]
      %v2290 = vld [vmem:[#allocation8 + $0x74] sm:$0xf]
      %v2291 = vld [vmem:[#allocation8 + $0x78] sm:$0xf]
      %v2292 = vld [vmem:[#allocation8 + $0x7c] sm:$0xf]
      %v2297 = vunpack.c.l.b16 %v2261
      %v2298 = vunpack.c.l.b16 %v2262
      %v2299 = vunpack.c.l.b16 %v2263
      %v2300 = vunpack.c.l.b16 %v2264
      %v2301 = vpack.c.b16 %v2298, %v2297
      %v2302 = vpack.c.b16 %v2300, %v2299
      %vm2305 = vcmask 261120
      %v2307 = vsel %vm2305, %v2253, 0
      %2309 = vmatprep.subr.bf16.mxu0 0
      %2310 = vmatpush1.bf16.msra.mxu0 %v2301
      %2311 = vmatprep.subr.bf16.mxu0 0
      %2312 = vmatpush1.bf16.msra.mxu0 %v2302
      %2313 = vmatprep.subr.bf16.mxu0 0
      %2314 = vmatpush1.bf16.msra.mxu0 0
      %2315 = vmatprep.subr.bf16.mxu0 0
      %2316 = vmatpush1.bf16.msra.mxu0 0
      %2317 = vmatprep.subr.bf16.mxu0 0
      %2318 = vmatpush1.bf16.msra.mxu0 0
      %2319 = vmatprep.subr.bf16.mxu0 0
      %2320 = vmatpush1.bf16.msra.mxu0 0
      %2321 = vmatprep.subr.bf16.mxu0 0
      %2322 = vmatpush1.bf16.msra.mxu0 0
      %2323 = vmatprep.subr.bf16.mxu0 0
      %2324 = vmatpush1.bf16.msra.mxu0 0
      %2325 = vmatprep.subr.bf16.mxu0 0
      %2326 = vmatpush1.bf16.msra.mxu0 0
      %2327 = vmatprep.subr.bf16.mxu0 0
      %2328 = vmatpush1.bf16.msra.mxu0 0
      %2329 = vmatprep.subr.bf16.mxu0 0
      %2330 = vmatpush1.bf16.msra.mxu0 0
      %2331 = vmatprep.subr.bf16.mxu0 0
      %2332 = vmatpush1.bf16.msra.mxu0 0
      %2333 = vmatprep.subr.bf16.mxu0 0
      %2334 = vmatpush1.bf16.msra.mxu0 0
      %2335 = vmatprep.subr.bf16.mxu0 0
      %2336 = vmatpush1.bf16.msra.mxu0 0
      %2337 = vmatprep.subr.bf16.mxu0 0
      %2338 = vmatpush1.bf16.msra.mxu0 0
      %2339 = vmatprep.subr.bf16.mxu0 0
      %2340 = vmatpush1.bf16.msra.mxu0 0
      %2341 = vmatprep.mubr.bf16.mxu0 0
      %2342 = vmatmul.mubr.bf16.gmra.mrb[0].mxu0 %v2307
      %v2343 = vpop.f32.mrb[0].mxu0
      %v2344 = vadd.f32 0.0, %v2343
      %v2345 = vpop.f32.mrb[0].mxu0
      %v2346 = vpop.f32.mrb[0].mxu0
      %v2347 = vpop.f32.mrb[0].mxu0
      %2348 = vdwg.mxu0
      %v2353 = vunpack.c.l.b16 %v2265
      %v2354 = vunpack.c.l.b16 %v2266
      %v2355 = vunpack.c.l.b16 %v2267
      %v2356 = vunpack.c.l.b16 %v2268
      %v2357 = vpack.c.b16 %v2354, %v2353
      %v2358 = vpack.c.b16 %v2356, %v2355
      %v2362 = vsel %vm2305, %v2254, 0
      %2364 = vmatprep.subr.bf16.mxu0 0
      %2365 = vmatpush1.bf16.msra.mxu0 %v2357
      %2366 = vmatprep.subr.bf16.mxu0 0
      %2367 = vmatpush1.bf16.msra.mxu0 %v2358
      %2368 = vmatprep.subr.bf16.mxu0 0
      %2369 = vmatpush1.bf16.msra.mxu0 0
      %2370 = vmatprep.subr.bf16.mxu0 0
      %2371 = vmatpush1.bf16.msra.mxu0 0
      %2372 = vmatprep.subr.bf16.mxu0 0
      %2373 = vmatpush1.bf16.msra.mxu0 0
      %2374 = vmatprep.subr.bf16.mxu0 0
      %2375 = vmatpush1.bf16.msra.mxu0 0
      %2376 = vmatprep.subr.bf16.mxu0 0
      %2377 = vmatpush1.bf16.msra.mxu0 0
      %2378 = vmatprep.subr.bf16.mxu0 0
      %2379 = vmatpush1.bf16.msra.mxu0 0
      %2380 = vmatprep.subr.bf16.mxu0 0
      %2381 = vmatpush1.bf16.msra.mxu0 0
      %2382 = vmatprep.subr.bf16.mxu0 0
      %2383 = vmatpush1.bf16.msra.mxu0 0
      %2384 = vmatprep.subr.bf16.mxu0 0
      %2385 = vmatpush1.bf16.msra.mxu0 0
      %2386 = vmatprep.subr.bf16.mxu0 0
      %2387 = vmatpush1.bf16.msra.mxu0 0
      %2388 = vmatprep.subr.bf16.mxu0 0
      %2389 = vmatpush1.bf16.msra.mxu0 0
      %2390 = vmatprep.subr.bf16.mxu0 0
      %2391 = vmatpush1.bf16.msra.mxu0 0
      %2392 = vmatprep.subr.bf16.mxu0 0
      %2393 = vmatpush1.bf16.msra.mxu0 0
      %2394 = vmatprep.subr.bf16.mxu0 0
      %2395 = vmatpush1.bf16.msra.mxu0 0
      %2396 = vmatprep.mubr.bf16.mxu0 0
      %2397 = vmatmul.mubr.bf16.gmra.mrb[0].mxu0 %v2362
      %v2398 = vpop.f32.mrb[0].mxu0
      %v2399 = vadd.f32 0.0, %v2398
      %v2400 = vpop.f32.mrb[0].mxu0
      %v2401 = vpop.f32.mrb[0].mxu0
      %v2402 = vpop.f32.mrb[0].mxu0
      %2403 = vdwg.mxu0
      %v2408 = vunpack.c.l.b16 %v2269
      %v2409 = vunpack.c.l.b16 %v2270
      %v2410 = vunpack.c.l.b16 %v2271
      %v2411 = vunpack.c.l.b16 %v2272
      %v2412 = vpack.c.b16 %v2409, %v2408
      %v2413 = vpack.c.b16 %v2411, %v2410
      %v2417 = vsel %vm2305, %v2255, 0
      %2419 = vmatprep.subr.bf16.mxu0 0
      %2420 = vmatpush1.bf16.msra.mxu0 %v2412
      %2421 = vmatprep.subr.bf16.mxu0 0
      %2422 = vmatpush1.bf16.msra.mxu0 %v2413
      %2423 = vmatprep.subr.bf16.mxu0 0
      %2424 = vmatpush1.bf16.msra.mxu0 0
      %2425 = vmatprep.subr.bf16.mxu0 0
      %2426 = vmatpush1.bf16.msra.mxu0 0
      %2427 = vmatprep.subr.bf16.mxu0 0
      %2428 = vmatpush1.bf16.msra.mxu0 0
      %2429 = vmatprep.subr.bf16.mxu0 0
      %2430 = vmatpush1.bf16.msra.mxu0 0
      %2431 = vmatprep.subr.bf16.mxu0 0
      %2432 = vmatpush1.bf16.msra.mxu0 0
      %2433 = vmatprep.subr.bf16.mxu0 0
      %2434 = vmatpush1.bf16.msra.mxu0 0
      %2435 = vmatprep.subr.bf16.mxu0 0
      %2436 = vmatpush1.bf16.msra.mxu0 0
      %2437 = vmatprep.subr.bf16.mxu0 0
      %2438 = vmatpush1.bf16.msra.mxu0 0
      %2439 = vmatprep.subr.bf16.mxu0 0
      %2440 = vmatpush1.bf16.msra.mxu0 0
      %2441 = vmatprep.subr.bf16.mxu0 0
      %2442 = vmatpush1.bf16.msra.mxu0 0
      %2443 = vmatprep.subr.bf16.mxu0 0
      %2444 = vmatpush1.bf16.msra.mxu0 0
      %2445 = vmatprep.subr.bf16.mxu0 0
      %2446 = vmatpush1.bf16.msra.mxu0 0
      %2447 = vmatprep.subr.bf16.mxu0 0
      %2448 = vmatpush1.bf16.msra.mxu0 0
      %2449 = vmatprep.subr.bf16.mxu0 0
      %2450 = vmatpush1.bf16.msra.mxu0 0
      %2451 = vmatprep.mubr.bf16.mxu0 0
      %2452 = vmatmul.mubr.bf16.gmra.mrb[0].mxu0 %v2417
      %v2453 = vpop.f32.mrb[0].mxu0
      %v2454 = vadd.f32 0.0, %v2453
      %v2455 = vpop.f32.mrb[0].mxu0
      %v2456 = vpop.f32.mrb[0].mxu0
      %v2457 = vpop.f32.mrb[0].mxu0
      %2458 = vdwg.mxu0
      %v2463 = vunpack.c.l.b16 %v2273
      %v2464 = vunpack.c.l.b16 %v2274
      %v2465 = vunpack.c.l.b16 %v2275
      %v2466 = vunpack.c.l.b16 %v2276
      %v2467 = vpack.c.b16 %v2464, %v2463
      %v2468 = vpack.c.b16 %v2466, %v2465
      %v2472 = vsel %vm2305, %v2256, 0
      %2474 = vmatprep.subr.bf16.mxu0 0
      %2475 = vmatpush1.bf16.msra.mxu0 %v2467
      %2476 = vmatprep.subr.bf16.mxu0 0
      %2477 = vmatpush1.bf16.msra.mxu0 %v2468
      %2478 = vmatprep.subr.bf16.mxu0 0
      %2479 = vmatpush1.bf16.msra.mxu0 0
      %2480 = vmatprep.subr.bf16.mxu0 0
      %2481 = vmatpush1.bf16.msra.mxu0 0
      %2482 = vmatprep.subr.bf16.mxu0 0
      %2483 = vmatpush1.bf16.msra.mxu0 0
      %2484 = vmatprep.subr.bf16.mxu0 0
      %2485 = vmatpush1.bf16.msra.mxu0 0
      %2486 = vmatprep.subr.bf16.mxu0 0
      %2487 = vmatpush1.bf16.msra.mxu0 0
      %2488 = vmatprep.subr.bf16.mxu0 0
      %2489 = vmatpush1.bf16.msra.mxu0 0
      %2490 = vmatprep.subr.bf16.mxu0 0
      %2491 = vmatpush1.bf16.msra.mxu0 0
      %2492 = vmatprep.subr.bf16.mxu0 0
      %2493 = vmatpush1.bf16.msra.mxu0 0
      %2494 = vmatprep.subr.bf16.mxu0 0
      %2495 = vmatpush1.bf16.msra.mxu0 0
      %2496 = vmatprep.subr.bf16.mxu0 0
      %2497 = vmatpush1.bf16.msra.mxu0 0
      %2498 = vmatprep.subr.bf16.mxu0 0
      %2499 = vmatpush1.bf16.msra.mxu0 0
      %2500 = vmatprep.subr.bf16.mxu0 0
      %2501 = vmatpush1.bf16.msra.mxu0 0
      %2502 = vmatprep.subr.bf16.mxu0 0
      %2503 = vmatpush1.bf16.msra.mxu0 0
      %2504 = vmatprep.subr.bf16.mxu0 0
      %2505 = vmatpush1.bf16.msra.mxu0 0
      %2506 = vmatprep.mubr.bf16.mxu0 0
      %2507 = vmatmul.mubr.bf16.gmra.mrb[0].mxu0 %v2472
      %v2508 = vpop.f32.mrb[0].mxu0
      %v2509 = vadd.f32 0.0, %v2508
      %v2510 = vpop.f32.mrb[0].mxu0
      %v2511 = vpop.f32.mrb[0].mxu0
      %v2512 = vpop.f32.mrb[0].mxu0
      %2513 = vdwg.mxu0
      %v2518 = vunpack.c.l.b16 %v2277
      %v2519 = vunpack.c.l.b16 %v2278
      %v2520 = vunpack.c.l.b16 %v2279
      %v2521 = vunpack.c.l.b16 %v2280
      %v2522 = vpack.c.b16 %v2519, %v2518
      %v2523 = vpack.c.b16 %v2521, %v2520
      %v2527 = vsel %vm2305, %v2257, 0
      %2529 = vmatprep.subr.bf16.mxu0 0
      %2530 = vmatpush1.bf16.msra.mxu0 %v2522
      %2531 = vmatprep.subr.bf16.mxu0 0
      %2532 = vmatpush1.bf16.msra.mxu0 %v2523
      %2533 = vmatprep.subr.bf16.mxu0 0
      %2534 = vmatpush1.bf16.msra.mxu0 0
      %2535 = vmatprep.subr.bf16.mxu0 0
      %2536 = vmatpush1.bf16.msra.mxu0 0
      %2537 = vmatprep.subr.bf16.mxu0 0
      %2538 = vmatpush1.bf16.msra.mxu0 0
      %2539 = vmatprep.subr.bf16.mxu0 0
      %2540 = vmatpush1.bf16.msra.mxu0 0
      %2541 = vmatprep.subr.bf16.mxu0 0
      %2542 = vmatpush1.bf16.msra.mxu0 0
      %2543 = vmatprep.subr.bf16.mxu0 0
      %2544 = vmatpush1.bf16.msra.mxu0 0
      %2545 = vmatprep.subr.bf16.mxu0 0
      %2546 = vmatpush1.bf16.msra.mxu0 0
      %2547 = vmatprep.subr.bf16.mxu0 0
      %2548 = vmatpush1.bf16.msra.mxu0 0
      %2549 = vmatprep.subr.bf16.mxu0 0
      %2550 = vmatpush1.bf16.msra.mxu0 0
      %2551 = vmatprep.subr.bf16.mxu0 0
      %2552 = vmatpush1.bf16.msra.mxu0 0
      %2553 = vmatprep.subr.bf16.mxu0 0
      %2554 = vmatpush1.bf16.msra.mxu0 0
      %2555 = vmatprep.subr.bf16.mxu0 0
      %2556 = vmatpush1.bf16.msra.mxu0 0
      %2557 = vmatprep.subr.bf16.mxu0 0
      %2558 = vmatpush1.bf16.msra.mxu0 0
      %2559 = vmatprep.subr.bf16.mxu0 0
      %2560 = vmatpush1.bf16.msra.mxu0 0
      %2561 = vmatprep.mubr.bf16.mxu0 0
      %2562 = vmatmul.mubr.bf16.gmra.mrb[0].mxu0 %v2527
      %v2563 = vpop.f32.mrb[0].mxu0
      %v2564 = vadd.f32 0.0, %v2563
      %v2565 = vpop.f32.mrb[0].mxu0
      %v2566 = vpop.f32.mrb[0].mxu0
      %v2567 = vpop.f32.mrb[0].mxu0
      %2568 = vdwg.mxu0
      %v2573 = vunpack.c.l.b16 %v2281
      %v2574 = vunpack.c.l.b16 %v2282
      %v2575 = vunpack.c.l.b16 %v2283
      %v2576 = vunpack.c.l.b16 %v2284
      %v2577 = vpack.c.b16 %v2574, %v2573
      %v2578 = vpack.c.b16 %v2576, %v2575
      %v2582 = vsel %vm2305, %v2258, 0
      %2584 = vmatprep.subr.bf16.mxu0 0
      %2585 = vmatpush1.bf16.msra.mxu0 %v2577
      %2586 = vmatprep.subr.bf16.mxu0 0
      %2587 = vmatpush1.bf16.msra.mxu0 %v2578
      %2588 = vmatprep.subr.bf16.mxu0 0
      %2589 = vmatpush1.bf16.msra.mxu0 0
      %2590 = vmatprep.subr.bf16.mxu0 0
      %2591 = vmatpush1.bf16.msra.mxu0 0
      %2592 = vmatprep.subr.bf16.mxu0 0
      %2593 = vmatpush1.bf16.msra.mxu0 0
      %2594 = vmatprep.subr.bf16.mxu0 0
      %2595 = vmatpush1.bf16.msra.mxu0 0
      %2596 = vmatprep.subr.bf16.mxu0 0
      %2597 = vmatpush1.bf16.msra.mxu0 0
      %2598 = vmatprep.subr.bf16.mxu0 0
      %2599 = vmatpush1.bf16.msra.mxu0 0
      %2600 = vmatprep.subr.bf16.mxu0 0
      %2601 = vmatpush1.bf16.msra.mxu0 0
      %2602 = vmatprep.subr.bf16.mxu0 0
      %2603 = vmatpush1.bf16.msra.mxu0 0
      %2604 = vmatprep.subr.bf16.mxu0 0
      %2605 = vmatpush1.bf16.msra.mxu0 0
      %2606 = vmatprep.subr.bf16.mxu0 0
      %2607 = vmatpush1.bf16.msra.mxu0 0
      %2608 = vmatprep.subr.bf16.mxu0 0
      %2609 = vmatpush1.bf16.msra.mxu0 0
      %2610 = vmatprep.subr.bf16.mxu0 0
      %2611 = vmatpush1.bf16.msra.mxu0 0
      %2612 = vmatprep.subr.bf16.mxu0 0
      %2613 = vmatpush1.bf16.msra.mxu0 0
      %2614 = vmatprep.subr.bf16.mxu0 0
      %2615 = vmatpush1.bf16.msra.mxu0 0
      %2616 = vmatprep.mubr.bf16.mxu0 0
      %2617 = vmatmul.mubr.bf16.gmra.mrb[0].mxu0 %v2582
      %v2618 = vpop.f32.mrb[0].mxu0
      %v2619 = vadd.f32 0.0, %v2618
      %v2620 = vpop.f32.mrb[0].mxu0
      %v2621 = vpop.f32.mrb[0].mxu0
      %v2622 = vpop.f32.mrb[0].mxu0
      %2623 = vdwg.mxu0
      %v2628 = vunpack.c.l.b16 %v2285
      %v2629 = vunpack.c.l.b16 %v2286
      %v2630 = vunpack.c.l.b16 %v2287
      %v2631 = vunpack.c.l.b16 %v2288
      %v2632 = vpack.c.b16 %v2629, %v2628
      %v2633 = vpack.c.b16 %v2631, %v2630
      %v2637 = vsel %vm2305, %v2259, 0
      %2639 = vmatprep.subr.bf16.mxu0 0
      %2640 = vmatpush1.bf16.msra.mxu0 %v2632
      %2641 = vmatprep.subr.bf16.mxu0 0
      %2642 = vmatpush1.bf16.msra.mxu0 %v2633
      %2643 = vmatprep.subr.bf16.mxu0 0
      %2644 = vmatpush1.bf16.msra.mxu0 0
      %2645 = vmatprep.subr.bf16.mxu0 0
      %2646 = vmatpush1.bf16.msra.mxu0 0
      %2647 = vmatprep.subr.bf16.mxu0 0
      %2648 = vmatpush1.bf16.msra.mxu0 0
      %2649 = vmatprep.subr.bf16.mxu0 0
      %2650 = vmatpush1.bf16.msra.mxu0 0
      %2651 = vmatprep.subr.bf16.mxu0 0
      %2652 = vmatpush1.bf16.msra.mxu0 0
      %2653 = vmatprep.subr.bf16.mxu0 0
      %2654 = vmatpush1.bf16.msra.mxu0 0
      %2655 = vmatprep.subr.bf16.mxu0 0
      %2656 = vmatpush1.bf16.msra.mxu0 0
      %2657 = vmatprep.subr.bf16.mxu0 0
      %2658 = vmatpush1.bf16.msra.mxu0 0
      %2659 = vmatprep.subr.bf16.mxu0 0
      %2660 = vmatpush1.bf16.msra.mxu0 0
      %2661 = vmatprep.subr.bf16.mxu0 0
      %2662 = vmatpush1.bf16.msra.mxu0 0
      %2663 = vmatprep.subr.bf16.mxu0 0
      %2664 = vmatpush1.bf16.msra.mxu0 0
      %2665 = vmatprep.subr.bf16.mxu0 0
      %2666 = vmatpush1.bf16.msra.mxu0 0
      %2667 = vmatprep.subr.bf16.mxu0 0
      %2668 = vmatpush1.bf16.msra.mxu0 0
      %2669 = vmatprep.subr.bf16.mxu0 0
      %2670 = vmatpush1.bf16.msra.mxu0 0
      %2671 = vmatprep.mubr.bf16.mxu0 0
      %2672 = vmatmul.mubr.bf16.gmra.mrb[0].mxu0 %v2637
      %v2673 = vpop.f32.mrb[0].mxu0
      %v2674 = vadd.f32 0.0, %v2673
      %v2675 = vpop.f32.mrb[0].mxu0
      %v2676 = vpop.f32.mrb[0].mxu0
      %v2677 = vpop.f32.mrb[0].mxu0
      %2678 = vdwg.mxu0
      %v2683 = vunpack.c.l.b16 %v2289
      %v2684 = vunpack.c.l.b16 %v2290
      %v2685 = vunpack.c.l.b16 %v2291
      %v2686 = vunpack.c.l.b16 %v2292
      %v2687 = vpack.c.b16 %v2684, %v2683
      %v2688 = vpack.c.b16 %v2686, %v2685
      %v2692 = vsel %vm2305, %v2260, 0
      %2694 = vmatprep.subr.bf16.mxu0 0
      %2695 = vmatpush1.bf16.msra.mxu0 %v2687
      %2696 = vmatprep.subr.bf16.mxu0 0
      %2697 = vmatpush1.bf16.msra.mxu0 %v2688
      %2698 = vmatprep.subr.bf16.mxu0 0
      %2699 = vmatpush1.bf16.msra.mxu0 0
      %2700 = vmatprep.subr.bf16.mxu0 0
      %2701 = vmatpush1.bf16.msra.mxu0 0
      %2702 = vmatprep.subr.bf16.mxu0 0
      %2703 = vmatpush1.bf16.msra.mxu0 0
      %2704 = vmatprep.subr.bf16.mxu0 0
      %2705 = vmatpush1.bf16.msra.mxu0 0
      %2706 = vmatprep.subr.bf16.mxu0 0
      %2707 = vmatpush1.bf16.msra.mxu0 0
      %2708 = vmatprep.subr.bf16.mxu0 0
      %2709 = vmatpush1.bf16.msra.mxu0 0
      %2710 = vmatprep.subr.bf16.mxu0 0
      %2711 = vmatpush1.bf16.msra.mxu0 0
      %2712 = vmatprep.subr.bf16.mxu0 0
      %2713 = vmatpush1.bf16.msra.mxu0 0
      %2714 = vmatprep.subr.bf16.mxu0 0
      %2715 = vmatpush1.bf16.msra.mxu0 0
      %2716 = vmatprep.subr.bf16.mxu0 0
      %2717 = vmatpush1.bf16.msra.mxu0 0
      %2718 = vmatprep.subr.bf16.mxu0 0
      %2719 = vmatpush1.bf16.msra.mxu0 0
      %2720 = vmatprep.subr.bf16.mxu0 0
      %2721 = vmatpush1.bf16.msra.mxu0 0
      %2722 = vmatprep.subr.bf16.mxu0 0
      %2723 = vmatpush1.bf16.msra.mxu0 0
      %2724 = vmatprep.subr.bf16.mxu0 0
      %2725 = vmatpush1.bf16.msra.mxu0 0
      %2726 = vmatprep.mubr.bf16.mxu0 0
      %2727 = vmatmul.mubr.bf16.gmra.mrb[0].mxu0 %v2692
      %v2728 = vpop.f32.mrb[0].mxu0
      %v2729 = vadd.f32 0.0, %v2728
      %v2730 = vpop.f32.mrb[0].mxu0
      %v2731 = vpop.f32.mrb[0].mxu0
      %v2732 = vpop.f32.mrb[0].mxu0
      %2733 = vdwg.mxu0
      %v2734 = vadd.f32 %v2245, %v2344
      %v2735 = vadd.f32 %v2246, %v2399
      %v2736 = vadd.f32 %v2247, %v2454
      %v2737 = vadd.f32 %v2248, %v2509
      %v2738 = vadd.f32 %v2249, %v2564
      %v2739 = vadd.f32 %v2250, %v2619
      %v2740 = vadd.f32 %v2251, %v2674
      %v2741 = vadd.f32 %v2252, %v2729
      %2742 = vst [vmem:[#allocation5] sm:$0x1] %v2734
      %2743 = vst [vmem:[#allocation5 + $0x1] sm:$0x1] %v2735
      %2744 = vst [vmem:[#allocation5 + $0x2] sm:$0x1] %v2736
      %2745 = vst [vmem:[#allocation5 + $0x3] sm:$0x1] %v2737
      %2746 = vst [vmem:[#allocation5 + $0x4] sm:$0x1] %v2738
      %2747 = vst [vmem:[#allocation5 + $0x5] sm:$0x1] %v2739
      %2748 = vst [vmem:[#allocation5 + $0x6] sm:$0x1] %v2740
      %2749 = vst [vmem:[#allocation5 + $0x7] sm:$0x1] %v2741
      %2750 = vst.msk [vmem:[#allocation3] sm:$0x1] %vm2156, %v1980
      %2751 = vst.msk [vmem:[#allocation3 + $0x1] sm:$0x1] %vm2156, %v1981
      %2752 = vst.msk [vmem:[#allocation3 + $0x2] sm:$0x1] %vm2156, %v1982
      %2753 = vst.msk [vmem:[#allocation3 + $0x3] sm:$0x1] %vm2156, %v1983
      %2754 = vst.msk [vmem:[#allocation3 + $0x4] sm:$0x1] %vm2156, %v1984
      %2755 = vst.msk [vmem:[#allocation3 + $0x5] sm:$0x1] %vm2156, %v1985
      %2756 = vst.msk [vmem:[#allocation3 + $0x6] sm:$0x1] %vm2156, %v1986
      %2757 = vst.msk [vmem:[#allocation3 + $0x7] sm:$0x1] %vm2156, %v1987
    $region37: #{tpu_custom_call.1} parent=1 // pred_fallthru
      _
    // Predicated region
    $region38: #{tpu_custom_call.1} parent=1 // pred_check
      %p2758 = pneg %p62
    $region39: #{tpu_custom_call.1} parent=1 // pred_check_branch
      %2760 = sbr.rel (%p2758) target = $region41
    $region40: #{tpu_custom_call.1} parent=1 // pred_region
      %v2761 = vld [vmem:[#allocation5] sm:$0x1]
      %v2762 = vld [vmem:[#allocation5 + $0x1] sm:$0x1]
      %v2763 = vld [vmem:[#allocation5 + $0x2] sm:$0x1]
      %v2764 = vld [vmem:[#allocation5 + $0x3] sm:$0x1]
      %v2765 = vld [vmem:[#allocation5 + $0x4] sm:$0x1]
      %v2766 = vld [vmem:[#allocation5 + $0x5] sm:$0x1]
      %v2767 = vld [vmem:[#allocation5 + $0x6] sm:$0x1]
      %v2768 = vld [vmem:[#allocation5 + $0x7] sm:$0x1]
      %v2769 = vld [vmem:[#allocation4] sm:$0x1]
      %v2770 = vld [vmem:[#allocation4 + $0x1] sm:$0x1]
      %v2771 = vld [vmem:[#allocation4 + $0x2] sm:$0x1]
      %v2772 = vld [vmem:[#allocation4 + $0x3] sm:$0x1]
      %v2773 = vld [vmem:[#allocation4 + $0x4] sm:$0x1]
      %v2774 = vld [vmem:[#allocation4 + $0x5] sm:$0x1]
      %v2775 = vld [vmem:[#allocation4 + $0x6] sm:$0x1]
      %v2776 = vld [vmem:[#allocation4 + $0x7] sm:$0x1]
      %v2777 = vmax.f32 %v2769, 1e-30
      %v2778 = vmax.f32 %v2770, 1e-30
      %v2779 = vmax.f32 %v2771, 1e-30
      %v2780 = vmax.f32 %v2772, 1e-30
      %v2781 = vmax.f32 %v2773, 1e-30
      %v2782 = vmax.f32 %v2774, 1e-30
      %v2783 = vmax.f32 %v2775, 1e-30
      %v2784 = vmax.f32 %v2776, 1e-30
      %2786 = vset.pattern.permute.xlu0 0
      %2787 = vperm.xlu0 %2786, %v2777
      %v2788 = vpop.permute.xlu0 %2787
      %v2790 = vlaneseq
      %v2791 = vshrl.u32 %v2790, 7
      %v2792 = vsub.s32 0, %v2791
      %v2793 = vrot.slane %v2788, %v2792
      %2795 = vset.pattern.permute.xlu0 0
      %2796 = vperm.xlu0 %2795, %v2778
      %v2797 = vpop.permute.xlu0 %2796
      %v2799 = vlaneseq
      %v2800 = vshrl.u32 %v2799, 7
      %v2801 = vsub.s32 0, %v2800
      %v2802 = vrot.slane %v2797, %v2801
      %2804 = vset.pattern.permute.xlu0 0
      %2805 = vperm.xlu0 %2804, %v2779
      %v2806 = vpop.permute.xlu0 %2805
      %v2808 = vlaneseq
      %v2809 = vshrl.u32 %v2808, 7
      %v2810 = vsub.s32 0, %v2809
      %v2811 = vrot.slane %v2806, %v2810
      %2813 = vset.pattern.permute.xlu0 0
      %2814 = vperm.xlu0 %2813, %v2780
      %v2815 = vpop.permute.xlu0 %2814
      %v2817 = vlaneseq
      %v2818 = vshrl.u32 %v2817, 7
      %v2819 = vsub.s32 0, %v2818
      %v2820 = vrot.slane %v2815, %v2819
      %2822 = vset.pattern.permute.xlu0 0
      %2823 = vperm.xlu0 %2822, %v2781
      %v2824 = vpop.permute.xlu0 %2823
      %v2826 = vlaneseq
      %v2827 = vshrl.u32 %v2826, 7
      %v2828 = vsub.s32 0, %v2827
      %v2829 = vrot.slane %v2824, %v2828
      %2831 = vset.pattern.permute.xlu0 0
      %2832 = vperm.xlu0 %2831, %v2782
      %v2833 = vpop.permute.xlu0 %2832
      %v2835 = vlaneseq
      %v2836 = vshrl.u32 %v2835, 7
      %v2837 = vsub.s32 0, %v2836
      %v2838 = vrot.slane %v2833, %v2837
      %2840 = vset.pattern.permute.xlu0 0
      %2841 = vperm.xlu0 %2840, %v2783
      %v2842 = vpop.permute.xlu0 %2841
      %v2844 = vlaneseq
      %v2845 = vshrl.u32 %v2844, 7
      %v2846 = vsub.s32 0, %v2845
      %v2847 = vrot.slane %v2842, %v2846
      %2849 = vset.pattern.permute.xlu0 0
      %2850 = vperm.xlu0 %2849, %v2784
      %v2851 = vpop.permute.xlu0 %2850
      %v2853 = vlaneseq
      %v2854 = vshrl.u32 %v2853, 7
      %v2855 = vsub.s32 0, %v2854
      %v2856 = vrot.slane %v2851, %v2855
      %v2857 = vrcp.pop %v2793
      %v2858 = vmul.f32 %v2761, %v2857
      %v2859 = vrcp.pop %v2802
      %v2860 = vmul.f32 %v2762, %v2859
      %v2861 = vrcp.pop %v2811
      %v2862 = vmul.f32 %v2763, %v2861
      %v2863 = vrcp.pop %v2820
      %v2864 = vmul.f32 %v2764, %v2863
      %v2865 = vrcp.pop %v2829
      %v2866 = vmul.f32 %v2765, %v2865
      %v2867 = vrcp.pop %v2838
      %v2868 = vmul.f32 %v2766, %v2867
      %v2869 = vrcp.pop %v2847
      %v2870 = vmul.f32 %v2767, %v2869
      %v2871 = vrcp.pop %v2856
      %v2872 = vmul.f32 %v2768, %v2871
      %v2873 = vld [vmem:[%s1] sm:$0x1]
      %v2874 = vld [vmem:[%s1 + $0x1] sm:$0x1]
      %v2875 = vld [vmem:[%s1 + $0x2] sm:$0x1]
      %v2876 = vld [vmem:[%s1 + $0x3] sm:$0x1]
      %v2877 = vld [vmem:[%s1 + $0x4] sm:$0x1]
      %v2878 = vld [vmem:[%s1 + $0x5] sm:$0x1]
      %v2879 = vld [vmem:[%s1 + $0x6] sm:$0x1]
      %v2880 = vld [vmem:[%s1 + $0x7] sm:$0x1]
      %vm2881 = vcmp.gt.s32.totalorder %v2873, 0
      %vm2882 = vcmp.gt.s32.totalorder %v2874, 0
      %vm2883 = vcmp.gt.s32.totalorder %v2875, 0
      %vm2884 = vcmp.gt.s32.totalorder %v2876, 0
      %vm2885 = vcmp.gt.s32.totalorder %v2877, 0
      %vm2886 = vcmp.gt.s32.totalorder %v2878, 0
      %vm2887 = vcmp.gt.s32.totalorder %v2879, 0
      %vm2888 = vcmp.gt.s32.totalorder %v2880, 0
      %v2889 = vsel %vm2881, 1, 0
      %v2890 = vsel %vm2882, 1, 0
      %v2891 = vsel %vm2883, 1, 0
      %v2892 = vsel %vm2884, 1, 0
      %v2893 = vsel %vm2885, 1, 0
      %v2894 = vsel %vm2886, 1, 0
      %v2895 = vsel %vm2887, 1, 0
      %v2896 = vsel %vm2888, 1, 0
      %2897 = vset.pattern.permute.xlu0 0
      %2898 = vperm.xlu0 %2897, %v2889
      %v2899 = vpop.permute.xlu0 %2898
      %v2900 = vlaneseq
      %v2901 = vshrl.u32 %v2900, 7
      %v2902 = vsub.s32 0, %v2901
      %v2903 = vrot.slane %v2899, %v2902
      %2904 = vset.pattern.permute.xlu0 0
      %2905 = vperm.xlu0 %2904, %v2890
      %v2906 = vpop.permute.xlu0 %2905
      %v2907 = vlaneseq
      %v2908 = vshrl.u32 %v2907, 7
      %v2909 = vsub.s32 0, %v2908
      %v2910 = vrot.slane %v2906, %v2909
      %2911 = vset.pattern.permute.xlu0 0
      %2912 = vperm.xlu0 %2911, %v2891
      %v2913 = vpop.permute.xlu0 %2912
      %v2914 = vlaneseq
      %v2915 = vshrl.u32 %v2914, 7
      %v2916 = vsub.s32 0, %v2915
      %v2917 = vrot.slane %v2913, %v2916
      %2918 = vset.pattern.permute.xlu0 0
      %2919 = vperm.xlu0 %2918, %v2892
      %v2920 = vpop.permute.xlu0 %2919
      %v2921 = vlaneseq
      %v2922 = vshrl.u32 %v2921, 7
      %v2923 = vsub.s32 0, %v2922
      %v2924 = vrot.slane %v2920, %v2923
      %2925 = vset.pattern.permute.xlu0 0
      %2926 = vperm.xlu0 %2925, %v2893
      %v2927 = vpop.permute.xlu0 %2926
      %v2928 = vlaneseq
      %v2929 = vshrl.u32 %v2928, 7
      %v2930 = vsub.s32 0, %v2929
      %v2931 = vrot.slane %v2927, %v2930
      %2932 = vset.pattern.permute.xlu0 0
      %2933 = vperm.xlu0 %2932, %v2894
      %v2934 = vpop.permute.xlu0 %2933
      %v2935 = vlaneseq
      %v2936 = vshrl.u32 %v2935, 7
      %v2937 = vsub.s32 0, %v2936
      %v2938 = vrot.slane %v2934, %v2937
      %2939 = vset.pattern.permute.xlu0 0
      %2940 = vperm.xlu0 %2939, %v2895
      %v2941 = vpop.permute.xlu0 %2940
      %v2942 = vlaneseq
      %v2943 = vshrl.u32 %v2942, 7
      %v2944 = vsub.s32 0, %v2943
      %v2945 = vrot.slane %v2941, %v2944
      %2946 = vset.pattern.permute.xlu0 0
      %2947 = vperm.xlu0 %2946, %v2896
      %v2948 = vpop.permute.xlu0 %2947
      %v2949 = vlaneseq
      %v2950 = vshrl.u32 %v2949, 7
      %v2951 = vsub.s32 0, %v2950
      %v2952 = vrot.slane %v2948, %v2951
      %vm2953 = vcmp.eq.s32.totalorder %v2903, 1
      %vm2954 = vcmp.eq.s32.totalorder %v2910, 1
      %vm2955 = vcmp.eq.s32.totalorder %v2917, 1
      %vm2956 = vcmp.eq.s32.totalorder %v2924, 1
      %vm2957 = vcmp.eq.s32.totalorder %v2931, 1
      %vm2958 = vcmp.eq.s32.totalorder %v2938, 1
      %vm2959 = vcmp.eq.s32.totalorder %v2945, 1
      %vm2960 = vcmp.eq.s32.totalorder %v2952, 1
      %v2961 = vsel %vm2953, %v2858, 0.0
      %v2962 = vsel %vm2954, %v2860, 0.0
      %v2963 = vsel %vm2955, %v2862, 0.0
      %v2964 = vsel %vm2956, %v2864, 0.0
      %v2965 = vsel %vm2957, %v2866, 0.0
      %v2966 = vsel %vm2958, %v2868, 0.0
      %v2967 = vsel %vm2959, %v2870, 0.0
      %v2968 = vsel %vm2960, %v2872, 0.0
      %2969 = vst [vmem:[#allocation13] sm:$0x1] %v2961
      %2970 = vst [vmem:[#allocation13 + $0x1] sm:$0x1] %v2962
      %2971 = vst [vmem:[#allocation13 + $0x2] sm:$0x1] %v2963
      %2972 = vst [vmem:[#allocation13 + $0x3] sm:$0x1] %v2964
      %2973 = vst [vmem:[#allocation13 + $0x4] sm:$0x1] %v2965
      %2974 = vst [vmem:[#allocation13 + $0x5] sm:$0x1] %v2966
      %2975 = vst [vmem:[#allocation13 + $0x6] sm:$0x1] %v2967
      %2976 = vst [vmem:[#allocation13 + $0x7] sm:$0x1] %v2968
    $region41: #{tpu_custom_call.1} parent=1 // pred_fallthru
      _
    // Predicated region
    $region42: #{tpu_custom_call.1} parent=1 // pred_check
      _
    $region43: #{tpu_custom_call.1} parent=1 // pred_check_branch
      %2978 = sbr.rel (0) target = $region45
    $region44: #{tpu_custom_call.1} parent=1 // pred_region
      %s2980 = ssub.s32 128, 128
      %2981 = vsyncadd [#allocation10], %s2980
      %s2982 = sshll.u32 [#allocation13], 4
      %s2983 = int_to_ptr.vmem [resolvable:$true] %s2982
      %2988 = dma.vmem_to_hbm [thread:$0]  %s2983, 128, %s6, [#allocation10], 16, 16, 1
    $region45: #{tpu_custom_call.1} parent=1 // pred_fallthru
      _
    // Predicated region
    $region46: #{tpu_custom_call.1} parent=1 // pred_check
      _
    $region47: #{tpu_custom_call.1} parent=1 // pred_check_branch
      %2990 = sbr.rel (0) target = $region49
    $region48: #{tpu_custom_call.1} parent=1 // pred_region
      %2991 = dma.done [#allocation10], 128
    $region49: #{tpu_custom_call.1} parent=1 // pred_fallthru
      _
    %2992 = vsyncpa [#allocation9], 1
    %2993 = vsyncpa [#allocation12], 1
    %2994 = vsyncpa [#allocation10], 1

</llo_original>
